<compile_context>
chip_gen: v5e
topology: v5e:2x2
jax: 0.10.0
libtpu: 0.0.40
codegen_flags: <defaults>
</compile_context>

<pallas_src>
import functools

import jax
import jax.numpy as jnp
from jax.experimental import pallas as pl
from jax.experimental.pallas import tpu as pltpu

IN_DIM = 512
HID = 1024
N_PARALLEL = 4
N_STREAMED = N_PARALLEL + 1  # 4 parallel layers + output layer


def _round_up(n: int, m: int) -> int:
    return ((n + m - 1) // m) * m


def _fused_mlp_kernel(x_ref, w0_ref, b0_ref, wr_ref, br_ref, o_ref, act_ref):
    """Grid = (batch_tiles, N_STREAMED); one step = one streamed layer, one tile.

    act_ref (VMEM fp32) carries the activation across the layer axis.  The
    512->1024 input layer is computed in the l == 0 prologue from the unpadded
    bf16 x block (x/w0/b0 have constant index maps along the layer axis, so
    they are DMA'd once per batch tile).  wr_ref streams one (1024,1024) bf16
    slab per step; br_ref is the resident (5,1,1024) fp32 bias stack.
    """
    l = pl.program_id(1)
    last = pl.num_programs(1) - 1

    @pl.when(l == 0)
    def _():
        act_ref[...] = (
            jnp.dot(x_ref[...], w0_ref[...], preferred_element_type=jnp.float32)
            + b0_ref[...]
        )

    y = (
        jnp.dot(
            act_ref[...].astype(wr_ref.dtype),
            wr_ref[...],
            preferred_element_type=jnp.float32,
        )
        + br_ref[l]
    )

    @pl.when(l != last)
    def _():
        act_ref[...] = y

    @pl.when(l == last)
    def _():
        o_ref[...] = y.astype(o_ref.dtype)


@functools.partial(jax.jit, static_argnames=("tb", "weight_buffers"))
def _forward_impl(x, w0, b0, w_rest, b_rest, *, tb, weight_buffers):
    B, kin = x.shape
    assert kin == IN_DIM
    L, D, _ = w_rest.shape

    B_pad = _round_up(max(B, 1), tb)
    x_pad = (
        jnp.zeros((B_pad, IN_DIM), jnp.bfloat16).at[:B].set(x.astype(jnp.bfloat16))
    )

    if weight_buffers > 0:
        w_spec = pl.BlockSpec(
            (None, D, D), lambda b, l: (l, 0, 0),
            pipeline_mode=pl.Buffered(weight_buffers),
        )
    else:
        w_spec = pl.BlockSpec((None, D, D), lambda b, l: (l, 0, 0))

    grid = (B_pad // tb, L)
    out = pl.pallas_call(
        _fused_mlp_kernel,
        out_shape=jax.ShapeDtypeStruct((B_pad, D), jnp.float32),
        grid_spec=pltpu.PrefetchScalarGridSpec(
            num_scalar_prefetch=0,
            grid=grid,
            in_specs=[
                # x: unpadded bf16 (tb,512), constant along layer axis.
                pl.BlockSpec((tb, IN_DIM), lambda b, l: (b, 0)),
                # layer-0 weight: full (512,1024) bf16, DMA'd once per batch tile.
                pl.BlockSpec((IN_DIM, D), lambda b, l: (0, 0)),
                # layer-0 bias: (1,1024) fp32.
                pl.BlockSpec((1, D), lambda b, l: (0, 0)),
                # streamed (1024,1024) bf16 slabs, one per layer step.
                w_spec,
                # resident (5,1,1024) fp32 bias stack, indexed in-kernel.
                pl.BlockSpec((L, 1, D), lambda b, l: (0, 0, 0)),
            ],
            out_specs=pl.BlockSpec((tb, D), lambda b, l: (b, 0)),
            scratch_shapes=[pltpu.VMEM((tb, D), jnp.float32)],
        ),
        compiler_params=pltpu.CompilerParams(
            dimension_semantics=("parallel", "arbitrary"),
            vmem_limit_bytes=32 * 1024 * 1024,
        ),
    )(x_pad, w0, b0, w_rest, b_rest)
    return out[:B]


def enhanced_model_forward(x, params, *, max_tile=256):
    """Pallas forward of EnhancedModel.

    x:      (B, 512) fp32
    params: (w0, b0, w_rest, b_rest) from init_params
    returns (B, 1024) fp32
    """
    w0, b0, w_rest, b_rest = params
    B = x.shape[0]
    tb = min(max_tile, _round_up(B, 8))  # sublane multiple; cap per VMEM budget
    try:
        return _forward_impl(x, w0, b0, w_rest, b_rest, tb=tb, weight_buffers=3)
    except Exception:
        # Fallback for JAX versions without BlockSpec.pipeline_mode / pl.Buffered.
        return _forward_impl(x, w0, b0, w_rest, b_rest, tb=tb, weight_buffers=0)


def init_params(key, num_devices=2, weight_dtype=jnp.bfloat16):
    """Deterministic synthetic parameters matching EnhancedModel.__init__ shapes.

    Returns (w0, b0, w_rest, b_rest):
      w0:     (512, 1024)    weight_dtype, x@W layout (torch weight.T)
      b0:     (1, 1024)      fp32
      w_rest: (5, 1024, 1024) weight_dtype (4 parallel layers + output layer)
      b_rest: (5, 1, 1024)   fp32
    """
    n_keys = 2 + N_PARALLEL * 2 * num_devices + 2
    ks = iter(jax.random.split(key, n_keys))

    def nrm(shape):
        return jax.random.normal(next(ks), shape, jnp.float32) * 0.02

    # input_layer: nn.Linear(512, 1024).  torch weight is (out,in) -> transpose.
    w0 = nrm((HID, IN_DIM)).T                      # (512, 1024)
    b0 = nrm((HID,)).reshape(1, HID)               # (1, 1024)

    ws, bs = [], []
    shard = HID // num_devices
    for _ in range(N_PARALLEL):
        w_sh = [nrm((shard, HID)) for _ in range(num_devices)]
        b_sh = [nrm((shard,)) for _ in range(num_devices)]
        # torch.cat([x @ w_i.T + b_i], dim=1) == x @ cat(w_i, 0).T + cat(b_i)
        ws.append(jnp.concatenate(w_sh, axis=0).T)           # (1024, 1024)
        bs.append(jnp.concatenate(b_sh, axis=0).reshape(1, HID))

    # output_layer: nn.Linear(1024, 1024)
    ws.append(nrm((HID, HID)).T)
    bs.append(nrm((HID,)).reshape(1, HID))

    return (
        w0.astype(weight_dtype),
        b0.astype(jnp.float32),
        jnp.stack(ws).astype(weight_dtype),
        jnp.stack(bs).astype(jnp.float32),
    )


def _reference_forward(x, params):
    """Pure-JAX reference mirroring the kernel's precision (bf16 weights/acts,
    fp32 accumulation + fp32 bias adds)."""
    w0, b0, w_rest, b_rest = params
    act = (
        jnp.dot(x.astype(w0.dtype), w0, preferred_element_type=jnp.float32) + b0
    )
    for l in range(w_rest.shape[0]):
        act = (
            jnp.dot(
                act.astype(w_rest.dtype), w_rest[l],
                preferred_element_type=jnp.float32,
            )
            + b_rest[l]
        )
    return act


if __name__ == "__main__":
    key = jax.random.PRNGKey(0)
    k_param, k_x1, k_x2 = jax.random.split(key, 3)

    params = init_params(k_param, num_devices=2)

    # Small batch (single batch tile) — the common inference regime.
    B1 = 4
    x1 = jax.random.normal(k_x1, (B1, IN_DIM), jnp.float32)
    y1 = jax.block_until_ready(enhanced_model_forward(x1, params))
    ref1 = _reference_forward(x1, params)
    assert y1.shape == (B1, HID)
    assert jnp.allclose(y1, ref1, atol=5e-3, rtol=5e-3), "small-batch mismatch"

    # Multi-batch-tile case exercising batch padding + the parallel batch axis.
    B2 = 300
    x2 = jax.random.normal(k_x2, (B2, IN_DIM), jnp.float32)
    y2 = jax.block_until_ready(enhanced_model_forward(x2, params))
    ref2 = _reference_forward(x2, params)
    assert y2.shape == (B2, HID)
    assert jnp.allclose(y2, ref2, atol=5e-3, rtol=5e-3), "multi-tile mismatch"

    print("KERNEL_OK")
</pallas_src>

<mosaic_0001>
module attributes {stable_mosaic.version = 11 : i64} {
  func.func @_fused_mlp_kernel(%arg0: i32, %arg1: i32, %arg2: memref<8x512xbf16, #tpu.memory_space<vmem>>, %arg3: memref<512x1024xbf16, #tpu.memory_space<vmem>>, %arg4: memref<1x1024xf32, #tpu.memory_space<vmem>>, %arg5: memref<1x1024x1024xbf16, #tpu.memory_space<vmem>>, %arg6: memref<5x1x1024xf32, #tpu.memory_space<vmem>>, %arg7: memref<8x1024xf32, #tpu.memory_space<vmem>>, %arg8: memref<8x1024xf32, #tpu.memory_space<vmem>>) attributes {dimension_semantics = [#tpu.dimension_semantics<parallel>, #tpu.dimension_semantics<arbitrary>], iteration_bounds = array<i64: 1, 5>, scalar_prefetch = 0 : i64, scratch_operands = 1 : i64, tpu.core_type = #tpu.core_type<tc>, window_params = [{transform_indices = @transform_0, window_bounds = array<i64: 8, 512>}, {pipeline_mode = #tpu.pipeline_mode<synchronous>, transform_indices = @transform_1, window_bounds = array<i64: 512, 1024>}, {pipeline_mode = #tpu.pipeline_mode<synchronous>, transform_indices = @transform_2, window_bounds = array<i64: 1, 1024>}, {transform_indices = @transform_3, window_bounds = array<i64: 1, 1024, 1024>}, {pipeline_mode = #tpu.pipeline_mode<synchronous>, transform_indices = @transform_4, window_bounds = array<i64: 5, 1, 1024>}, {transform_indices = @transform_5, window_bounds = array<i64: 8, 1024>}]} {
    %c0_i32 = arith.constant 0 : i32
    %0 = arith.cmpi eq, %arg1, %c0_i32 : i32
    %1 = arith.extui %0 : i1 to i32
    %c0_i32_0 = arith.constant 0 : i32
    %2 = arith.cmpi ne, %1, %c0_i32_0 : i32
    scf.if %2 {
      %c0_10 = arith.constant 0 : index
      %c0_11 = arith.constant 0 : index
      %19 = vector.load %arg2[%c0_10, %c0_11] : memref<8x512xbf16, #tpu.memory_space<vmem>>, vector<8x512xbf16>
      %c0_12 = arith.constant 0 : index
      %c0_13 = arith.constant 0 : index
      %20 = vector.load %arg3[%c0_12, %c0_13] : memref<512x1024xbf16, #tpu.memory_space<vmem>>, vector<512x1024xbf16>
      %cst_14 = arith.constant dense<0.000000e+00> : vector<8x1024xf32>
      %21 = tpu.matmul %19, %20, %cst_14 {dimension_numbers = #tpu.dot_dimension_numbers<[1], [0], [0], [1], [0, 0, 1, 1], [], []>} : vector<8x512xbf16>, vector<512x1024xbf16>, vector<8x1024xf32> -> vector<8x1024xf32>
      %c0_15 = arith.constant 0 : index
      %c0_16 = arith.constant 0 : index
      %22 = vector.load %arg4[%c0_15, %c0_16] : memref<1x1024xf32, #tpu.memory_space<vmem>>, vector<1x1024xf32>
      %23 = vector.broadcast %22 : vector<1x1024xf32> to vector<8x1024xf32>
      %24 = arith.addf %21, %23 : vector<8x1024xf32>
      %c0_17 = arith.constant 0 : index
      %c0_18 = arith.constant 0 : index
      %25 = vector.load %arg8[%c0_17, %c0_18] : memref<8x1024xf32, #tpu.memory_space<vmem>>, vector<8x1024xf32>
      tpu.vector_store %arg8[%c0_17, %c0_18], %24 {strides = array<i32>} : memref<8x1024xf32, #tpu.memory_space<vmem>>, vector<8x1024xf32>,
    } else {
    }
    %c0 = arith.constant 0 : index
    %c0_1 = arith.constant 0 : index
    %3 = vector.load %arg8[%c0, %c0_1] : memref<8x1024xf32, #tpu.memory_space<vmem>>, vector<8x1024xf32>
    %4 = arith.truncf %3 : vector<8x1024xf32> to vector<8x1024xbf16>
    %c0_2 = arith.constant 0 : index
    %c0_3 = arith.constant 0 : index
    %c0_4 = arith.constant 0 : index
    %5 = vector.load %arg5[%c0_2, %c0_3, %c0_4] : memref<1x1024x1024xbf16, #tpu.memory_space<vmem>>, vector<1x1024x1024xbf16>
    %6 = vector.shape_cast %5 : vector<1x1024x1024xbf16> to vector<1024x1024xbf16>
    %cst = arith.constant dense<0.000000e+00> : vector<8x1024xf32>
    %7 = tpu.matmul %4, %6, %cst {dimension_numbers = #tpu.dot_dimension_numbers<[1], [0], [0], [1], [0, 0, 1, 1], [], []>} : vector<8x1024xbf16>, vector<1024x1024xbf16>, vector<8x1024xf32> -> vector<8x1024xf32>
    %8 = arith.index_cast %arg1 : i32 to index
    %c0_5 = arith.constant 0 : index
    %c0_6 = arith.constant 0 : index
    %9 = vector.load %arg6[%8, %c0_5, %c0_6] : memref<5x1x1024xf32, #tpu.memory_space<vmem>>, vector<1x1x1024xf32>
    %10 = vector.shape_cast %9 : vector<1x1x1024xf32> to vector<1x1024xf32>
    %11 = vector.broadcast %10 : vector<1x1024xf32> to vector<8x1024xf32>
    %12 = arith.addf %7, %11 : vector<8x1024xf32>
    %c4_i32 = arith.constant 4 : i32
    %13 = arith.cmpi ne, %arg1, %c4_i32 : i32
    %14 = arith.extui %13 : i1 to i32
    %c0_i32_7 = arith.constant 0 : i32
    %15 = arith.cmpi ne, %14, %c0_i32_7 : i32
    scf.if %15 {
      %c0_10 = arith.constant 0 : index
      %c0_11 = arith.constant 0 : index
      %19 = vector.load %arg8[%c0_10, %c0_11] : memref<8x1024xf32, #tpu.memory_space<vmem>>, vector<8x1024xf32>
      tpu.vector_store %arg8[%c0_10, %c0_11], %12 {strides = array<i32>} : memref<8x1024xf32, #tpu.memory_space<vmem>>, vector<8x1024xf32>,
    } else {
    }
    %c4_i32_8 = arith.constant 4 : i32
    %16 = arith.cmpi eq, %arg1, %c4_i32_8 : i32
    %17 = arith.extui %16 : i1 to i32
    %c0_i32_9 = arith.constant 0 : i32
    %18 = arith.cmpi ne, %17, %c0_i32_9 : i32
    scf.if %18 {
      %c0_10 = arith.constant 0 : index
      %c0_11 = arith.constant 0 : index
      %19 = vector.load %arg7[%c0_10, %c0_11] : memref<8x1024xf32, #tpu.memory_space<vmem>>, vector<8x1024xf32>
      tpu.vector_store %arg7[%c0_10, %c0_11], %12 {strides = array<i32>} : memref<8x1024xf32, #tpu.memory_space<vmem>>, vector<8x1024xf32>,
    } else {
    }
    return
  }
  func.func @transform_0(%arg0: i32, %arg1: i32) -> (i32, i32) {
    %c0_i32 = arith.constant 0 : i32
    %c0_i32_0 = arith.constant 0 : i32
    return %arg0, %c0_i32 : i32, i32
  }
  func.func @transform_1(%arg0: i32, %arg1: i32) -> (i32, i32) {
    %c0_i32 = arith.constant 0 : i32
    %c0_i32_0 = arith.constant 0 : i32
    %c0_i32_1 = arith.constant 0 : i32
    return %c0_i32, %c0_i32_0 : i32, i32
  }
  func.func @transform_2(%arg0: i32, %arg1: i32) -> (i32, i32) {
    %c0_i32 = arith.constant 0 : i32
    %c0_i32_0 = arith.constant 0 : i32
    %c0_i32_1 = arith.constant 0 : i32
    return %c0_i32, %c0_i32_0 : i32, i32
  }
  func.func @transform_3(%arg0: i32, %arg1: i32) -> (i32, i32, i32) {
    %c0_i32 = arith.constant 0 : i32
    %c0_i32_0 = arith.constant 0 : i32
    %c0_i32_1 = arith.constant 0 : i32
    return %arg1, %c0_i32, %c0_i32_0 : i32, i32, i32
  }
  func.func @transform_4(%arg0: i32, %arg1: i32) -> (i32, i32, i32) {
    %c0_i32 = arith.constant 0 : i32
    %c0_i32_0 = arith.constant 0 : i32
    %c0_i32_1 = arith.constant 0 : i32
    %c0_i32_2 = arith.constant 0 : i32
    return %c0_i32, %c0_i32_0, %c0_i32_1 : i32, i32, i32
  }
  func.func @transform_5(%arg0: i32, %arg1: i32) -> (i32, i32) {
    %c0_i32 = arith.constant 0 : i32
    %c0_i32_0 = arith.constant 0 : i32
    return %arg0, %c0_i32 : i32, i32
  }
}

</mosaic_0001>

<llo_original>
// kernel: _forward_impl.1
$region0: #{_forward_impl.1}
  #allocation0 [shape = 'u32[]', space=smem, size = 0x4, offset = 0x4, fixed_abs, tag = 'smem constant byte address 0x4 - core index']
  #allocation1 [shape = 'u32[72,128]{1,0:T(1,128)}', space=vmem, size = 0x9000, scoped, tag = 'internal scratch']
  #allocation2 [shape = 'f32[8,1024]{1,0:T(8,128)}', space=vmem, size = 0x8000, scoped, tag = 'scratch operand']
  %s0 = inlined_call_operand.vmem [shape: bf16[8,512], index: 0, kind: input, shape index: {}]
  %s1 = inlined_call_operand.hbm [shape: bf16[512,1024], index: 1, kind: input, shape index: {}]
  %s2 = inlined_call_operand.hbm [shape: f32[1,1024], index: 2, kind: input, shape index: {}]
  %s3 = inlined_call_operand.hbm [shape: bf16[5,1024,1024], index: 3, kind: input, shape index: {}]
  %s4 = inlined_call_operand.hbm [shape: f32[5,1,1024], index: 4, kind: input, shape index: {}]
  %s5 = inlined_call_operand.vmem [shape: f32[8,1024], index: 5, kind: output, shape index: {}]
  %s6 = sld [smem:[#allocation0]]
  $region81: #{_forward_impl.1} parent=0
    _
  %s8 = ssub.s32 1, %s6
  %s9 = scalar_select 0, %s8, %s6
  $region1: #{_forward_impl.1} parent=0
    #allocation3 [shape = 'u8[1048576]{0}', space=vmem, size = 0x100000, scoped, tag = 'input window, operand 1, single buffered']
    #allocation4 [shape = 's32[2]{0}', space=sflag, size = 0x8, scoped, tag = 'scoped memory for _forward_impl.1']
    #allocation5 [shape = 'u8[4096]{0}', space=vmem, size = 0x1000, scoped, tag = 'input window, operand 2, single buffered']
    #allocation6 [shape = 's32[1]{0}', space=sflag, size = 0x4, scoped, tag = 'scoped memory for _forward_impl.1']
    #allocation7 [shape = 'u8[4194304]{0}', space=vmem, size = 0x400000, scoped, tag = 'input window, operand 3']
    #allocation8 [shape = 'u8[20480]{0}', space=vmem, size = 0x5000, scoped, tag = 'input window, operand 4, single buffered']
    %10 = vsyncpa [#allocation4], 0
    %11 = vsyncpa [#allocation6], 0
    loop: start=0, step=1, limit=7
    $region2: #{_forward_impl.1} parent=1 // loop_pre_header
      _
    $region3: #{_forward_impl.1} parent=1 // loop_header
      %s13 = sphi 0, %s17
      %p14 = scmp.ge.s32.totalorder %s13, 7
      %s20 = sphi 0, %s32
      %s21 = sphi 0, %s28
      %s22 = sphi 0, %s20
      %s23 = sphi 0, %s21
      %s24 = sphi 0, %s22
      %s25 = sphi 0, %s23
      %s35 = sphi 0, %s37
      %s38 = sphi 0, %s35
      %s39 = sphi 0, %s38
      %s55 = sphi 0, %s39
      %s59 = sphi 0, %s59
      %s61 = sphi 0, %s59
      %s62 = sphi 0, %s61
      %s76 = sphi 0, %s62
      %s80 = sphi 0, %s80
      %s82 = sphi 0, %s80
      %s83 = sphi 0, %s82
      %s97 = sphi 0, %s83
      %s103 = sphi 0, %s105
      %s106 = sphi 0, %s103
      %s107 = sphi 0, %s106
      %s123 = sphi 0, %s107
      %s127 = sphi 0, %s127
      %s129 = sphi 0, %s127
      %s130 = sphi 0, %s129
      %s144 = sphi 0, %s130
      %s150 = sphi 0, %s152
      %s153 = sphi 0, %s150
      %s154 = sphi 0, %s153
      %s170 = sphi 0, %s154
    $region4: #{_forward_impl.1} parent=1 // loop_header_branch
      %16 = sbr.rel (%p14) target = $region8
    $region5: #{_forward_impl.1} parent=1 // loop_body
      %s18 = ssub.s32 %s13, 1
      %s19 = ssub.s32 %s13, 2
      %s26 = sadd.s32 1, %s21
      %p27 = scmp.ge.s32.totalorder %s26, 5
      %s28 = scalar_select %p27, 0, %s26
      %s29 = sadd.s32 1, %s20
      %s30 = scalar_select %p27, %s29, %s20
      %p31 = scmp.ge.s32.totalorder %s30, 1
      %s32 = scalar_select %p31, 0, %s30
      %s33 = ssub.s32 %s20, %s32
      %p34 = scmp.eq.s32.totalorder %s33, 0
      %s36 = sadd.s32 %s35, 1
      %s37 = scalar_select %p34, %s35, %s36
      %p40 = pneg %p34
      %p41 = scmp.eq.s32.totalorder %s13, 4
      %p42 = por %p40, %p41
      %p43 = scmp.ne.s32.totalorder %s35, %s38
      %p44 = scmp.eq.s32.totalorder %s13, 0
      %p45 = por %p43, %p44
      %p46 = scmp.ne.s32.totalorder %s35, %s38
      %p47 = scmp.eq.s32.totalorder %s18, 4
      %p48 = por %p46, %p47
      %p49 = scmp.ne.s32.totalorder %s38, %s39
      %p50 = scmp.eq.s32.totalorder %s18, 0
      %p51 = por %p49, %p50
      %p52 = scmp.ne.s32.totalorder %s38, %s39
      %p53 = scmp.eq.s32.totalorder %s19, 4
      %p54 = por %p52, %p53
      %p56 = scmp.ne.s32.totalorder %s39, %s55
      %p57 = scmp.eq.s32.totalorder %s19, 0
      %p58 = por %p56, %p57
      %s60 = sadd.s32 %s59, 1
      %p63 = scmp.eq.s32.totalorder %s13, 4
      %p64 = scmp.ne.s32.totalorder %s59, %s61
      %p65 = scmp.eq.s32.totalorder %s13, 0
      %p66 = por %p64, %p65
      %p67 = scmp.ne.s32.totalorder %s59, %s61
      %p68 = scmp.eq.s32.totalorder %s18, 4
      %p69 = por %p67, %p68
      %p70 = scmp.ne.s32.totalorder %s61, %s62
      %p71 = scmp.eq.s32.totalorder %s18, 0
      %p72 = por %p70, %p71
      %p73 = scmp.ne.s32.totalorder %s61, %s62
      %p74 = scmp.eq.s32.totalorder %s19, 4
      %p75 = por %p73, %p74
      %p77 = scmp.ne.s32.totalorder %s62, %s76
      %p78 = scmp.eq.s32.totalorder %s19, 0
      %p79 = por %p77, %p78
      %s81 = sadd.s32 %s80, 1
      %p84 = scmp.eq.s32.totalorder %s13, 4
      %p85 = scmp.ne.s32.totalorder %s80, %s82
      %p86 = scmp.eq.s32.totalorder %s13, 0
      %p87 = por %p85, %p86
      %p88 = scmp.ne.s32.totalorder %s80, %s82
      %p89 = scmp.eq.s32.totalorder %s18, 4
      %p90 = por %p88, %p89
      %p91 = scmp.ne.s32.totalorder %s82, %s83
      %p92 = scmp.eq.s32.totalorder %s18, 0
      %p93 = por %p91, %p92
      %p94 = scmp.ne.s32.totalorder %s82, %s83
      %p95 = scmp.eq.s32.totalorder %s19, 4
      %p96 = por %p94, %p95
      %p98 = scmp.ne.s32.totalorder %s83, %s97
      %p99 = scmp.eq.s32.totalorder %s19, 0
      %p100 = por %p98, %p99
      %s101 = ssub.s32 %s21, %s28
      %p102 = scmp.eq.s32.totalorder %s101, 0
      %s104 = sadd.s32 %s103, 1
      %s105 = scalar_select %p102, %s103, %s104
      %p108 = pneg %p102
      %p109 = scmp.eq.s32.totalorder %s13, 4
      %p110 = por %p108, %p109
      %p111 = scmp.ne.s32.totalorder %s103, %s106
      %p112 = scmp.eq.s32.totalorder %s13, 0
      %p113 = por %p111, %p112
      %p114 = scmp.ne.s32.totalorder %s103, %s106
      %p115 = scmp.eq.s32.totalorder %s18, 4
      %p116 = por %p114, %p115
      %p117 = scmp.ne.s32.totalorder %s106, %s107
      %p118 = scmp.eq.s32.totalorder %s18, 0
      %p119 = por %p117, %p118
      %p120 = scmp.ne.s32.totalorder %s106, %s107
      %p121 = scmp.eq.s32.totalorder %s19, 4
      %p122 = por %p120, %p121
      %p124 = scmp.ne.s32.totalorder %s107, %s123
      %p125 = scmp.eq.s32.totalorder %s19, 0
      %p126 = por %p124, %p125
      %s128 = sadd.s32 %s127, 1
      %p131 = scmp.eq.s32.totalorder %s13, 4
      %p132 = scmp.ne.s32.totalorder %s127, %s129
      %p133 = scmp.eq.s32.totalorder %s13, 0
      %p134 = por %p132, %p133
      %p135 = scmp.ne.s32.totalorder %s127, %s129
      %p136 = scmp.eq.s32.totalorder %s18, 4
      %p137 = por %p135, %p136
      %p138 = scmp.ne.s32.totalorder %s129, %s130
      %p139 = scmp.eq.s32.totalorder %s18, 0
      %p140 = por %p138, %p139
      %p141 = scmp.ne.s32.totalorder %s129, %s130
      %p142 = scmp.eq.s32.totalorder %s19, 4
      %p143 = por %p141, %p142
      %p145 = scmp.ne.s32.totalorder %s130, %s144
      %p146 = scmp.eq.s32.totalorder %s19, 0
      %p147 = por %p145, %p146
      %s148 = ssub.s32 %s20, %s32
      %p149 = scmp.eq.s32.totalorder %s148, 0
      %s151 = sadd.s32 %s150, 1
      %s152 = scalar_select %p149, %s150, %s151
      %p155 = pneg %p149
      %p156 = scmp.eq.s32.totalorder %s13, 4
      %p157 = por %p155, %p156
      %p158 = scmp.ne.s32.totalorder %s150, %s153
      %p159 = scmp.eq.s32.totalorder %s13, 0
      %p160 = por %p158, %p159
      %p161 = scmp.ne.s32.totalorder %s150, %s153
      %p162 = scmp.eq.s32.totalorder %s18, 4
      %p163 = por %p161, %p162
      %p164 = scmp.ne.s32.totalorder %s153, %s154
      %p165 = scmp.eq.s32.totalorder %s18, 0
      %p166 = por %p164, %p165
      %p167 = scmp.ne.s32.totalorder %s153, %s154
      %p168 = scmp.eq.s32.totalorder %s19, 4
      %p169 = por %p167, %p168
      %p171 = scmp.ne.s32.totalorder %s154, %s170
      %p172 = scmp.eq.s32.totalorder %s19, 0
      %p173 = por %p171, %p172
      %p174 = scmp.le.s32.totalorder 1, %s13
      %p175 = scmp.lt.s32.totalorder %s13, 6
      %p176 = pnand %p174, %p175
      %p177 = pneg %p176
      // Predicated region
      $region9: #{_forward_impl.1} parent=5 // pred_check
        _
      $region10: #{_forward_impl.1} parent=5 // pred_check_branch
        %179 = sbr.rel (%p176) target = $region12
      $region11: #{_forward_impl.1} parent=5 // pred_region
        %s180 = ssub.s32 %s13, 1
        // Predicated region
        $region13: #{_forward_impl.1} parent=11 // pred_check
          %p181 = pneg %p51
        $region14: #{_forward_impl.1} parent=11 // pred_check_branch
          %183 = sbr.rel (%p181) target = $region16
        $region15: #{_forward_impl.1} parent=11 // pred_region
          %p184 = scmp.lt.s32.totalorder %s22, 0
          %s185 = scalar_select %p184, %s22, 0
          %s186 = smul.addr %s185, 4
          %s187 = smul.addr %s186, 4
          %s188 = scalar_lea.vmem %s0, %s187
        $region16: #{_forward_impl.1} parent=11 // pred_fallthru
          _
        // Predicated region
        $region17: #{_forward_impl.1} parent=11 // pred_check
          %p189 = pneg %p72
        $region18: #{_forward_impl.1} parent=11 // pred_check_branch
          %191 = sbr.rel (%p189) target = $region20
        $region19: #{_forward_impl.1} parent=11 // pred_region
          %193 = vsyncadd [#allocation4], 0
          %s194 = sshll.u32 %s1, 4
          %s195 = int_to_ptr.hbm [resolvable:$true] %s194
          %s196 = sshll.u32 [#allocation3], 4
          %s197 = int_to_ptr.vmem [resolvable:$true] %s196
          %202 = dma.hbm_to_vmem [thread:$0]  %s195, 32768, %s197, [#allocation4], 512, 512, 32
        $region20: #{_forward_impl.1} parent=11 // pred_fallthru
          _
        // Predicated region
        $region21: #{_forward_impl.1} parent=11 // pred_check
          %p203 = pneg %p93
        $region22: #{_forward_impl.1} parent=11 // pred_check_branch
          %205 = sbr.rel (%p203) target = $region24
        $region23: #{_forward_impl.1} parent=11 // pred_region
          %207 = vsyncadd [#allocation6], 0
          %s209 = sshll.u32 %s2, 4
          %s210 = int_to_ptr.hbm [resolvable:$true] %s209
          %s211 = sshll.u32 [#allocation5], 4
          %s212 = int_to_ptr.vmem [resolvable:$true] %s211
          %214 = dma.hbm_to_vmem [thread:$0]  %s210, 128, %s212, [#allocation6]
        $region24: #{_forward_impl.1} parent=11 // pred_fallthru
          _
        // Predicated region
        $region25: #{_forward_impl.1} parent=11 // pred_check
          %p215 = pneg %p140
        $region26: #{_forward_impl.1} parent=11 // pred_check_branch
          %217 = sbr.rel (%p215) target = $region28
        $region27: #{_forward_impl.1} parent=11 // pred_region
          %219 = vsyncadd [#allocation6], 0
          %s220 = sshll.u32 %s4, 4
          %s221 = int_to_ptr.hbm [resolvable:$true] %s220
          %s222 = sshll.u32 [#allocation8], 4
          %s223 = int_to_ptr.vmem [resolvable:$true] %s222
          %228 = dma.hbm_to_vmem [thread:$0]  %s221, 640, %s223, [#allocation6], 128, 128, 8
        $region28: #{_forward_impl.1} parent=11 // pred_fallthru
          _
      $region12: #{_forward_impl.1} parent=5 // pred_fallthru
        _
      %p229 = scmp.lt.s32.totalorder %s13, 5
      // Predicated region
      $region29: #{_forward_impl.1} parent=5 // pred_check
        %p230 = pneg %p229
      $region30: #{_forward_impl.1} parent=5 // pred_check_branch
        %232 = sbr.rel (%p230) target = $region32
      $region31: #{_forward_impl.1} parent=5 // pred_region
        // Predicated region
        $region33: #{_forward_impl.1} parent=31 // pred_check
          %p233 = pneg %p113
        $region34: #{_forward_impl.1} parent=31 // pred_check_branch
          %235 = sbr.rel (%p233) target = $region36
        $region35: #{_forward_impl.1} parent=31 // pred_region
          %s236 = sand.u32 %s13, 1
          %s237 = scalar_lea.sflag [#allocation4], %s236
          %s238 = sand.u32 %s103, 1
          %s239 = smul.addr %s238, 4096
          %s240 = scalar_lea.vmem [#allocation7], %s239
          %242 = vsyncadd %s237, 0
          %s243 = smul.addr %s21, 1024
          %s244 = smul.addr %s243, 4
          %s245 = scalar_lea.hbm %s3, %s244
          %s246 = sshll.u32 %s245, 4
          %s247 = int_to_ptr.hbm [resolvable:$true] %s246
          %s248 = sshll.u32 %s240, 4
          %s249 = int_to_ptr.vmem [resolvable:$true] %s248
          %254 = dma.hbm_to_vmem [thread:$0]  %s247, 65536, %s249, %s237, 512, 512, 32
        $region36: #{_forward_impl.1} parent=31 // pred_fallthru
          _
      $region32: #{_forward_impl.1} parent=5 // pred_fallthru
        _
      %p255 = scmp.le.s32.totalorder 1, %s13
      %p256 = scmp.lt.s32.totalorder %s13, 6
      %p257 = pnand %p255, %p256
      %p258 = pneg %p257
      // Predicated region
      $region37: #{_forward_impl.1} parent=5 // pred_check
        _
      $region38: #{_forward_impl.1} parent=5 // pred_check_branch
        %260 = sbr.rel (%p257) target = $region40
      $region39: #{_forward_impl.1} parent=5 // pred_region
        %s261 = ssub.s32 %s13, 1
        // Predicated region
        $region41: #{_forward_impl.1} parent=39 // pred_check
          %p262 = pneg %p72
        $region42: #{_forward_impl.1} parent=39 // pred_check_branch
          %264 = sbr.rel (%p262) target = $region44
        $region43: #{_forward_impl.1} parent=39 // pred_region
          %266 = dma.done [#allocation4], 32768
        $region44: #{_forward_impl.1} parent=39 // pred_fallthru
          _
        // Predicated region
        $region45: #{_forward_impl.1} parent=39 // pred_check
          %p267 = pneg %p93
        $region46: #{_forward_impl.1} parent=39 // pred_check_branch
          %269 = sbr.rel (%p267) target = $region48
        $region47: #{_forward_impl.1} parent=39 // pred_region
          %271 = dma.done [#allocation6], 128
        $region48: #{_forward_impl.1} parent=39 // pred_fallthru
          _
        %s272 = sand.u32 %s18, 1
        %s273 = scalar_lea.sflag [#allocation4], %s272
        %s274 = sand.u32 %s106, 1
        %s275 = smul.addr %s274, 4096
        %s276 = scalar_lea.vmem [#allocation7], %s275
        // Predicated region
        $region49: #{_forward_impl.1} parent=39 // pred_check
          %p277 = pneg %p119
        $region50: #{_forward_impl.1} parent=39 // pred_check_branch
          %279 = sbr.rel (%p277) target = $region52
        $region51: #{_forward_impl.1} parent=39 // pred_region
          %281 = dma.done %s273, 65536
        $region52: #{_forward_impl.1} parent=39 // pred_fallthru
          _
        // Predicated region
        $region53: #{_forward_impl.1} parent=39 // pred_check
          %p282 = pneg %p140
        $region54: #{_forward_impl.1} parent=39 // pred_check_branch
          %284 = sbr.rel (%p282) target = $region56
        $region55: #{_forward_impl.1} parent=39 // pred_region
          %286 = dma.done [#allocation6], 640
        $region56: #{_forward_impl.1} parent=39 // pred_fallthru
          _
        %p287 = scmp.lt.s32.totalorder %s22, 0
        %s288 = scalar_select %p287, %s22, 0
        %s289 = smul.addr %s288, 4
        %s290 = smul.addr %s289, 4
        %s291 = scalar_lea.vmem %s0, %s290
        %p292 = pneg %p51
        %p293 = pneg %p48
        %p294 = pneg %p72
        %p295 = pneg %p69
        %p296 = pneg %p93
        %p297 = pneg %p90
        %s298 = sand.u32 %s18, 1
        %s299 = scalar_lea.sflag [#allocation4], %s298
        %s300 = sand.u32 %s106, 1
        %s301 = smul.addr %s300, 4096
        %s302 = scalar_lea.vmem [#allocation7], %s301
        %p303 = pneg %p119
        %p304 = pneg %p116
        %p305 = pneg %p140
        %p306 = pneg %p137
        %p307 = pneg %p166
        %p308 = pneg %p163
        %p309 = scmp.lt.s32.totalorder %s22, 0
        %s310 = scalar_select %p309, %s22, 0
        %s311 = smul.addr %s310, 8
        %s312 = smul.addr %s311, 8
        %s313 = scalar_lea.vmem %s5, %s312
        %p314 = scmp.lt.s32.totalorder %s22, 0
        %s315 = scalar_select %p314, %s22, 0
        %s316 = smul.addr %s315, 4
        %s317 = smul.addr %s316, 4
        %s318 = scalar_lea.vmem %s0, %s317
        %p319 = scmp.lt.s32.totalorder %s22, 0
        %s320 = scalar_select %p319, %s22, 0
        %s321 = smul.addr %s320, 8
        %s322 = smul.addr %s321, 8
        %s323 = scalar_lea.vmem %s5, %s322
        %p324 = scmp.eq.s32.totalorder %s23, 0
        // Predicated region
        $region57: #{_forward_impl.1} parent=39 // pred_check
          %p325 = pneg %p324
        $region58: #{_forward_impl.1} parent=39 // pred_check_branch
          %327 = sbr.rel (%p325) target = $region60
        $region59: #{_forward_impl.1} parent=39 // pred_region
          %v328 = vld [vmem:[%s318] sm:$0xff]
          %v329 = vld [vmem:[%s318 + $0x8] sm:$0xff]
          %v330 = vld [vmem:[#allocation3] sm:$0xff]
          %v331 = vld [vmem:[#allocation3 + $0x8] sm:$0xff]
          %v332 = vld [vmem:[#allocation3 + $0x10] sm:$0xff]
          %v333 = vld [vmem:[#allocation3 + $0x18] sm:$0xff]
          %v334 = vld [vmem:[#allocation3 + $0x20] sm:$0xff]
          %v335 = vld [vmem:[#allocation3 + $0x28] sm:$0xff]
          %v336 = vld [vmem:[#allocation3 + $0x30] sm:$0xff]
          %v337 = vld [vmem:[#allocation3 + $0x38] sm:$0xff]
          %v338 = vld [vmem:[#allocation3 + $0x40] sm:$0xff]
          %v339 = vld [vmem:[#allocation3 + $0x48] sm:$0xff]
          %v340 = vld [vmem:[#allocation3 + $0x50] sm:$0xff]
          %v341 = vld [vmem:[#allocation3 + $0x58] sm:$0xff]
          %v342 = vld [vmem:[#allocation3 + $0x60] sm:$0xff]
          %v343 = vld [vmem:[#allocation3 + $0x68] sm:$0xff]
          %v344 = vld [vmem:[#allocation3 + $0x70] sm:$0xff]
          %v345 = vld [vmem:[#allocation3 + $0x78] sm:$0xff]
          %v346 = vld [vmem:[#allocation3 + $0x80] sm:$0xff]
          %v347 = vld [vmem:[#allocation3 + $0x88] sm:$0xff]
          %v348 = vld [vmem:[#allocation3 + $0x90] sm:$0xff]
          %v349 = vld [vmem:[#allocation3 + $0x98] sm:$0xff]
          %v350 = vld [vmem:[#allocation3 + $0xa0] sm:$0xff]
          %v351 = vld [vmem:[#allocation3 + $0xa8] sm:$0xff]
          %v352 = vld [vmem:[#allocation3 + $0xb0] sm:$0xff]
          %v353 = vld [vmem:[#allocation3 + $0xb8] sm:$0xff]
          %v354 = vld [vmem:[#allocation3 + $0xc0] sm:$0xff]
          %v355 = vld [vmem:[#allocation3 + $0xc8] sm:$0xff]
          %v356 = vld [vmem:[#allocation3 + $0xd0] sm:$0xff]
          %v357 = vld [vmem:[#allocation3 + $0xd8] sm:$0xff]
          %v358 = vld [vmem:[#allocation3 + $0xe0] sm:$0xff]
          %v359 = vld [vmem:[#allocation3 + $0xe8] sm:$0xff]
          %v360 = vld [vmem:[#allocation3 + $0xf0] sm:$0xff]
          %v361 = vld [vmem:[#allocation3 + $0xf8] sm:$0xff]
          %v362 = vld [vmem:[#allocation3 + $0x100] sm:$0xff]
          %v363 = vld [vmem:[#allocation3 + $0x108] sm:$0xff]
          %v364 = vld [vmem:[#allocation3 + $0x110] sm:$0xff]
          %v365 = vld [vmem:[#allocation3 + $0x118] sm:$0xff]
          %v366 = vld [vmem:[#allocation3 + $0x120] sm:$0xff]
          %v367 = vld [vmem:[#allocation3 + $0x128] sm:$0xff]
          %v368 = vld [vmem:[#allocation3 + $0x130] sm:$0xff]
          %v369 = vld [vmem:[#allocation3 + $0x138] sm:$0xff]
          %v370 = vld [vmem:[#allocation3 + $0x140] sm:$0xff]
          %v371 = vld [vmem:[#allocation3 + $0x148] sm:$0xff]
          %v372 = vld [vmem:[#allocation3 + $0x150] sm:$0xff]
          %v373 = vld [vmem:[#allocation3 + $0x158] sm:$0xff]
          %v374 = vld [vmem:[#allocation3 + $0x160] sm:$0xff]
          %v375 = vld [vmem:[#allocation3 + $0x168] sm:$0xff]
          %v376 = vld [vmem:[#allocation3 + $0x170] sm:$0xff]
          %v377 = vld [vmem:[#allocation3 + $0x178] sm:$0xff]
          %v378 = vld [vmem:[#allocation3 + $0x180] sm:$0xff]
          %v379 = vld [vmem:[#allocation3 + $0x188] sm:$0xff]
          %v380 = vld [vmem:[#allocation3 + $0x190] sm:$0xff]
          %v381 = vld [vmem:[#allocation3 + $0x198] sm:$0xff]
          %v382 = vld [vmem:[#allocation3 + $0x1a0] sm:$0xff]
          %v383 = vld [vmem:[#allocation3 + $0x1a8] sm:$0xff]
          %v384 = vld [vmem:[#allocation3 + $0x1b0] sm:$0xff]
          %v385 = vld [vmem:[#allocation3 + $0x1b8] sm:$0xff]
          %v386 = vld [vmem:[#allocation3 + $0x1c0] sm:$0xff]
          %v387 = vld [vmem:[#allocation3 + $0x1c8] sm:$0xff]
          %v388 = vld [vmem:[#allocation3 + $0x1d0] sm:$0xff]
          %v389 = vld [vmem:[#allocation3 + $0x1d8] sm:$0xff]
          %v390 = vld [vmem:[#allocation3 + $0x1e0] sm:$0xff]
          %v391 = vld [vmem:[#allocation3 + $0x1e8] sm:$0xff]
          %v392 = vld [vmem:[#allocation3 + $0x1f0] sm:$0xff]
          %v393 = vld [vmem:[#allocation3 + $0x1f8] sm:$0xff]
          %v394 = vld [vmem:[#allocation3 + $0x200] sm:$0xff]
          %v395 = vld [vmem:[#allocation3 + $0x208] sm:$0xff]
          %v396 = vld [vmem:[#allocation3 + $0x210] sm:$0xff]
          %v397 = vld [vmem:[#allocation3 + $0x218] sm:$0xff]
          %v398 = vld [vmem:[#allocation3 + $0x220] sm:$0xff]
          %v399 = vld [vmem:[#allocation3 + $0x228] sm:$0xff]
          %v400 = vld [vmem:[#allocation3 + $0x230] sm:$0xff]
          %v401 = vld [vmem:[#allocation3 + $0x238] sm:$0xff]
          %v402 = vld [vmem:[#allocation3 + $0x240] sm:$0xff]
          %v403 = vld [vmem:[#allocation3 + $0x248] sm:$0xff]
          %v404 = vld [vmem:[#allocation3 + $0x250] sm:$0xff]
          %v405 = vld [vmem:[#allocation3 + $0x258] sm:$0xff]
          %v406 = vld [vmem:[#allocation3 + $0x260] sm:$0xff]
          %v407 = vld [vmem:[#allocation3 + $0x268] sm:$0xff]
          %v408 = vld [vmem:[#allocation3 + $0x270] sm:$0xff]
          %v409 = vld [vmem:[#allocation3 + $0x278] sm:$0xff]
          %v410 = vld [vmem:[#allocation3 + $0x280] sm:$0xff]
          %v411 = vld [vmem:[#allocation3 + $0x288] sm:$0xff]
          %v412 = vld [vmem:[#allocation3 + $0x290] sm:$0xff]
          %v413 = vld [vmem:[#allocation3 + $0x298] sm:$0xff]
          %v414 = vld [vmem:[#allocation3 + $0x2a0] sm:$0xff]
          %v415 = vld [vmem:[#allocation3 + $0x2a8] sm:$0xff]
          %v416 = vld [vmem:[#allocation3 + $0x2b0] sm:$0xff]
          %v417 = vld [vmem:[#allocation3 + $0x2b8] sm:$0xff]
          %v418 = vld [vmem:[#allocation3 + $0x2c0] sm:$0xff]
          %v419 = vld [vmem:[#allocation3 + $0x2c8] sm:$0xff]
          %v420 = vld [vmem:[#allocation3 + $0x2d0] sm:$0xff]
          %v421 = vld [vmem:[#allocation3 + $0x2d8] sm:$0xff]
          %v422 = vld [vmem:[#allocation3 + $0x2e0] sm:$0xff]
          %v423 = vld [vmem:[#allocation3 + $0x2e8] sm:$0xff]
          %v424 = vld [vmem:[#allocation3 + $0x2f0] sm:$0xff]
          %v425 = vld [vmem:[#allocation3 + $0x2f8] sm:$0xff]
          %v426 = vld [vmem:[#allocation3 + $0x300] sm:$0xff]
          %v427 = vld [vmem:[#allocation3 + $0x308] sm:$0xff]
          %v428 = vld [vmem:[#allocation3 + $0x310] sm:$0xff]
          %v429 = vld [vmem:[#allocation3 + $0x318] sm:$0xff]
          %v430 = vld [vmem:[#allocation3 + $0x320] sm:$0xff]
          %v431 = vld [vmem:[#allocation3 + $0x328] sm:$0xff]
          %v432 = vld [vmem:[#allocation3 + $0x330] sm:$0xff]
          %v433 = vld [vmem:[#allocation3 + $0x338] sm:$0xff]
          %v434 = vld [vmem:[#allocation3 + $0x340] sm:$0xff]
          %v435 = vld [vmem:[#allocation3 + $0x348] sm:$0xff]
          %v436 = vld [vmem:[#allocation3 + $0x350] sm:$0xff]
          %v437 = vld [vmem:[#allocation3 + $0x358] sm:$0xff]
          %v438 = vld [vmem:[#allocation3 + $0x360] sm:$0xff]
          %v439 = vld [vmem:[#allocation3 + $0x368] sm:$0xff]
          %v440 = vld [vmem:[#allocation3 + $0x370] sm:$0xff]
          %v441 = vld [vmem:[#allocation3 + $0x378] sm:$0xff]
          %v442 = vld [vmem:[#allocation3 + $0x380] sm:$0xff]
          %v443 = vld [vmem:[#allocation3 + $0x388] sm:$0xff]
          %v444 = vld [vmem:[#allocation3 + $0x390] sm:$0xff]
          %v445 = vld [vmem:[#allocation3 + $0x398] sm:$0xff]
          %v446 = vld [vmem:[#allocation3 + $0x3a0] sm:$0xff]
          %v447 = vld [vmem:[#allocation3 + $0x3a8] sm:$0xff]
          %v448 = vld [vmem:[#allocation3 + $0x3b0] sm:$0xff]
          %v449 = vld [vmem:[#allocation3 + $0x3b8] sm:$0xff]
          %v450 = vld [vmem:[#allocation3 + $0x3c0] sm:$0xff]
          %v451 = vld [vmem:[#allocation3 + $0x3c8] sm:$0xff]
          %v452 = vld [vmem:[#allocation3 + $0x3d0] sm:$0xff]
          %v453 = vld [vmem:[#allocation3 + $0x3d8] sm:$0xff]
          %v454 = vld [vmem:[#allocation3 + $0x3e0] sm:$0xff]
          %v455 = vld [vmem:[#allocation3 + $0x3e8] sm:$0xff]
          %v456 = vld [vmem:[#allocation3 + $0x3f0] sm:$0xff]
          %v457 = vld [vmem:[#allocation3 + $0x3f8] sm:$0xff]
          %v458 = vld [vmem:[#allocation3 + $0x400] sm:$0xff]
          %v459 = vld [vmem:[#allocation3 + $0x408] sm:$0xff]
          %v460 = vld [vmem:[#allocation3 + $0x410] sm:$0xff]
          %v461 = vld [vmem:[#allocation3 + $0x418] sm:$0xff]
          %v462 = vld [vmem:[#allocation3 + $0x420] sm:$0xff]
          %v463 = vld [vmem:[#allocation3 + $0x428] sm:$0xff]
          %v464 = vld [vmem:[#allocation3 + $0x430] sm:$0xff]
          %v465 = vld [vmem:[#allocation3 + $0x438] sm:$0xff]
          %v466 = vld [vmem:[#allocation3 + $0x440] sm:$0xff]
          %v467 = vld [vmem:[#allocation3 + $0x448] sm:$0xff]
          %v468 = vld [vmem:[#allocation3 + $0x450] sm:$0xff]
          %v469 = vld [vmem:[#allocation3 + $0x458] sm:$0xff]
          %v470 = vld [vmem:[#allocation3 + $0x460] sm:$0xff]
          %v471 = vld [vmem:[#allocation3 + $0x468] sm:$0xff]
          %v472 = vld [vmem:[#allocation3 + $0x470] sm:$0xff]
          %v473 = vld [vmem:[#allocation3 + $0x478] sm:$0xff]
          %v474 = vld [vmem:[#allocation3 + $0x480] sm:$0xff]
          %v475 = vld [vmem:[#allocation3 + $0x488] sm:$0xff]
          %v476 = vld [vmem:[#allocation3 + $0x490] sm:$0xff]
          %v477 = vld [vmem:[#allocation3 + $0x498] sm:$0xff]
          %v478 = vld [vmem:[#allocation3 + $0x4a0] sm:$0xff]
          %v479 = vld [vmem:[#allocation3 + $0x4a8] sm:$0xff]
          %v480 = vld [vmem:[#allocation3 + $0x4b0] sm:$0xff]
          %v481 = vld [vmem:[#allocation3 + $0x4b8] sm:$0xff]
          %v482 = vld [vmem:[#allocation3 + $0x4c0] sm:$0xff]
          %v483 = vld [vmem:[#allocation3 + $0x4c8] sm:$0xff]
          %v484 = vld [vmem:[#allocation3 + $0x4d0] sm:$0xff]
          %v485 = vld [vmem:[#allocation3 + $0x4d8] sm:$0xff]
          %v486 = vld [vmem:[#allocation3 + $0x4e0] sm:$0xff]
          %v487 = vld [vmem:[#allocation3 + $0x4e8] sm:$0xff]
          %v488 = vld [vmem:[#allocation3 + $0x4f0] sm:$0xff]
          %v489 = vld [vmem:[#allocation3 + $0x4f8] sm:$0xff]
          %v490 = vld [vmem:[#allocation3 + $0x500] sm:$0xff]
          %v491 = vld [vmem:[#allocation3 + $0x508] sm:$0xff]
          %v492 = vld [vmem:[#allocation3 + $0x510] sm:$0xff]
          %v493 = vld [vmem:[#allocation3 + $0x518] sm:$0xff]
          %v494 = vld [vmem:[#allocation3 + $0x520] sm:$0xff]
          %v495 = vld [vmem:[#allocation3 + $0x528] sm:$0xff]
          %v496 = vld [vmem:[#allocation3 + $0x530] sm:$0xff]
          %v497 = vld [vmem:[#allocation3 + $0x538] sm:$0xff]
          %v498 = vld [vmem:[#allocation3 + $0x540] sm:$0xff]
          %v499 = vld [vmem:[#allocation3 + $0x548] sm:$0xff]
          %v500 = vld [vmem:[#allocation3 + $0x550] sm:$0xff]
          %v501 = vld [vmem:[#allocation3 + $0x558] sm:$0xff]
          %v502 = vld [vmem:[#allocation3 + $0x560] sm:$0xff]
          %v503 = vld [vmem:[#allocation3 + $0x568] sm:$0xff]
          %v504 = vld [vmem:[#allocation3 + $0x570] sm:$0xff]
          %v505 = vld [vmem:[#allocation3 + $0x578] sm:$0xff]
          %v506 = vld [vmem:[#allocation3 + $0x580] sm:$0xff]
          %v507 = vld [vmem:[#allocation3 + $0x588] sm:$0xff]
          %v508 = vld [vmem:[#allocation3 + $0x590] sm:$0xff]
          %v509 = vld [vmem:[#allocation3 + $0x598] sm:$0xff]
          %v510 = vld [vmem:[#allocation3 + $0x5a0] sm:$0xff]
          %v511 = vld [vmem:[#allocation3 + $0x5a8] sm:$0xff]
          %v512 = vld [vmem:[#allocation3 + $0x5b0] sm:$0xff]
          %v513 = vld [vmem:[#allocation3 + $0x5b8] sm:$0xff]
          %v514 = vld [vmem:[#allocation3 + $0x5c0] sm:$0xff]
          %v515 = vld [vmem:[#allocation3 + $0x5c8] sm:$0xff]
          %v516 = vld [vmem:[#allocation3 + $0x5d0] sm:$0xff]
          %v517 = vld [vmem:[#allocation3 + $0x5d8] sm:$0xff]
          %v518 = vld [vmem:[#allocation3 + $0x5e0] sm:$0xff]
          %v519 = vld [vmem:[#allocation3 + $0x5e8] sm:$0xff]
          %v520 = vld [vmem:[#allocation3 + $0x5f0] sm:$0xff]
          %v521 = vld [vmem:[#allocation3 + $0x5f8] sm:$0xff]
          %v522 = vld [vmem:[#allocation3 + $0x600] sm:$0xff]
          %v523 = vld [vmem:[#allocation3 + $0x608] sm:$0xff]
          %v524 = vld [vmem:[#allocation3 + $0x610] sm:$0xff]
          %v525 = vld [vmem:[#allocation3 + $0x618] sm:$0xff]
          %v526 = vld [vmem:[#allocation3 + $0x620] sm:$0xff]
          %v527 = vld [vmem:[#allocation3 + $0x628] sm:$0xff]
          %v528 = vld [vmem:[#allocation3 + $0x630] sm:$0xff]
          %v529 = vld [vmem:[#allocation3 + $0x638] sm:$0xff]
          %v530 = vld [vmem:[#allocation3 + $0x640] sm:$0xff]
          %v531 = vld [vmem:[#allocation3 + $0x648] sm:$0xff]
          %v532 = vld [vmem:[#allocation3 + $0x650] sm:$0xff]
          %v533 = vld [vmem:[#allocation3 + $0x658] sm:$0xff]
          %v534 = vld [vmem:[#allocation3 + $0x660] sm:$0xff]
          %v535 = vld [vmem:[#allocation3 + $0x668] sm:$0xff]
          %v536 = vld [vmem:[#allocation3 + $0x670] sm:$0xff]
          %v537 = vld [vmem:[#allocation3 + $0x678] sm:$0xff]
          %v538 = vld [vmem:[#allocation3 + $0x680] sm:$0xff]
          %v539 = vld [vmem:[#allocation3 + $0x688] sm:$0xff]
          %v540 = vld [vmem:[#allocation3 + $0x690] sm:$0xff]
          %v541 = vld [vmem:[#allocation3 + $0x698] sm:$0xff]
          %v542 = vld [vmem:[#allocation3 + $0x6a0] sm:$0xff]
          %v543 = vld [vmem:[#allocation3 + $0x6a8] sm:$0xff]
          %v544 = vld [vmem:[#allocation3 + $0x6b0] sm:$0xff]
          %v545 = vld [vmem:[#allocation3 + $0x6b8] sm:$0xff]
          %v546 = vld [vmem:[#allocation3 + $0x6c0] sm:$0xff]
          %v547 = vld [vmem:[#allocation3 + $0x6c8] sm:$0xff]
          %v548 = vld [vmem:[#allocation3 + $0x6d0] sm:$0xff]
          %v549 = vld [vmem:[#allocation3 + $0x6d8] sm:$0xff]
          %v550 = vld [vmem:[#allocation3 + $0x6e0] sm:$0xff]
          %v551 = vld [vmem:[#allocation3 + $0x6e8] sm:$0xff]
          %v552 = vld [vmem:[#allocation3 + $0x6f0] sm:$0xff]
          %v553 = vld [vmem:[#allocation3 + $0x6f8] sm:$0xff]
          %v554 = vld [vmem:[#allocation3 + $0x700] sm:$0xff]
          %v555 = vld [vmem:[#allocation3 + $0x708] sm:$0xff]
          %v556 = vld [vmem:[#allocation3 + $0x710] sm:$0xff]
          %v557 = vld [vmem:[#allocation3 + $0x718] sm:$0xff]
          %v558 = vld [vmem:[#allocation3 + $0x720] sm:$0xff]
          %v559 = vld [vmem:[#allocation3 + $0x728] sm:$0xff]
          %v560 = vld [vmem:[#allocation3 + $0x730] sm:$0xff]
          %v561 = vld [vmem:[#allocation3 + $0x738] sm:$0xff]
          %v562 = vld [vmem:[#allocation3 + $0x740] sm:$0xff]
          %v563 = vld [vmem:[#allocation3 + $0x748] sm:$0xff]
          %v564 = vld [vmem:[#allocation3 + $0x750] sm:$0xff]
          %v565 = vld [vmem:[#allocation3 + $0x758] sm:$0xff]
          %v566 = vld [vmem:[#allocation3 + $0x760] sm:$0xff]
          %v567 = vld [vmem:[#allocation3 + $0x768] sm:$0xff]
          %v568 = vld [vmem:[#allocation3 + $0x770] sm:$0xff]
          %v569 = vld [vmem:[#allocation3 + $0x778] sm:$0xff]
          %v570 = vld [vmem:[#allocation3 + $0x780] sm:$0xff]
          %v571 = vld [vmem:[#allocation3 + $0x788] sm:$0xff]
          %v572 = vld [vmem:[#allocation3 + $0x790] sm:$0xff]
          %v573 = vld [vmem:[#allocation3 + $0x798] sm:$0xff]
          %v574 = vld [vmem:[#allocation3 + $0x7a0] sm:$0xff]
          %v575 = vld [vmem:[#allocation3 + $0x7a8] sm:$0xff]
          %v576 = vld [vmem:[#allocation3 + $0x7b0] sm:$0xff]
          %v577 = vld [vmem:[#allocation3 + $0x7b8] sm:$0xff]
          %v578 = vld [vmem:[#allocation3 + $0x7c0] sm:$0xff]
          %v579 = vld [vmem:[#allocation3 + $0x7c8] sm:$0xff]
          %v580 = vld [vmem:[#allocation3 + $0x7d0] sm:$0xff]
          %v581 = vld [vmem:[#allocation3 + $0x7d8] sm:$0xff]
          %v582 = vld [vmem:[#allocation3 + $0x7e0] sm:$0xff]
          %v583 = vld [vmem:[#allocation3 + $0x7e8] sm:$0xff]
          %v584 = vld [vmem:[#allocation3 + $0x7f0] sm:$0xff]
          %v585 = vld [vmem:[#allocation3 + $0x7f8] sm:$0xff]
          %v586 = vld [vmem:[#allocation5] sm:$0xff]
          %v588 = vperm.slane %v586, 0
          %v589 = vperm.slane %v586, 1
          %v590 = vperm.slane %v586, 2
          %v591 = vperm.slane %v586, 3
          %v592 = vperm.slane %v586, 4
          %v593 = vperm.slane %v586, 5
          %v594 = vperm.slane %v586, 6
          %v595 = vperm.slane %v586, 7
          %v606 = vunpack.c.l.b16 %v328
          %v607 = vunpack.c.h.b16 %v328
          %v608 = vunpack.c.l.b16 %v329
          %v609 = vunpack.c.h.b16 %v329
          %v610 = vpack.c.b16 %v606, %v606
          %v611 = vpack.c.b16 %v607, %v607
          %v612 = vpack.c.b16 %v608, %v608
          %v613 = vpack.c.b16 %v609, %v609
          %v874 = vunpack.c.l.b16 %v330
          %v875 = vunpack.c.h.b16 %v330
          %v876 = vunpack.c.l.b16 %v331
          %v877 = vunpack.c.h.b16 %v331
          %v878 = vunpack.c.l.b16 %v332
          %v879 = vunpack.c.h.b16 %v332
          %v880 = vunpack.c.l.b16 %v333
          %v881 = vunpack.c.h.b16 %v333
          %v882 = vunpack.c.l.b16 %v334
          %v883 = vunpack.c.h.b16 %v334
          %v884 = vunpack.c.l.b16 %v335
          %v885 = vunpack.c.h.b16 %v335
          %v886 = vunpack.c.l.b16 %v336
          %v887 = vunpack.c.h.b16 %v336
          %v888 = vunpack.c.l.b16 %v337
          %v889 = vunpack.c.h.b16 %v337
          %v890 = vunpack.c.l.b16 %v338
          %v891 = vunpack.c.h.b16 %v338
          %v892 = vunpack.c.l.b16 %v339
          %v893 = vunpack.c.h.b16 %v339
          %v894 = vunpack.c.l.b16 %v340
          %v895 = vunpack.c.h.b16 %v340
          %v896 = vunpack.c.l.b16 %v341
          %v897 = vunpack.c.h.b16 %v341
          %v898 = vunpack.c.l.b16 %v342
          %v899 = vunpack.c.h.b16 %v342
          %v900 = vunpack.c.l.b16 %v343
          %v901 = vunpack.c.h.b16 %v343
          %v902 = vunpack.c.l.b16 %v344
          %v903 = vunpack.c.h.b16 %v344
          %v904 = vunpack.c.l.b16 %v345
          %v905 = vunpack.c.h.b16 %v345
          %v906 = vunpack.c.l.b16 %v346
          %v907 = vunpack.c.h.b16 %v346
          %v908 = vunpack.c.l.b16 %v347
          %v909 = vunpack.c.h.b16 %v347
          %v910 = vunpack.c.l.b16 %v348
          %v911 = vunpack.c.h.b16 %v348
          %v912 = vunpack.c.l.b16 %v349
          %v913 = vunpack.c.h.b16 %v349
          %v914 = vunpack.c.l.b16 %v350
          %v915 = vunpack.c.h.b16 %v350
          %v916 = vunpack.c.l.b16 %v351
          %v917 = vunpack.c.h.b16 %v351
          %v918 = vunpack.c.l.b16 %v352
          %v919 = vunpack.c.h.b16 %v352
          %v920 = vunpack.c.l.b16 %v353
          %v921 = vunpack.c.h.b16 %v353
          %v922 = vunpack.c.l.b16 %v354
          %v923 = vunpack.c.h.b16 %v354
          %v924 = vunpack.c.l.b16 %v355
          %v925 = vunpack.c.h.b16 %v355
          %v926 = vunpack.c.l.b16 %v356
          %v927 = vunpack.c.h.b16 %v356
          %v928 = vunpack.c.l.b16 %v357
          %v929 = vunpack.c.h.b16 %v357
          %v930 = vunpack.c.l.b16 %v358
          %v931 = vunpack.c.h.b16 %v358
          %v932 = vunpack.c.l.b16 %v359
          %v933 = vunpack.c.h.b16 %v359
          %v934 = vunpack.c.l.b16 %v360
          %v935 = vunpack.c.h.b16 %v360
          %v936 = vunpack.c.l.b16 %v361
          %v937 = vunpack.c.h.b16 %v361
          %v938 = vunpack.c.l.b16 %v362
          %v939 = vunpack.c.h.b16 %v362
          %v940 = vunpack.c.l.b16 %v363
          %v941 = vunpack.c.h.b16 %v363
          %v942 = vunpack.c.l.b16 %v364
          %v943 = vunpack.c.h.b16 %v364
          %v944 = vunpack.c.l.b16 %v365
          %v945 = vunpack.c.h.b16 %v365
          %v946 = vunpack.c.l.b16 %v366
          %v947 = vunpack.c.h.b16 %v366
          %v948 = vunpack.c.l.b16 %v367
          %v949 = vunpack.c.h.b16 %v367
          %v950 = vunpack.c.l.b16 %v368
          %v951 = vunpack.c.h.b16 %v368
          %v952 = vunpack.c.l.b16 %v369
          %v953 = vunpack.c.h.b16 %v369
          %v954 = vunpack.c.l.b16 %v370
          %v955 = vunpack.c.h.b16 %v370
          %v956 = vunpack.c.l.b16 %v371
          %v957 = vunpack.c.h.b16 %v371
          %v958 = vunpack.c.l.b16 %v372
          %v959 = vunpack.c.h.b16 %v372
          %v960 = vunpack.c.l.b16 %v373
          %v961 = vunpack.c.h.b16 %v373
          %v962 = vunpack.c.l.b16 %v374
          %v963 = vunpack.c.h.b16 %v374
          %v964 = vunpack.c.l.b16 %v375
          %v965 = vunpack.c.h.b16 %v375
          %v966 = vunpack.c.l.b16 %v376
          %v967 = vunpack.c.h.b16 %v376
          %v968 = vunpack.c.l.b16 %v377
          %v969 = vunpack.c.h.b16 %v377
          %v970 = vunpack.c.l.b16 %v378
          %v971 = vunpack.c.h.b16 %v378
          %v972 = vunpack.c.l.b16 %v379
          %v973 = vunpack.c.h.b16 %v379
          %v974 = vunpack.c.l.b16 %v380
          %v975 = vunpack.c.h.b16 %v380
          %v976 = vunpack.c.l.b16 %v381
          %v977 = vunpack.c.h.b16 %v381
          %v978 = vunpack.c.l.b16 %v382
          %v979 = vunpack.c.h.b16 %v382
          %v980 = vunpack.c.l.b16 %v383
          %v981 = vunpack.c.h.b16 %v383
          %v982 = vunpack.c.l.b16 %v384
          %v983 = vunpack.c.h.b16 %v384
          %v984 = vunpack.c.l.b16 %v385
          %v985 = vunpack.c.h.b16 %v385
          %v986 = vunpack.c.l.b16 %v386
          %v987 = vunpack.c.h.b16 %v386
          %v988 = vunpack.c.l.b16 %v387
          %v989 = vunpack.c.h.b16 %v387
          %v990 = vunpack.c.l.b16 %v388
          %v991 = vunpack.c.h.b16 %v388
          %v992 = vunpack.c.l.b16 %v389
          %v993 = vunpack.c.h.b16 %v389
          %v994 = vunpack.c.l.b16 %v390
          %v995 = vunpack.c.h.b16 %v390
          %v996 = vunpack.c.l.b16 %v391
          %v997 = vunpack.c.h.b16 %v391
          %v998 = vunpack.c.l.b16 %v392
          %v999 = vunpack.c.h.b16 %v392
          %v1000 = vunpack.c.l.b16 %v393
          %v1001 = vunpack.c.h.b16 %v393
          %v1002 = vunpack.c.l.b16 %v394
          %v1003 = vunpack.c.h.b16 %v394
          %v1004 = vunpack.c.l.b16 %v395
          %v1005 = vunpack.c.h.b16 %v395
          %v1006 = vunpack.c.l.b16 %v396
          %v1007 = vunpack.c.h.b16 %v396
          %v1008 = vunpack.c.l.b16 %v397
          %v1009 = vunpack.c.h.b16 %v397
          %v1010 = vunpack.c.l.b16 %v398
          %v1011 = vunpack.c.h.b16 %v398
          %v1012 = vunpack.c.l.b16 %v399
          %v1013 = vunpack.c.h.b16 %v399
          %v1014 = vunpack.c.l.b16 %v400
          %v1015 = vunpack.c.h.b16 %v400
          %v1016 = vunpack.c.l.b16 %v401
          %v1017 = vunpack.c.h.b16 %v401
          %v1018 = vunpack.c.l.b16 %v402
          %v1019 = vunpack.c.h.b16 %v402
          %v1020 = vunpack.c.l.b16 %v403
          %v1021 = vunpack.c.h.b16 %v403
          %v1022 = vunpack.c.l.b16 %v404
          %v1023 = vunpack.c.h.b16 %v404
          %v1024 = vunpack.c.l.b16 %v405
          %v1025 = vunpack.c.h.b16 %v405
          %v1026 = vunpack.c.l.b16 %v406
          %v1027 = vunpack.c.h.b16 %v406
          %v1028 = vunpack.c.l.b16 %v407
          %v1029 = vunpack.c.h.b16 %v407
          %v1030 = vunpack.c.l.b16 %v408
          %v1031 = vunpack.c.h.b16 %v408
          %v1032 = vunpack.c.l.b16 %v409
          %v1033 = vunpack.c.h.b16 %v409
          %v1034 = vunpack.c.l.b16 %v410
          %v1035 = vunpack.c.h.b16 %v410
          %v1036 = vunpack.c.l.b16 %v411
          %v1037 = vunpack.c.h.b16 %v411
          %v1038 = vunpack.c.l.b16 %v412
          %v1039 = vunpack.c.h.b16 %v412
          %v1040 = vunpack.c.l.b16 %v413
          %v1041 = vunpack.c.h.b16 %v413
          %v1042 = vunpack.c.l.b16 %v414
          %v1043 = vunpack.c.h.b16 %v414
          %v1044 = vunpack.c.l.b16 %v415
          %v1045 = vunpack.c.h.b16 %v415
          %v1046 = vunpack.c.l.b16 %v416
          %v1047 = vunpack.c.h.b16 %v416
          %v1048 = vunpack.c.l.b16 %v417
          %v1049 = vunpack.c.h.b16 %v417
          %v1050 = vunpack.c.l.b16 %v418
          %v1051 = vunpack.c.h.b16 %v418
          %v1052 = vunpack.c.l.b16 %v419
          %v1053 = vunpack.c.h.b16 %v419
          %v1054 = vunpack.c.l.b16 %v420
          %v1055 = vunpack.c.h.b16 %v420
          %v1056 = vunpack.c.l.b16 %v421
          %v1057 = vunpack.c.h.b16 %v421
          %v1058 = vunpack.c.l.b16 %v422
          %v1059 = vunpack.c.h.b16 %v422
          %v1060 = vunpack.c.l.b16 %v423
          %v1061 = vunpack.c.h.b16 %v423
          %v1062 = vunpack.c.l.b16 %v424
          %v1063 = vunpack.c.h.b16 %v424
          %v1064 = vunpack.c.l.b16 %v425
          %v1065 = vunpack.c.h.b16 %v425
          %v1066 = vunpack.c.l.b16 %v426
          %v1067 = vunpack.c.h.b16 %v426
          %v1068 = vunpack.c.l.b16 %v427
          %v1069 = vunpack.c.h.b16 %v427
          %v1070 = vunpack.c.l.b16 %v428
          %v1071 = vunpack.c.h.b16 %v428
          %v1072 = vunpack.c.l.b16 %v429
          %v1073 = vunpack.c.h.b16 %v429
          %v1074 = vunpack.c.l.b16 %v430
          %v1075 = vunpack.c.h.b16 %v430
          %v1076 = vunpack.c.l.b16 %v431
          %v1077 = vunpack.c.h.b16 %v431
          %v1078 = vunpack.c.l.b16 %v432
          %v1079 = vunpack.c.h.b16 %v432
          %v1080 = vunpack.c.l.b16 %v433
          %v1081 = vunpack.c.h.b16 %v433
          %v1082 = vunpack.c.l.b16 %v434
          %v1083 = vunpack.c.h.b16 %v434
          %v1084 = vunpack.c.l.b16 %v435
          %v1085 = vunpack.c.h.b16 %v435
          %v1086 = vunpack.c.l.b16 %v436
          %v1087 = vunpack.c.h.b16 %v436
          %v1088 = vunpack.c.l.b16 %v437
          %v1089 = vunpack.c.h.b16 %v437
          %v1090 = vunpack.c.l.b16 %v438
          %v1091 = vunpack.c.h.b16 %v438
          %v1092 = vunpack.c.l.b16 %v439
          %v1093 = vunpack.c.h.b16 %v439
          %v1094 = vunpack.c.l.b16 %v440
          %v1095 = vunpack.c.h.b16 %v440
          %v1096 = vunpack.c.l.b16 %v441
          %v1097 = vunpack.c.h.b16 %v441
          %v1098 = vunpack.c.l.b16 %v442
          %v1099 = vunpack.c.h.b16 %v442
          %v1100 = vunpack.c.l.b16 %v443
          %v1101 = vunpack.c.h.b16 %v443
          %v1102 = vunpack.c.l.b16 %v444
          %v1103 = vunpack.c.h.b16 %v444
          %v1104 = vunpack.c.l.b16 %v445
          %v1105 = vunpack.c.h.b16 %v445
          %v1106 = vunpack.c.l.b16 %v446
          %v1107 = vunpack.c.h.b16 %v446
          %v1108 = vunpack.c.l.b16 %v447
          %v1109 = vunpack.c.h.b16 %v447
          %v1110 = vunpack.c.l.b16 %v448
          %v1111 = vunpack.c.h.b16 %v448
          %v1112 = vunpack.c.l.b16 %v449
          %v1113 = vunpack.c.h.b16 %v449
          %v1114 = vunpack.c.l.b16 %v450
          %v1115 = vunpack.c.h.b16 %v450
          %v1116 = vunpack.c.l.b16 %v451
          %v1117 = vunpack.c.h.b16 %v451
          %v1118 = vunpack.c.l.b16 %v452
          %v1119 = vunpack.c.h.b16 %v452
          %v1120 = vunpack.c.l.b16 %v453
          %v1121 = vunpack.c.h.b16 %v453
          %v1122 = vunpack.c.l.b16 %v454
          %v1123 = vunpack.c.h.b16 %v454
          %v1124 = vunpack.c.l.b16 %v455
          %v1125 = vunpack.c.h.b16 %v455
          %v1126 = vunpack.c.l.b16 %v456
          %v1127 = vunpack.c.h.b16 %v456
          %v1128 = vunpack.c.l.b16 %v457
          %v1129 = vunpack.c.h.b16 %v457
          %v1130 = vunpack.c.l.b16 %v458
          %v1131 = vunpack.c.h.b16 %v458
          %v1132 = vunpack.c.l.b16 %v459
          %v1133 = vunpack.c.h.b16 %v459
          %v1134 = vunpack.c.l.b16 %v460
          %v1135 = vunpack.c.h.b16 %v460
          %v1136 = vunpack.c.l.b16 %v461
          %v1137 = vunpack.c.h.b16 %v461
          %v1138 = vunpack.c.l.b16 %v462
          %v1139 = vunpack.c.h.b16 %v462
          %v1140 = vunpack.c.l.b16 %v463
          %v1141 = vunpack.c.h.b16 %v463
          %v1142 = vunpack.c.l.b16 %v464
          %v1143 = vunpack.c.h.b16 %v464
          %v1144 = vunpack.c.l.b16 %v465
          %v1145 = vunpack.c.h.b16 %v465
          %v1146 = vunpack.c.l.b16 %v466
          %v1147 = vunpack.c.h.b16 %v466
          %v1148 = vunpack.c.l.b16 %v467
          %v1149 = vunpack.c.h.b16 %v467
          %v1150 = vunpack.c.l.b16 %v468
          %v1151 = vunpack.c.h.b16 %v468
          %v1152 = vunpack.c.l.b16 %v469
          %v1153 = vunpack.c.h.b16 %v469
          %v1154 = vunpack.c.l.b16 %v470
          %v1155 = vunpack.c.h.b16 %v470
          %v1156 = vunpack.c.l.b16 %v471
          %v1157 = vunpack.c.h.b16 %v471
          %v1158 = vunpack.c.l.b16 %v472
          %v1159 = vunpack.c.h.b16 %v472
          %v1160 = vunpack.c.l.b16 %v473
          %v1161 = vunpack.c.h.b16 %v473
          %v1162 = vunpack.c.l.b16 %v474
          %v1163 = vunpack.c.h.b16 %v474
          %v1164 = vunpack.c.l.b16 %v475
          %v1165 = vunpack.c.h.b16 %v475
          %v1166 = vunpack.c.l.b16 %v476
          %v1167 = vunpack.c.h.b16 %v476
          %v1168 = vunpack.c.l.b16 %v477
          %v1169 = vunpack.c.h.b16 %v477
          %v1170 = vunpack.c.l.b16 %v478
          %v1171 = vunpack.c.h.b16 %v478
          %v1172 = vunpack.c.l.b16 %v479
          %v1173 = vunpack.c.h.b16 %v479
          %v1174 = vunpack.c.l.b16 %v480
          %v1175 = vunpack.c.h.b16 %v480
          %v1176 = vunpack.c.l.b16 %v481
          %v1177 = vunpack.c.h.b16 %v481
          %v1178 = vunpack.c.l.b16 %v482
          %v1179 = vunpack.c.h.b16 %v482
          %v1180 = vunpack.c.l.b16 %v483
          %v1181 = vunpack.c.h.b16 %v483
          %v1182 = vunpack.c.l.b16 %v484
          %v1183 = vunpack.c.h.b16 %v484
          %v1184 = vunpack.c.l.b16 %v485
          %v1185 = vunpack.c.h.b16 %v485
          %v1186 = vunpack.c.l.b16 %v486
          %v1187 = vunpack.c.h.b16 %v486
          %v1188 = vunpack.c.l.b16 %v487
          %v1189 = vunpack.c.h.b16 %v487
          %v1190 = vunpack.c.l.b16 %v488
          %v1191 = vunpack.c.h.b16 %v488
          %v1192 = vunpack.c.l.b16 %v489
          %v1193 = vunpack.c.h.b16 %v489
          %v1194 = vunpack.c.l.b16 %v490
          %v1195 = vunpack.c.h.b16 %v490
          %v1196 = vunpack.c.l.b16 %v491
          %v1197 = vunpack.c.h.b16 %v491
          %v1198 = vunpack.c.l.b16 %v492
          %v1199 = vunpack.c.h.b16 %v492
          %v1200 = vunpack.c.l.b16 %v493
          %v1201 = vunpack.c.h.b16 %v493
          %v1202 = vunpack.c.l.b16 %v494
          %v1203 = vunpack.c.h.b16 %v494
          %v1204 = vunpack.c.l.b16 %v495
          %v1205 = vunpack.c.h.b16 %v495
          %v1206 = vunpack.c.l.b16 %v496
          %v1207 = vunpack.c.h.b16 %v496
          %v1208 = vunpack.c.l.b16 %v497
          %v1209 = vunpack.c.h.b16 %v497
          %v1210 = vunpack.c.l.b16 %v498
          %v1211 = vunpack.c.h.b16 %v498
          %v1212 = vunpack.c.l.b16 %v499
          %v1213 = vunpack.c.h.b16 %v499
          %v1214 = vunpack.c.l.b16 %v500
          %v1215 = vunpack.c.h.b16 %v500
          %v1216 = vunpack.c.l.b16 %v501
          %v1217 = vunpack.c.h.b16 %v501
          %v1218 = vunpack.c.l.b16 %v502
          %v1219 = vunpack.c.h.b16 %v502
          %v1220 = vunpack.c.l.b16 %v503
          %v1221 = vunpack.c.h.b16 %v503
          %v1222 = vunpack.c.l.b16 %v504
          %v1223 = vunpack.c.h.b16 %v504
          %v1224 = vunpack.c.l.b16 %v505
          %v1225 = vunpack.c.h.b16 %v505
          %v1226 = vunpack.c.l.b16 %v506
          %v1227 = vunpack.c.h.b16 %v506
          %v1228 = vunpack.c.l.b16 %v507
          %v1229 = vunpack.c.h.b16 %v507
          %v1230 = vunpack.c.l.b16 %v508
          %v1231 = vunpack.c.h.b16 %v508
          %v1232 = vunpack.c.l.b16 %v509
          %v1233 = vunpack.c.h.b16 %v509
          %v1234 = vunpack.c.l.b16 %v510
          %v1235 = vunpack.c.h.b16 %v510
          %v1236 = vunpack.c.l.b16 %v511
          %v1237 = vunpack.c.h.b16 %v511
          %v1238 = vunpack.c.l.b16 %v512
          %v1239 = vunpack.c.h.b16 %v512
          %v1240 = vunpack.c.l.b16 %v513
          %v1241 = vunpack.c.h.b16 %v513
          %v1242 = vunpack.c.l.b16 %v514
          %v1243 = vunpack.c.h.b16 %v514
          %v1244 = vunpack.c.l.b16 %v515
          %v1245 = vunpack.c.h.b16 %v515
          %v1246 = vunpack.c.l.b16 %v516
          %v1247 = vunpack.c.h.b16 %v516
          %v1248 = vunpack.c.l.b16 %v517
          %v1249 = vunpack.c.h.b16 %v517
          %v1250 = vunpack.c.l.b16 %v518
          %v1251 = vunpack.c.h.b16 %v518
          %v1252 = vunpack.c.l.b16 %v519
          %v1253 = vunpack.c.h.b16 %v519
          %v1254 = vunpack.c.l.b16 %v520
          %v1255 = vunpack.c.h.b16 %v520
          %v1256 = vunpack.c.l.b16 %v521
          %v1257 = vunpack.c.h.b16 %v521
          %v1258 = vunpack.c.l.b16 %v522
          %v1259 = vunpack.c.h.b16 %v522
          %v1260 = vunpack.c.l.b16 %v523
          %v1261 = vunpack.c.h.b16 %v523
          %v1262 = vunpack.c.l.b16 %v524
          %v1263 = vunpack.c.h.b16 %v524
          %v1264 = vunpack.c.l.b16 %v525
          %v1265 = vunpack.c.h.b16 %v525
          %v1266 = vunpack.c.l.b16 %v526
          %v1267 = vunpack.c.h.b16 %v526
          %v1268 = vunpack.c.l.b16 %v527
          %v1269 = vunpack.c.h.b16 %v527
          %v1270 = vunpack.c.l.b16 %v528
          %v1271 = vunpack.c.h.b16 %v528
          %v1272 = vunpack.c.l.b16 %v529
          %v1273 = vunpack.c.h.b16 %v529
          %v1274 = vunpack.c.l.b16 %v530
          %v1275 = vunpack.c.h.b16 %v530
          %v1276 = vunpack.c.l.b16 %v531
          %v1277 = vunpack.c.h.b16 %v531
          %v1278 = vunpack.c.l.b16 %v532
          %v1279 = vunpack.c.h.b16 %v532
          %v1280 = vunpack.c.l.b16 %v533
          %v1281 = vunpack.c.h.b16 %v533
          %v1282 = vunpack.c.l.b16 %v534
          %v1283 = vunpack.c.h.b16 %v534
          %v1284 = vunpack.c.l.b16 %v535
          %v1285 = vunpack.c.h.b16 %v535
          %v1286 = vunpack.c.l.b16 %v536
          %v1287 = vunpack.c.h.b16 %v536
          %v1288 = vunpack.c.l.b16 %v537
          %v1289 = vunpack.c.h.b16 %v537
          %v1290 = vunpack.c.l.b16 %v538
          %v1291 = vunpack.c.h.b16 %v538
          %v1292 = vunpack.c.l.b16 %v539
          %v1293 = vunpack.c.h.b16 %v539
          %v1294 = vunpack.c.l.b16 %v540
          %v1295 = vunpack.c.h.b16 %v540
          %v1296 = vunpack.c.l.b16 %v541
          %v1297 = vunpack.c.h.b16 %v541
          %v1298 = vunpack.c.l.b16 %v542
          %v1299 = vunpack.c.h.b16 %v542
          %v1300 = vunpack.c.l.b16 %v543
          %v1301 = vunpack.c.h.b16 %v543
          %v1302 = vunpack.c.l.b16 %v544
          %v1303 = vunpack.c.h.b16 %v544
          %v1304 = vunpack.c.l.b16 %v545
          %v1305 = vunpack.c.h.b16 %v545
          %v1306 = vunpack.c.l.b16 %v546
          %v1307 = vunpack.c.h.b16 %v546
          %v1308 = vunpack.c.l.b16 %v547
          %v1309 = vunpack.c.h.b16 %v547
          %v1310 = vunpack.c.l.b16 %v548
          %v1311 = vunpack.c.h.b16 %v548
          %v1312 = vunpack.c.l.b16 %v549
          %v1313 = vunpack.c.h.b16 %v549
          %v1314 = vunpack.c.l.b16 %v550
          %v1315 = vunpack.c.h.b16 %v550
          %v1316 = vunpack.c.l.b16 %v551
          %v1317 = vunpack.c.h.b16 %v551
          %v1318 = vunpack.c.l.b16 %v552
          %v1319 = vunpack.c.h.b16 %v552
          %v1320 = vunpack.c.l.b16 %v553
          %v1321 = vunpack.c.h.b16 %v553
          %v1322 = vunpack.c.l.b16 %v554
          %v1323 = vunpack.c.h.b16 %v554
          %v1324 = vunpack.c.l.b16 %v555
          %v1325 = vunpack.c.h.b16 %v555
          %v1326 = vunpack.c.l.b16 %v556
          %v1327 = vunpack.c.h.b16 %v556
          %v1328 = vunpack.c.l.b16 %v557
          %v1329 = vunpack.c.h.b16 %v557
          %v1330 = vunpack.c.l.b16 %v558
          %v1331 = vunpack.c.h.b16 %v558
          %v1332 = vunpack.c.l.b16 %v559
          %v1333 = vunpack.c.h.b16 %v559
          %v1334 = vunpack.c.l.b16 %v560
          %v1335 = vunpack.c.h.b16 %v560
          %v1336 = vunpack.c.l.b16 %v561
          %v1337 = vunpack.c.h.b16 %v561
          %v1338 = vunpack.c.l.b16 %v562
          %v1339 = vunpack.c.h.b16 %v562
          %v1340 = vunpack.c.l.b16 %v563
          %v1341 = vunpack.c.h.b16 %v563
          %v1342 = vunpack.c.l.b16 %v564
          %v1343 = vunpack.c.h.b16 %v564
          %v1344 = vunpack.c.l.b16 %v565
          %v1345 = vunpack.c.h.b16 %v565
          %v1346 = vunpack.c.l.b16 %v566
          %v1347 = vunpack.c.h.b16 %v566
          %v1348 = vunpack.c.l.b16 %v567
          %v1349 = vunpack.c.h.b16 %v567
          %v1350 = vunpack.c.l.b16 %v568
          %v1351 = vunpack.c.h.b16 %v568
          %v1352 = vunpack.c.l.b16 %v569
          %v1353 = vunpack.c.h.b16 %v569
          %v1354 = vunpack.c.l.b16 %v570
          %v1355 = vunpack.c.h.b16 %v570
          %v1356 = vunpack.c.l.b16 %v571
          %v1357 = vunpack.c.h.b16 %v571
          %v1358 = vunpack.c.l.b16 %v572
          %v1359 = vunpack.c.h.b16 %v572
          %v1360 = vunpack.c.l.b16 %v573
          %v1361 = vunpack.c.h.b16 %v573
          %v1362 = vunpack.c.l.b16 %v574
          %v1363 = vunpack.c.h.b16 %v574
          %v1364 = vunpack.c.l.b16 %v575
          %v1365 = vunpack.c.h.b16 %v575
          %v1366 = vunpack.c.l.b16 %v576
          %v1367 = vunpack.c.h.b16 %v576
          %v1368 = vunpack.c.l.b16 %v577
          %v1369 = vunpack.c.h.b16 %v577
          %v1370 = vunpack.c.l.b16 %v578
          %v1371 = vunpack.c.h.b16 %v578
          %v1372 = vunpack.c.l.b16 %v579
          %v1373 = vunpack.c.h.b16 %v579
          %v1374 = vunpack.c.l.b16 %v580
          %v1375 = vunpack.c.h.b16 %v580
          %v1376 = vunpack.c.l.b16 %v581
          %v1377 = vunpack.c.h.b16 %v581
          %v1378 = vunpack.c.l.b16 %v582
          %v1379 = vunpack.c.h.b16 %v582
          %v1380 = vunpack.c.l.b16 %v583
          %v1381 = vunpack.c.h.b16 %v583
          %v1382 = vunpack.c.l.b16 %v584
          %v1383 = vunpack.c.h.b16 %v584
          %v1384 = vunpack.c.l.b16 %v585
          %v1385 = vunpack.c.h.b16 %v585
          %v1386 = vpack.c.b16 %v882, %v874
          %v1387 = vpack.c.b16 %v883, %v875
          %v1388 = vpack.c.b16 %v884, %v876
          %v1389 = vpack.c.b16 %v885, %v877
          %v1390 = vpack.c.b16 %v886, %v878
          %v1391 = vpack.c.b16 %v887, %v879
          %v1392 = vpack.c.b16 %v888, %v880
          %v1393 = vpack.c.b16 %v889, %v881
          %v1394 = vpack.c.b16 %v898, %v890
          %v1395 = vpack.c.b16 %v899, %v891
          %v1396 = vpack.c.b16 %v900, %v892
          %v1397 = vpack.c.b16 %v901, %v893
          %v1398 = vpack.c.b16 %v902, %v894
          %v1399 = vpack.c.b16 %v903, %v895
          %v1400 = vpack.c.b16 %v904, %v896
          %v1401 = vpack.c.b16 %v905, %v897
          %v1402 = vpack.c.b16 %v914, %v906
          %v1403 = vpack.c.b16 %v915, %v907
          %v1404 = vpack.c.b16 %v916, %v908
          %v1405 = vpack.c.b16 %v917, %v909
          %v1406 = vpack.c.b16 %v918, %v910
          %v1407 = vpack.c.b16 %v919, %v911
          %v1408 = vpack.c.b16 %v920, %v912
          %v1409 = vpack.c.b16 %v921, %v913
          %v1410 = vpack.c.b16 %v930, %v922
          %v1411 = vpack.c.b16 %v931, %v923
          %v1412 = vpack.c.b16 %v932, %v924
          %v1413 = vpack.c.b16 %v933, %v925
          %v1414 = vpack.c.b16 %v934, %v926
          %v1415 = vpack.c.b16 %v935, %v927
          %v1416 = vpack.c.b16 %v936, %v928
          %v1417 = vpack.c.b16 %v937, %v929
          %v1418 = vpack.c.b16 %v946, %v938
          %v1419 = vpack.c.b16 %v947, %v939
          %v1420 = vpack.c.b16 %v948, %v940
          %v1421 = vpack.c.b16 %v949, %v941
          %v1422 = vpack.c.b16 %v950, %v942
          %v1423 = vpack.c.b16 %v951, %v943
          %v1424 = vpack.c.b16 %v952, %v944
          %v1425 = vpack.c.b16 %v953, %v945
          %v1426 = vpack.c.b16 %v962, %v954
          %v1427 = vpack.c.b16 %v963, %v955
          %v1428 = vpack.c.b16 %v964, %v956
          %v1429 = vpack.c.b16 %v965, %v957
          %v1430 = vpack.c.b16 %v966, %v958
          %v1431 = vpack.c.b16 %v967, %v959
          %v1432 = vpack.c.b16 %v968, %v960
          %v1433 = vpack.c.b16 %v969, %v961
          %v1434 = vpack.c.b16 %v978, %v970
          %v1435 = vpack.c.b16 %v979, %v971
          %v1436 = vpack.c.b16 %v980, %v972
          %v1437 = vpack.c.b16 %v981, %v973
          %v1438 = vpack.c.b16 %v982, %v974
          %v1439 = vpack.c.b16 %v983, %v975
          %v1440 = vpack.c.b16 %v984, %v976
          %v1441 = vpack.c.b16 %v985, %v977
          %v1442 = vpack.c.b16 %v994, %v986
          %v1443 = vpack.c.b16 %v995, %v987
          %v1444 = vpack.c.b16 %v996, %v988
          %v1445 = vpack.c.b16 %v997, %v989
          %v1446 = vpack.c.b16 %v998, %v990
          %v1447 = vpack.c.b16 %v999, %v991
          %v1448 = vpack.c.b16 %v1000, %v992
          %v1449 = vpack.c.b16 %v1001, %v993
          %v1450 = vpack.c.b16 %v1010, %v1002
          %v1451 = vpack.c.b16 %v1011, %v1003
          %v1452 = vpack.c.b16 %v1012, %v1004
          %v1453 = vpack.c.b16 %v1013, %v1005
          %v1454 = vpack.c.b16 %v1014, %v1006
          %v1455 = vpack.c.b16 %v1015, %v1007
          %v1456 = vpack.c.b16 %v1016, %v1008
          %v1457 = vpack.c.b16 %v1017, %v1009
          %v1458 = vpack.c.b16 %v1026, %v1018
          %v1459 = vpack.c.b16 %v1027, %v1019
          %v1460 = vpack.c.b16 %v1028, %v1020
          %v1461 = vpack.c.b16 %v1029, %v1021
          %v1462 = vpack.c.b16 %v1030, %v1022
          %v1463 = vpack.c.b16 %v1031, %v1023
          %v1464 = vpack.c.b16 %v1032, %v1024
          %v1465 = vpack.c.b16 %v1033, %v1025
          %v1466 = vpack.c.b16 %v1042, %v1034
          %v1467 = vpack.c.b16 %v1043, %v1035
          %v1468 = vpack.c.b16 %v1044, %v1036
          %v1469 = vpack.c.b16 %v1045, %v1037
          %v1470 = vpack.c.b16 %v1046, %v1038
          %v1471 = vpack.c.b16 %v1047, %v1039
          %v1472 = vpack.c.b16 %v1048, %v1040
          %v1473 = vpack.c.b16 %v1049, %v1041
          %v1474 = vpack.c.b16 %v1058, %v1050
          %v1475 = vpack.c.b16 %v1059, %v1051
          %v1476 = vpack.c.b16 %v1060, %v1052
          %v1477 = vpack.c.b16 %v1061, %v1053
          %v1478 = vpack.c.b16 %v1062, %v1054
          %v1479 = vpack.c.b16 %v1063, %v1055
          %v1480 = vpack.c.b16 %v1064, %v1056
          %v1481 = vpack.c.b16 %v1065, %v1057
          %v1482 = vpack.c.b16 %v1074, %v1066
          %v1483 = vpack.c.b16 %v1075, %v1067
          %v1484 = vpack.c.b16 %v1076, %v1068
          %v1485 = vpack.c.b16 %v1077, %v1069
          %v1486 = vpack.c.b16 %v1078, %v1070
          %v1487 = vpack.c.b16 %v1079, %v1071
          %v1488 = vpack.c.b16 %v1080, %v1072
          %v1489 = vpack.c.b16 %v1081, %v1073
          %v1490 = vpack.c.b16 %v1090, %v1082
          %v1491 = vpack.c.b16 %v1091, %v1083
          %v1492 = vpack.c.b16 %v1092, %v1084
          %v1493 = vpack.c.b16 %v1093, %v1085
          %v1494 = vpack.c.b16 %v1094, %v1086
          %v1495 = vpack.c.b16 %v1095, %v1087
          %v1496 = vpack.c.b16 %v1096, %v1088
          %v1497 = vpack.c.b16 %v1097, %v1089
          %v1498 = vpack.c.b16 %v1106, %v1098
          %v1499 = vpack.c.b16 %v1107, %v1099
          %v1500 = vpack.c.b16 %v1108, %v1100
          %v1501 = vpack.c.b16 %v1109, %v1101
          %v1502 = vpack.c.b16 %v1110, %v1102
          %v1503 = vpack.c.b16 %v1111, %v1103
          %v1504 = vpack.c.b16 %v1112, %v1104
          %v1505 = vpack.c.b16 %v1113, %v1105
          %v1506 = vpack.c.b16 %v1122, %v1114
          %v1507 = vpack.c.b16 %v1123, %v1115
          %v1508 = vpack.c.b16 %v1124, %v1116
          %v1509 = vpack.c.b16 %v1125, %v1117
          %v1510 = vpack.c.b16 %v1126, %v1118
          %v1511 = vpack.c.b16 %v1127, %v1119
          %v1512 = vpack.c.b16 %v1128, %v1120
          %v1513 = vpack.c.b16 %v1129, %v1121
          %v1514 = vpack.c.b16 %v1138, %v1130
          %v1515 = vpack.c.b16 %v1139, %v1131
          %v1516 = vpack.c.b16 %v1140, %v1132
          %v1517 = vpack.c.b16 %v1141, %v1133
          %v1518 = vpack.c.b16 %v1142, %v1134
          %v1519 = vpack.c.b16 %v1143, %v1135
          %v1520 = vpack.c.b16 %v1144, %v1136
          %v1521 = vpack.c.b16 %v1145, %v1137
          %v1522 = vpack.c.b16 %v1154, %v1146
          %v1523 = vpack.c.b16 %v1155, %v1147
          %v1524 = vpack.c.b16 %v1156, %v1148
          %v1525 = vpack.c.b16 %v1157, %v1149
          %v1526 = vpack.c.b16 %v1158, %v1150
          %v1527 = vpack.c.b16 %v1159, %v1151
          %v1528 = vpack.c.b16 %v1160, %v1152
          %v1529 = vpack.c.b16 %v1161, %v1153
          %v1530 = vpack.c.b16 %v1170, %v1162
          %v1531 = vpack.c.b16 %v1171, %v1163
          %v1532 = vpack.c.b16 %v1172, %v1164
          %v1533 = vpack.c.b16 %v1173, %v1165
          %v1534 = vpack.c.b16 %v1174, %v1166
          %v1535 = vpack.c.b16 %v1175, %v1167
          %v1536 = vpack.c.b16 %v1176, %v1168
          %v1537 = vpack.c.b16 %v1177, %v1169
          %v1538 = vpack.c.b16 %v1186, %v1178
          %v1539 = vpack.c.b16 %v1187, %v1179
          %v1540 = vpack.c.b16 %v1188, %v1180
          %v1541 = vpack.c.b16 %v1189, %v1181
          %v1542 = vpack.c.b16 %v1190, %v1182
          %v1543 = vpack.c.b16 %v1191, %v1183
          %v1544 = vpack.c.b16 %v1192, %v1184
          %v1545 = vpack.c.b16 %v1193, %v1185
          %v1546 = vpack.c.b16 %v1202, %v1194
          %v1547 = vpack.c.b16 %v1203, %v1195
          %v1548 = vpack.c.b16 %v1204, %v1196
          %v1549 = vpack.c.b16 %v1205, %v1197
          %v1550 = vpack.c.b16 %v1206, %v1198
          %v1551 = vpack.c.b16 %v1207, %v1199
          %v1552 = vpack.c.b16 %v1208, %v1200
          %v1553 = vpack.c.b16 %v1209, %v1201
          %v1554 = vpack.c.b16 %v1218, %v1210
          %v1555 = vpack.c.b16 %v1219, %v1211
          %v1556 = vpack.c.b16 %v1220, %v1212
          %v1557 = vpack.c.b16 %v1221, %v1213
          %v1558 = vpack.c.b16 %v1222, %v1214
          %v1559 = vpack.c.b16 %v1223, %v1215
          %v1560 = vpack.c.b16 %v1224, %v1216
          %v1561 = vpack.c.b16 %v1225, %v1217
          %v1562 = vpack.c.b16 %v1234, %v1226
          %v1563 = vpack.c.b16 %v1235, %v1227
          %v1564 = vpack.c.b16 %v1236, %v1228
          %v1565 = vpack.c.b16 %v1237, %v1229
          %v1566 = vpack.c.b16 %v1238, %v1230
          %v1567 = vpack.c.b16 %v1239, %v1231
          %v1568 = vpack.c.b16 %v1240, %v1232
          %v1569 = vpack.c.b16 %v1241, %v1233
          %v1570 = vpack.c.b16 %v1250, %v1242
          %v1571 = vpack.c.b16 %v1251, %v1243
          %v1572 = vpack.c.b16 %v1252, %v1244
          %v1573 = vpack.c.b16 %v1253, %v1245
          %v1574 = vpack.c.b16 %v1254, %v1246
          %v1575 = vpack.c.b16 %v1255, %v1247
          %v1576 = vpack.c.b16 %v1256, %v1248
          %v1577 = vpack.c.b16 %v1257, %v1249
          %v1578 = vpack.c.b16 %v1266, %v1258
          %v1579 = vpack.c.b16 %v1267, %v1259
          %v1580 = vpack.c.b16 %v1268, %v1260
          %v1581 = vpack.c.b16 %v1269, %v1261
          %v1582 = vpack.c.b16 %v1270, %v1262
          %v1583 = vpack.c.b16 %v1271, %v1263
          %v1584 = vpack.c.b16 %v1272, %v1264
          %v1585 = vpack.c.b16 %v1273, %v1265
          %v1586 = vpack.c.b16 %v1282, %v1274
          %v1587 = vpack.c.b16 %v1283, %v1275
          %v1588 = vpack.c.b16 %v1284, %v1276
          %v1589 = vpack.c.b16 %v1285, %v1277
          %v1590 = vpack.c.b16 %v1286, %v1278
          %v1591 = vpack.c.b16 %v1287, %v1279
          %v1592 = vpack.c.b16 %v1288, %v1280
          %v1593 = vpack.c.b16 %v1289, %v1281
          %v1594 = vpack.c.b16 %v1298, %v1290
          %v1595 = vpack.c.b16 %v1299, %v1291
          %v1596 = vpack.c.b16 %v1300, %v1292
          %v1597 = vpack.c.b16 %v1301, %v1293
          %v1598 = vpack.c.b16 %v1302, %v1294
          %v1599 = vpack.c.b16 %v1303, %v1295
          %v1600 = vpack.c.b16 %v1304, %v1296
          %v1601 = vpack.c.b16 %v1305, %v1297
          %v1602 = vpack.c.b16 %v1314, %v1306
          %v1603 = vpack.c.b16 %v1315, %v1307
          %v1604 = vpack.c.b16 %v1316, %v1308
          %v1605 = vpack.c.b16 %v1317, %v1309
          %v1606 = vpack.c.b16 %v1318, %v1310
          %v1607 = vpack.c.b16 %v1319, %v1311
          %v1608 = vpack.c.b16 %v1320, %v1312
          %v1609 = vpack.c.b16 %v1321, %v1313
          %v1610 = vpack.c.b16 %v1330, %v1322
          %v1611 = vpack.c.b16 %v1331, %v1323
          %v1612 = vpack.c.b16 %v1332, %v1324
          %v1613 = vpack.c.b16 %v1333, %v1325
          %v1614 = vpack.c.b16 %v1334, %v1326
          %v1615 = vpack.c.b16 %v1335, %v1327
          %v1616 = vpack.c.b16 %v1336, %v1328
          %v1617 = vpack.c.b16 %v1337, %v1329
          %v1618 = vpack.c.b16 %v1346, %v1338
          %v1619 = vpack.c.b16 %v1347, %v1339
          %v1620 = vpack.c.b16 %v1348, %v1340
          %v1621 = vpack.c.b16 %v1349, %v1341
          %v1622 = vpack.c.b16 %v1350, %v1342
          %v1623 = vpack.c.b16 %v1351, %v1343
          %v1624 = vpack.c.b16 %v1352, %v1344
          %v1625 = vpack.c.b16 %v1353, %v1345
          %v1626 = vpack.c.b16 %v1362, %v1354
          %v1627 = vpack.c.b16 %v1363, %v1355
          %v1628 = vpack.c.b16 %v1364, %v1356
          %v1629 = vpack.c.b16 %v1365, %v1357
          %v1630 = vpack.c.b16 %v1366, %v1358
          %v1631 = vpack.c.b16 %v1367, %v1359
          %v1632 = vpack.c.b16 %v1368, %v1360
          %v1633 = vpack.c.b16 %v1369, %v1361
          %v1634 = vpack.c.b16 %v1378, %v1370
          %v1635 = vpack.c.b16 %v1379, %v1371
          %v1636 = vpack.c.b16 %v1380, %v1372
          %v1637 = vpack.c.b16 %v1381, %v1373
          %v1638 = vpack.c.b16 %v1382, %v1374
          %v1639 = vpack.c.b16 %v1383, %v1375
          %v1640 = vpack.c.b16 %v1384, %v1376
          %v1641 = vpack.c.b16 %v1385, %v1377
          %1898 = vmatpush.bf16.msra.mxu0 %v1442
          %1899 = vmatpush.bf16.msra.mxu0 %v1434
          %1900 = vmatpush.bf16.msra.mxu0 %v1426
          %1901 = vmatpush.bf16.msra.mxu0 %v1418
          %1902 = vmatpush.bf16.msra.mxu0 %v1410
          %1903 = vmatpush.bf16.msra.mxu0 %v1402
          %1904 = vmatpush.bf16.msra.mxu0 %v1394
          %1905 = vmatpush.bf16.msra.mxu0 %v1386
          %1906 = vmatmul.bf16.gmra.mxu0 %v610
          %v1907 = vpop.f32.mrf.mxu0
          %v1908 = vadd.f32 %v588, %v1907
          %v1909 = vpop.f32.mrf.mxu0
          %1910 = vdwg.mxu0
          %1911 = vmatpush.bf16.msra.mxu0 %v1506
          %1912 = vmatpush.bf16.msra.mxu0 %v1498
          %1913 = vmatpush.bf16.msra.mxu0 %v1490
          %1914 = vmatpush.bf16.msra.mxu0 %v1482
          %1915 = vmatpush.bf16.msra.mxu0 %v1474
          %1916 = vmatpush.bf16.msra.mxu0 %v1466
          %1917 = vmatpush.bf16.msra.mxu0 %v1458
          %1918 = vmatpush.bf16.msra.mxu0 %v1450
          %1919 = vmatmul.bf16.gmra.mxu0 %v611
          %v1920 = vpop.f32.mrf.mxu0
          %v1921 = vadd.f32 %v1908, %v1920
          %v1922 = vpop.f32.mrf.mxu0
          %1923 = vdwg.mxu0
          %1924 = vmatpush.bf16.msra.mxu0 %v1570
          %1925 = vmatpush.bf16.msra.mxu0 %v1562
          %1926 = vmatpush.bf16.msra.mxu0 %v1554
          %1927 = vmatpush.bf16.msra.mxu0 %v1546
          %1928 = vmatpush.bf16.msra.mxu0 %v1538
          %1929 = vmatpush.bf16.msra.mxu0 %v1530
          %1930 = vmatpush.bf16.msra.mxu0 %v1522
          %1931 = vmatpush.bf16.msra.mxu0 %v1514
          %1932 = vmatmul.bf16.gmra.mxu0 %v612
          %v1933 = vpop.f32.mrf.mxu0
          %v1934 = vadd.f32 %v1921, %v1933
          %v1935 = vpop.f32.mrf.mxu0
          %1936 = vdwg.mxu0
          %1937 = vmatpush.bf16.msra.mxu0 %v1634
          %1938 = vmatpush.bf16.msra.mxu0 %v1626
          %1939 = vmatpush.bf16.msra.mxu0 %v1618
          %1940 = vmatpush.bf16.msra.mxu0 %v1610
          %1941 = vmatpush.bf16.msra.mxu0 %v1602
          %1942 = vmatpush.bf16.msra.mxu0 %v1594
          %1943 = vmatpush.bf16.msra.mxu0 %v1586
          %1944 = vmatpush.bf16.msra.mxu0 %v1578
          %1945 = vmatmul.bf16.gmra.mxu0 %v613
          %v1946 = vpop.f32.mrf.mxu0
          %v1947 = vadd.f32 %v1934, %v1946
          %v1948 = vpop.f32.mrf.mxu0
          %1949 = vdwg.mxu0
          %1950 = vmatpush.bf16.msra.mxu0 %v1443
          %1951 = vmatpush.bf16.msra.mxu0 %v1435
          %1952 = vmatpush.bf16.msra.mxu0 %v1427
          %1953 = vmatpush.bf16.msra.mxu0 %v1419
          %1954 = vmatpush.bf16.msra.mxu0 %v1411
          %1955 = vmatpush.bf16.msra.mxu0 %v1403
          %1956 = vmatpush.bf16.msra.mxu0 %v1395
          %1957 = vmatpush.bf16.msra.mxu0 %v1387
          %1958 = vmatmul.bf16.gmra.mxu0 %v610
          %v1959 = vpop.f32.mrf.mxu0
          %v1960 = vadd.f32 %v589, %v1959
          %v1961 = vpop.f32.mrf.mxu0
          %1962 = vdwg.mxu0
          %1963 = vmatpush.bf16.msra.mxu0 %v1507
          %1964 = vmatpush.bf16.msra.mxu0 %v1499
          %1965 = vmatpush.bf16.msra.mxu0 %v1491
          %1966 = vmatpush.bf16.msra.mxu0 %v1483
          %1967 = vmatpush.bf16.msra.mxu0 %v1475
          %1968 = vmatpush.bf16.msra.mxu0 %v1467
          %1969 = vmatpush.bf16.msra.mxu0 %v1459
          %1970 = vmatpush.bf16.msra.mxu0 %v1451
          %1971 = vmatmul.bf16.gmra.mxu0 %v611
          %v1972 = vpop.f32.mrf.mxu0
          %v1973 = vadd.f32 %v1960, %v1972
          %v1974 = vpop.f32.mrf.mxu0
          %1975 = vdwg.mxu0
          %1976 = vmatpush.bf16.msra.mxu0 %v1571
          %1977 = vmatpush.bf16.msra.mxu0 %v1563
          %1978 = vmatpush.bf16.msra.mxu0 %v1555
          %1979 = vmatpush.bf16.msra.mxu0 %v1547
          %1980 = vmatpush.bf16.msra.mxu0 %v1539
          %1981 = vmatpush.bf16.msra.mxu0 %v1531
          %1982 = vmatpush.bf16.msra.mxu0 %v1523
          %1983 = vmatpush.bf16.msra.mxu0 %v1515
          %1984 = vmatmul.bf16.gmra.mxu0 %v612
          %v1985 = vpop.f32.mrf.mxu0
          %v1986 = vadd.f32 %v1973, %v1985
          %v1987 = vpop.f32.mrf.mxu0
          %1988 = vdwg.mxu0
          %1989 = vmatpush.bf16.msra.mxu0 %v1635
          %1990 = vmatpush.bf16.msra.mxu0 %v1627
          %1991 = vmatpush.bf16.msra.mxu0 %v1619
          %1992 = vmatpush.bf16.msra.mxu0 %v1611
          %1993 = vmatpush.bf16.msra.mxu0 %v1603
          %1994 = vmatpush.bf16.msra.mxu0 %v1595
          %1995 = vmatpush.bf16.msra.mxu0 %v1587
          %1996 = vmatpush.bf16.msra.mxu0 %v1579
          %1997 = vmatmul.bf16.gmra.mxu0 %v613
          %v1998 = vpop.f32.mrf.mxu0
          %v1999 = vadd.f32 %v1986, %v1998
          %v2000 = vpop.f32.mrf.mxu0
          %2001 = vdwg.mxu0
          %2002 = vmatpush.bf16.msra.mxu0 %v1444
          %2003 = vmatpush.bf16.msra.mxu0 %v1436
          %2004 = vmatpush.bf16.msra.mxu0 %v1428
          %2005 = vmatpush.bf16.msra.mxu0 %v1420
          %2006 = vmatpush.bf16.msra.mxu0 %v1412
          %2007 = vmatpush.bf16.msra.mxu0 %v1404
          %2008 = vmatpush.bf16.msra.mxu0 %v1396
          %2009 = vmatpush.bf16.msra.mxu0 %v1388
          %2010 = vmatmul.bf16.gmra.mxu0 %v610
          %v2011 = vpop.f32.mrf.mxu0
          %v2012 = vadd.f32 %v590, %v2011
          %v2013 = vpop.f32.mrf.mxu0
          %2014 = vdwg.mxu0
          %2015 = vmatpush.bf16.msra.mxu0 %v1508
          %2016 = vmatpush.bf16.msra.mxu0 %v1500
          %2017 = vmatpush.bf16.msra.mxu0 %v1492
          %2018 = vmatpush.bf16.msra.mxu0 %v1484
          %2019 = vmatpush.bf16.msra.mxu0 %v1476
          %2020 = vmatpush.bf16.msra.mxu0 %v1468
          %2021 = vmatpush.bf16.msra.mxu0 %v1460
          %2022 = vmatpush.bf16.msra.mxu0 %v1452
          %2023 = vmatmul.bf16.gmra.mxu0 %v611
          %v2024 = vpop.f32.mrf.mxu0
          %v2025 = vadd.f32 %v2012, %v2024
          %v2026 = vpop.f32.mrf.mxu0
          %2027 = vdwg.mxu0
          %2028 = vmatpush.bf16.msra.mxu0 %v1572
          %2029 = vmatpush.bf16.msra.mxu0 %v1564
          %2030 = vmatpush.bf16.msra.mxu0 %v1556
          %2031 = vmatpush.bf16.msra.mxu0 %v1548
          %2032 = vmatpush.bf16.msra.mxu0 %v1540
          %2033 = vmatpush.bf16.msra.mxu0 %v1532
          %2034 = vmatpush.bf16.msra.mxu0 %v1524
          %2035 = vmatpush.bf16.msra.mxu0 %v1516
          %2036 = vmatmul.bf16.gmra.mxu0 %v612
          %v2037 = vpop.f32.mrf.mxu0
          %v2038 = vadd.f32 %v2025, %v2037
          %v2039 = vpop.f32.mrf.mxu0
          %2040 = vdwg.mxu0
          %2041 = vmatpush.bf16.msra.mxu0 %v1636
          %2042 = vmatpush.bf16.msra.mxu0 %v1628
          %2043 = vmatpush.bf16.msra.mxu0 %v1620
          %2044 = vmatpush.bf16.msra.mxu0 %v1612
          %2045 = vmatpush.bf16.msra.mxu0 %v1604
          %2046 = vmatpush.bf16.msra.mxu0 %v1596
          %2047 = vmatpush.bf16.msra.mxu0 %v1588
          %2048 = vmatpush.bf16.msra.mxu0 %v1580
          %2049 = vmatmul.bf16.gmra.mxu0 %v613
          %v2050 = vpop.f32.mrf.mxu0
          %v2051 = vadd.f32 %v2038, %v2050
          %v2052 = vpop.f32.mrf.mxu0
          %2053 = vdwg.mxu0
          %2054 = vmatpush.bf16.msra.mxu0 %v1445
          %2055 = vmatpush.bf16.msra.mxu0 %v1437
          %2056 = vmatpush.bf16.msra.mxu0 %v1429
          %2057 = vmatpush.bf16.msra.mxu0 %v1421
          %2058 = vmatpush.bf16.msra.mxu0 %v1413
          %2059 = vmatpush.bf16.msra.mxu0 %v1405
          %2060 = vmatpush.bf16.msra.mxu0 %v1397
          %2061 = vmatpush.bf16.msra.mxu0 %v1389
          %2062 = vmatmul.bf16.gmra.mxu0 %v610
          %v2063 = vpop.f32.mrf.mxu0
          %v2064 = vadd.f32 %v591, %v2063
          %v2065 = vpop.f32.mrf.mxu0
          %2066 = vdwg.mxu0
          %2067 = vmatpush.bf16.msra.mxu0 %v1509
          %2068 = vmatpush.bf16.msra.mxu0 %v1501
          %2069 = vmatpush.bf16.msra.mxu0 %v1493
          %2070 = vmatpush.bf16.msra.mxu0 %v1485
          %2071 = vmatpush.bf16.msra.mxu0 %v1477
          %2072 = vmatpush.bf16.msra.mxu0 %v1469
          %2073 = vmatpush.bf16.msra.mxu0 %v1461
          %2074 = vmatpush.bf16.msra.mxu0 %v1453
          %2075 = vmatmul.bf16.gmra.mxu0 %v611
          %v2076 = vpop.f32.mrf.mxu0
          %v2077 = vadd.f32 %v2064, %v2076
          %v2078 = vpop.f32.mrf.mxu0
          %2079 = vdwg.mxu0
          %2080 = vmatpush.bf16.msra.mxu0 %v1573
          %2081 = vmatpush.bf16.msra.mxu0 %v1565
          %2082 = vmatpush.bf16.msra.mxu0 %v1557
          %2083 = vmatpush.bf16.msra.mxu0 %v1549
          %2084 = vmatpush.bf16.msra.mxu0 %v1541
          %2085 = vmatpush.bf16.msra.mxu0 %v1533
          %2086 = vmatpush.bf16.msra.mxu0 %v1525
          %2087 = vmatpush.bf16.msra.mxu0 %v1517
          %2088 = vmatmul.bf16.gmra.mxu0 %v612
          %v2089 = vpop.f32.mrf.mxu0
          %v2090 = vadd.f32 %v2077, %v2089
          %v2091 = vpop.f32.mrf.mxu0
          %2092 = vdwg.mxu0
          %2093 = vmatpush.bf16.msra.mxu0 %v1637
          %2094 = vmatpush.bf16.msra.mxu0 %v1629
          %2095 = vmatpush.bf16.msra.mxu0 %v1621
          %2096 = vmatpush.bf16.msra.mxu0 %v1613
          %2097 = vmatpush.bf16.msra.mxu0 %v1605
          %2098 = vmatpush.bf16.msra.mxu0 %v1597
          %2099 = vmatpush.bf16.msra.mxu0 %v1589
          %2100 = vmatpush.bf16.msra.mxu0 %v1581
          %2101 = vmatmul.bf16.gmra.mxu0 %v613
          %v2102 = vpop.f32.mrf.mxu0
          %v2103 = vadd.f32 %v2090, %v2102
          %v2104 = vpop.f32.mrf.mxu0
          %2105 = vdwg.mxu0
          %2106 = vmatpush.bf16.msra.mxu0 %v1446
          %2107 = vmatpush.bf16.msra.mxu0 %v1438
          %2108 = vmatpush.bf16.msra.mxu0 %v1430
          %2109 = vmatpush.bf16.msra.mxu0 %v1422
          %2110 = vmatpush.bf16.msra.mxu0 %v1414
          %2111 = vmatpush.bf16.msra.mxu0 %v1406
          %2112 = vmatpush.bf16.msra.mxu0 %v1398
          %2113 = vmatpush.bf16.msra.mxu0 %v1390
          %2114 = vmatmul.bf16.gmra.mxu0 %v610
          %v2115 = vpop.f32.mrf.mxu0
          %v2116 = vadd.f32 %v592, %v2115
          %v2117 = vpop.f32.mrf.mxu0
          %2118 = vdwg.mxu0
          %2119 = vmatpush.bf16.msra.mxu0 %v1510
          %2120 = vmatpush.bf16.msra.mxu0 %v1502
          %2121 = vmatpush.bf16.msra.mxu0 %v1494
          %2122 = vmatpush.bf16.msra.mxu0 %v1486
          %2123 = vmatpush.bf16.msra.mxu0 %v1478
          %2124 = vmatpush.bf16.msra.mxu0 %v1470
          %2125 = vmatpush.bf16.msra.mxu0 %v1462
          %2126 = vmatpush.bf16.msra.mxu0 %v1454
          %2127 = vmatmul.bf16.gmra.mxu0 %v611
          %v2128 = vpop.f32.mrf.mxu0
          %v2129 = vadd.f32 %v2116, %v2128
          %v2130 = vpop.f32.mrf.mxu0
          %2131 = vdwg.mxu0
          %2132 = vmatpush.bf16.msra.mxu0 %v1574
          %2133 = vmatpush.bf16.msra.mxu0 %v1566
          %2134 = vmatpush.bf16.msra.mxu0 %v1558
          %2135 = vmatpush.bf16.msra.mxu0 %v1550
          %2136 = vmatpush.bf16.msra.mxu0 %v1542
          %2137 = vmatpush.bf16.msra.mxu0 %v1534
          %2138 = vmatpush.bf16.msra.mxu0 %v1526
          %2139 = vmatpush.bf16.msra.mxu0 %v1518
          %2140 = vmatmul.bf16.gmra.mxu0 %v612
          %v2141 = vpop.f32.mrf.mxu0
          %v2142 = vadd.f32 %v2129, %v2141
          %v2143 = vpop.f32.mrf.mxu0
          %2144 = vdwg.mxu0
          %2145 = vmatpush.bf16.msra.mxu0 %v1638
          %2146 = vmatpush.bf16.msra.mxu0 %v1630
          %2147 = vmatpush.bf16.msra.mxu0 %v1622
          %2148 = vmatpush.bf16.msra.mxu0 %v1614
          %2149 = vmatpush.bf16.msra.mxu0 %v1606
          %2150 = vmatpush.bf16.msra.mxu0 %v1598
          %2151 = vmatpush.bf16.msra.mxu0 %v1590
          %2152 = vmatpush.bf16.msra.mxu0 %v1582
          %2153 = vmatmul.bf16.gmra.mxu0 %v613
          %v2154 = vpop.f32.mrf.mxu0
          %v2155 = vadd.f32 %v2142, %v2154
          %v2156 = vpop.f32.mrf.mxu0
          %2157 = vdwg.mxu0
          %2158 = vmatpush.bf16.msra.mxu0 %v1447
          %2159 = vmatpush.bf16.msra.mxu0 %v1439
          %2160 = vmatpush.bf16.msra.mxu0 %v1431
          %2161 = vmatpush.bf16.msra.mxu0 %v1423
          %2162 = vmatpush.bf16.msra.mxu0 %v1415
          %2163 = vmatpush.bf16.msra.mxu0 %v1407
          %2164 = vmatpush.bf16.msra.mxu0 %v1399
          %2165 = vmatpush.bf16.msra.mxu0 %v1391
          %2166 = vmatmul.bf16.gmra.mxu0 %v610
          %v2167 = vpop.f32.mrf.mxu0
          %v2168 = vadd.f32 %v593, %v2167
          %v2169 = vpop.f32.mrf.mxu0
          %2170 = vdwg.mxu0
          %2171 = vmatpush.bf16.msra.mxu0 %v1511
          %2172 = vmatpush.bf16.msra.mxu0 %v1503
          %2173 = vmatpush.bf16.msra.mxu0 %v1495
          %2174 = vmatpush.bf16.msra.mxu0 %v1487
          %2175 = vmatpush.bf16.msra.mxu0 %v1479
          %2176 = vmatpush.bf16.msra.mxu0 %v1471
          %2177 = vmatpush.bf16.msra.mxu0 %v1463
          %2178 = vmatpush.bf16.msra.mxu0 %v1455
          %2179 = vmatmul.bf16.gmra.mxu0 %v611
          %v2180 = vpop.f32.mrf.mxu0
          %v2181 = vadd.f32 %v2168, %v2180
          %v2182 = vpop.f32.mrf.mxu0
          %2183 = vdwg.mxu0
          %2184 = vmatpush.bf16.msra.mxu0 %v1575
          %2185 = vmatpush.bf16.msra.mxu0 %v1567
          %2186 = vmatpush.bf16.msra.mxu0 %v1559
          %2187 = vmatpush.bf16.msra.mxu0 %v1551
          %2188 = vmatpush.bf16.msra.mxu0 %v1543
          %2189 = vmatpush.bf16.msra.mxu0 %v1535
          %2190 = vmatpush.bf16.msra.mxu0 %v1527
          %2191 = vmatpush.bf16.msra.mxu0 %v1519
          %2192 = vmatmul.bf16.gmra.mxu0 %v612
          %v2193 = vpop.f32.mrf.mxu0
          %v2194 = vadd.f32 %v2181, %v2193
          %v2195 = vpop.f32.mrf.mxu0
          %2196 = vdwg.mxu0
          %2197 = vmatpush.bf16.msra.mxu0 %v1639
          %2198 = vmatpush.bf16.msra.mxu0 %v1631
          %2199 = vmatpush.bf16.msra.mxu0 %v1623
          %2200 = vmatpush.bf16.msra.mxu0 %v1615
          %2201 = vmatpush.bf16.msra.mxu0 %v1607
          %2202 = vmatpush.bf16.msra.mxu0 %v1599
          %2203 = vmatpush.bf16.msra.mxu0 %v1591
          %2204 = vmatpush.bf16.msra.mxu0 %v1583
          %2205 = vmatmul.bf16.gmra.mxu0 %v613
          %v2206 = vpop.f32.mrf.mxu0
          %v2207 = vadd.f32 %v2194, %v2206
          %v2208 = vpop.f32.mrf.mxu0
          %2209 = vdwg.mxu0
          %2210 = vmatpush.bf16.msra.mxu0 %v1448
          %2211 = vmatpush.bf16.msra.mxu0 %v1440
          %2212 = vmatpush.bf16.msra.mxu0 %v1432
          %2213 = vmatpush.bf16.msra.mxu0 %v1424
          %2214 = vmatpush.bf16.msra.mxu0 %v1416
          %2215 = vmatpush.bf16.msra.mxu0 %v1408
          %2216 = vmatpush.bf16.msra.mxu0 %v1400
          %2217 = vmatpush.bf16.msra.mxu0 %v1392
          %2218 = vmatmul.bf16.gmra.mxu0 %v610
          %v2219 = vpop.f32.mrf.mxu0
          %v2220 = vadd.f32 %v594, %v2219
          %v2221 = vpop.f32.mrf.mxu0
          %2222 = vdwg.mxu0
          %2223 = vmatpush.bf16.msra.mxu0 %v1512
          %2224 = vmatpush.bf16.msra.mxu0 %v1504
          %2225 = vmatpush.bf16.msra.mxu0 %v1496
          %2226 = vmatpush.bf16.msra.mxu0 %v1488
          %2227 = vmatpush.bf16.msra.mxu0 %v1480
          %2228 = vmatpush.bf16.msra.mxu0 %v1472
          %2229 = vmatpush.bf16.msra.mxu0 %v1464
          %2230 = vmatpush.bf16.msra.mxu0 %v1456
          %2231 = vmatmul.bf16.gmra.mxu0 %v611
          %v2232 = vpop.f32.mrf.mxu0
          %v2233 = vadd.f32 %v2220, %v2232
          %v2234 = vpop.f32.mrf.mxu0
          %2235 = vdwg.mxu0
          %2236 = vmatpush.bf16.msra.mxu0 %v1576
          %2237 = vmatpush.bf16.msra.mxu0 %v1568
          %2238 = vmatpush.bf16.msra.mxu0 %v1560
          %2239 = vmatpush.bf16.msra.mxu0 %v1552
          %2240 = vmatpush.bf16.msra.mxu0 %v1544
          %2241 = vmatpush.bf16.msra.mxu0 %v1536
          %2242 = vmatpush.bf16.msra.mxu0 %v1528
          %2243 = vmatpush.bf16.msra.mxu0 %v1520
          %2244 = vmatmul.bf16.gmra.mxu0 %v612
          %v2245 = vpop.f32.mrf.mxu0
          %v2246 = vadd.f32 %v2233, %v2245
          %v2247 = vpop.f32.mrf.mxu0
          %2248 = vdwg.mxu0
          %2249 = vmatpush.bf16.msra.mxu0 %v1640
          %2250 = vmatpush.bf16.msra.mxu0 %v1632
          %2251 = vmatpush.bf16.msra.mxu0 %v1624
          %2252 = vmatpush.bf16.msra.mxu0 %v1616
          %2253 = vmatpush.bf16.msra.mxu0 %v1608
          %2254 = vmatpush.bf16.msra.mxu0 %v1600
          %2255 = vmatpush.bf16.msra.mxu0 %v1592
          %2256 = vmatpush.bf16.msra.mxu0 %v1584
          %2257 = vmatmul.bf16.gmra.mxu0 %v613
          %v2258 = vpop.f32.mrf.mxu0
          %v2259 = vadd.f32 %v2246, %v2258
          %v2260 = vpop.f32.mrf.mxu0
          %2261 = vdwg.mxu0
          %2262 = vmatpush.bf16.msra.mxu0 %v1449
          %2263 = vmatpush.bf16.msra.mxu0 %v1441
          %2264 = vmatpush.bf16.msra.mxu0 %v1433
          %2265 = vmatpush.bf16.msra.mxu0 %v1425
          %2266 = vmatpush.bf16.msra.mxu0 %v1417
          %2267 = vmatpush.bf16.msra.mxu0 %v1409
          %2268 = vmatpush.bf16.msra.mxu0 %v1401
          %2269 = vmatpush.bf16.msra.mxu0 %v1393
          %2270 = vmatmul.bf16.gmra.mxu0 %v610
          %v2271 = vpop.f32.mrf.mxu0
          %v2272 = vadd.f32 %v595, %v2271
          %v2273 = vpop.f32.mrf.mxu0
          %2274 = vdwg.mxu0
          %2275 = vmatpush.bf16.msra.mxu0 %v1513
          %2276 = vmatpush.bf16.msra.mxu0 %v1505
          %2277 = vmatpush.bf16.msra.mxu0 %v1497
          %2278 = vmatpush.bf16.msra.mxu0 %v1489
          %2279 = vmatpush.bf16.msra.mxu0 %v1481
          %2280 = vmatpush.bf16.msra.mxu0 %v1473
          %2281 = vmatpush.bf16.msra.mxu0 %v1465
          %2282 = vmatpush.bf16.msra.mxu0 %v1457
          %2283 = vmatmul.bf16.gmra.mxu0 %v611
          %v2284 = vpop.f32.mrf.mxu0
          %v2285 = vadd.f32 %v2272, %v2284
          %v2286 = vpop.f32.mrf.mxu0
          %2287 = vdwg.mxu0
          %2288 = vmatpush.bf16.msra.mxu0 %v1577
          %2289 = vmatpush.bf16.msra.mxu0 %v1569
          %2290 = vmatpush.bf16.msra.mxu0 %v1561
          %2291 = vmatpush.bf16.msra.mxu0 %v1553
          %2292 = vmatpush.bf16.msra.mxu0 %v1545
          %2293 = vmatpush.bf16.msra.mxu0 %v1537
          %2294 = vmatpush.bf16.msra.mxu0 %v1529
          %2295 = vmatpush.bf16.msra.mxu0 %v1521
          %2296 = vmatmul.bf16.gmra.mxu0 %v612
          %v2297 = vpop.f32.mrf.mxu0
          %v2298 = vadd.f32 %v2285, %v2297
          %v2299 = vpop.f32.mrf.mxu0
          %2300 = vdwg.mxu0
          %2301 = vmatpush.bf16.msra.mxu0 %v1641
          %2302 = vmatpush.bf16.msra.mxu0 %v1633
          %2303 = vmatpush.bf16.msra.mxu0 %v1625
          %2304 = vmatpush.bf16.msra.mxu0 %v1617
          %2305 = vmatpush.bf16.msra.mxu0 %v1609
          %2306 = vmatpush.bf16.msra.mxu0 %v1601
          %2307 = vmatpush.bf16.msra.mxu0 %v1593
          %2308 = vmatpush.bf16.msra.mxu0 %v1585
          %2309 = vmatmul.bf16.gmra.mxu0 %v613
          %v2310 = vpop.f32.mrf.mxu0
          %v2311 = vadd.f32 %v2298, %v2310
          %v2312 = vpop.f32.mrf.mxu0
          %2313 = vdwg.mxu0
          %2314 = vst [vmem:[#allocation2] sm:$0xff] %v1947
          %2315 = vst [vmem:[#allocation2 + $0x8] sm:$0xff] %v1999
          %2316 = vst [vmem:[#allocation2 + $0x10] sm:$0xff] %v2051
          %2317 = vst [vmem:[#allocation2 + $0x18] sm:$0xff] %v2103
          %2318 = vst [vmem:[#allocation2 + $0x20] sm:$0xff] %v2155
          %2319 = vst [vmem:[#allocation2 + $0x28] sm:$0xff] %v2207
          %2320 = vst [vmem:[#allocation2 + $0x30] sm:$0xff] %v2259
          %2321 = vst [vmem:[#allocation2 + $0x38] sm:$0xff] %v2311
        $region60: #{_forward_impl.1} parent=39 // pred_fallthru
          _
        %v2322 = vld [vmem:[#allocation2] sm:$0xff]
        %v2323 = vld [vmem:[#allocation2 + $0x8] sm:$0xff]
        %v2324 = vld [vmem:[#allocation2 + $0x10] sm:$0xff]
        %v2325 = vld [vmem:[#allocation2 + $0x18] sm:$0xff]
        %v2326 = vld [vmem:[#allocation2 + $0x20] sm:$0xff]
        %v2327 = vld [vmem:[#allocation2 + $0x28] sm:$0xff]
        %v2328 = vld [vmem:[#allocation2 + $0x30] sm:$0xff]
        %v2329 = vld [vmem:[#allocation2 + $0x38] sm:$0xff]
        %v2330 = vpack.c.bf16 %v2322, %v2322
        %v2331 = vpack.c.bf16 %v2323, %v2323
        %v2332 = vpack.c.bf16 %v2324, %v2324
        %v2333 = vpack.c.bf16 %v2325, %v2325
        %v2334 = vpack.c.bf16 %v2326, %v2326
        %v2335 = vpack.c.bf16 %v2327, %v2327
        %v2336 = vpack.c.bf16 %v2328, %v2328
        %v2337 = vpack.c.bf16 %v2329, %v2329
        %v2338 = vld [vmem:[%s276] sm:$0xff]
        %v2339 = vld [vmem:[%s276 + $0x8] sm:$0xff]
        %v2340 = vld [vmem:[%s276 + $0x10] sm:$0xff]
        %v2341 = vld [vmem:[%s276 + $0x18] sm:$0xff]
        %v2342 = vld [vmem:[%s276 + $0x20] sm:$0xff]
        %v2343 = vld [vmem:[%s276 + $0x28] sm:$0xff]
        %v2344 = vld [vmem:[%s276 + $0x30] sm:$0xff]
        %v2345 = vld [vmem:[%s276 + $0x38] sm:$0xff]
        %v2346 = vld [vmem:[%s276 + $0x40] sm:$0xff]
        %v2347 = vld [vmem:[%s276 + $0x48] sm:$0xff]
        %v2348 = vld [vmem:[%s276 + $0x50] sm:$0xff]
        %v2349 = vld [vmem:[%s276 + $0x58] sm:$0xff]
        %v2350 = vld [vmem:[%s276 + $0x60] sm:$0xff]
        %v2351 = vld [vmem:[%s276 + $0x68] sm:$0xff]
        %v2352 = vld [vmem:[%s276 + $0x70] sm:$0xff]
        %v2353 = vld [vmem:[%s276 + $0x78] sm:$0xff]
        %v2354 = vld [vmem:[%s276 + $0x80] sm:$0xff]
        %v2355 = vld [vmem:[%s276 + $0x88] sm:$0xff]
        %v2356 = vld [vmem:[%s276 + $0x90] sm:$0xff]
        %v2357 = vld [vmem:[%s276 + $0x98] sm:$0xff]
        %v2358 = vld [vmem:[%s276 + $0xa0] sm:$0xff]
        %v2359 = vld [vmem:[%s276 + $0xa8] sm:$0xff]
        %v2360 = vld [vmem:[%s276 + $0xb0] sm:$0xff]
        %v2361 = vld [vmem:[%s276 + $0xb8] sm:$0xff]
        %v2362 = vld [vmem:[%s276 + $0xc0] sm:$0xff]
        %v2363 = vld [vmem:[%s276 + $0xc8] sm:$0xff]
        %v2364 = vld [vmem:[%s276 + $0xd0] sm:$0xff]
        %v2365 = vld [vmem:[%s276 + $0xd8] sm:$0xff]
        %v2366 = vld [vmem:[%s276 + $0xe0] sm:$0xff]
        %v2367 = vld [vmem:[%s276 + $0xe8] sm:$0xff]
        %v2368 = vld [vmem:[%s276 + $0xf0] sm:$0xff]
        %v2369 = vld [vmem:[%s276 + $0xf8] sm:$0xff]
        %v2370 = vld [vmem:[%s276 + $0x100] sm:$0xff]
        %v2371 = vld [vmem:[%s276 + $0x108] sm:$0xff]
        %v2372 = vld [vmem:[%s276 + $0x110] sm:$0xff]
        %v2373 = vld [vmem:[%s276 + $0x118] sm:$0xff]
        %v2374 = vld [vmem:[%s276 + $0x120] sm:$0xff]
        %v2375 = vld [vmem:[%s276 + $0x128] sm:$0xff]
        %v2376 = vld [vmem:[%s276 + $0x130] sm:$0xff]
        %v2377 = vld [vmem:[%s276 + $0x138] sm:$0xff]
        %v2378 = vld [vmem:[%s276 + $0x140] sm:$0xff]
        %v2379 = vld [vmem:[%s276 + $0x148] sm:$0xff]
        %v2380 = vld [vmem:[%s276 + $0x150] sm:$0xff]
        %v2381 = vld [vmem:[%s276 + $0x158] sm:$0xff]
        %v2382 = vld [vmem:[%s276 + $0x160] sm:$0xff]
        %v2383 = vld [vmem:[%s276 + $0x168] sm:$0xff]
        %v2384 = vld [vmem:[%s276 + $0x170] sm:$0xff]
        %v2385 = vld [vmem:[%s276 + $0x178] sm:$0xff]
        %v2386 = vld [vmem:[%s276 + $0x180] sm:$0xff]
        %v2387 = vld [vmem:[%s276 + $0x188] sm:$0xff]
        %v2388 = vld [vmem:[%s276 + $0x190] sm:$0xff]
        %v2389 = vld [vmem:[%s276 + $0x198] sm:$0xff]
        %v2390 = vld [vmem:[%s276 + $0x1a0] sm:$0xff]
        %v2391 = vld [vmem:[%s276 + $0x1a8] sm:$0xff]
        %v2392 = vld [vmem:[%s276 + $0x1b0] sm:$0xff]
        %v2393 = vld [vmem:[%s276 + $0x1b8] sm:$0xff]
        %v2394 = vld [vmem:[%s276 + $0x1c0] sm:$0xff]
        %v2395 = vld [vmem:[%s276 + $0x1c8] sm:$0xff]
        %v2396 = vld [vmem:[%s276 + $0x1d0] sm:$0xff]
        %v2397 = vld [vmem:[%s276 + $0x1d8] sm:$0xff]
        %v2398 = vld [vmem:[%s276 + $0x1e0] sm:$0xff]
        %v2399 = vld [vmem:[%s276 + $0x1e8] sm:$0xff]
        %v2400 = vld [vmem:[%s276 + $0x1f0] sm:$0xff]
        %v2401 = vld [vmem:[%s276 + $0x1f8] sm:$0xff]
        %v2402 = vld [vmem:[%s276 + $0x200] sm:$0xff]
        %v2403 = vld [vmem:[%s276 + $0x208] sm:$0xff]
        %v2404 = vld [vmem:[%s276 + $0x210] sm:$0xff]
        %v2405 = vld [vmem:[%s276 + $0x218] sm:$0xff]
        %v2406 = vld [vmem:[%s276 + $0x220] sm:$0xff]
        %v2407 = vld [vmem:[%s276 + $0x228] sm:$0xff]
        %v2408 = vld [vmem:[%s276 + $0x230] sm:$0xff]
        %v2409 = vld [vmem:[%s276 + $0x238] sm:$0xff]
        %v2410 = vld [vmem:[%s276 + $0x240] sm:$0xff]
        %v2411 = vld [vmem:[%s276 + $0x248] sm:$0xff]
        %v2412 = vld [vmem:[%s276 + $0x250] sm:$0xff]
        %v2413 = vld [vmem:[%s276 + $0x258] sm:$0xff]
        %v2414 = vld [vmem:[%s276 + $0x260] sm:$0xff]
        %v2415 = vld [vmem:[%s276 + $0x268] sm:$0xff]
        %v2416 = vld [vmem:[%s276 + $0x270] sm:$0xff]
        %v2417 = vld [vmem:[%s276 + $0x278] sm:$0xff]
        %v2418 = vld [vmem:[%s276 + $0x280] sm:$0xff]
        %v2419 = vld [vmem:[%s276 + $0x288] sm:$0xff]
        %v2420 = vld [vmem:[%s276 + $0x290] sm:$0xff]
        %v2421 = vld [vmem:[%s276 + $0x298] sm:$0xff]
        %v2422 = vld [vmem:[%s276 + $0x2a0] sm:$0xff]
        %v2423 = vld [vmem:[%s276 + $0x2a8] sm:$0xff]
        %v2424 = vld [vmem:[%s276 + $0x2b0] sm:$0xff]
        %v2425 = vld [vmem:[%s276 + $0x2b8] sm:$0xff]
        %v2426 = vld [vmem:[%s276 + $0x2c0] sm:$0xff]
        %v2427 = vld [vmem:[%s276 + $0x2c8] sm:$0xff]
        %v2428 = vld [vmem:[%s276 + $0x2d0] sm:$0xff]
        %v2429 = vld [vmem:[%s276 + $0x2d8] sm:$0xff]
        %v2430 = vld [vmem:[%s276 + $0x2e0] sm:$0xff]
        %v2431 = vld [vmem:[%s276 + $0x2e8] sm:$0xff]
        %v2432 = vld [vmem:[%s276 + $0x2f0] sm:$0xff]
        %v2433 = vld [vmem:[%s276 + $0x2f8] sm:$0xff]
        %v2434 = vld [vmem:[%s276 + $0x300] sm:$0xff]
        %v2435 = vld [vmem:[%s276 + $0x308] sm:$0xff]
        %v2436 = vld [vmem:[%s276 + $0x310] sm:$0xff]
        %v2437 = vld [vmem:[%s276 + $0x318] sm:$0xff]
        %v2438 = vld [vmem:[%s276 + $0x320] sm:$0xff]
        %v2439 = vld [vmem:[%s276 + $0x328] sm:$0xff]
        %v2440 = vld [vmem:[%s276 + $0x330] sm:$0xff]
        %v2441 = vld [vmem:[%s276 + $0x338] sm:$0xff]
        %v2442 = vld [vmem:[%s276 + $0x340] sm:$0xff]
        %v2443 = vld [vmem:[%s276 + $0x348] sm:$0xff]
        %v2444 = vld [vmem:[%s276 + $0x350] sm:$0xff]
        %v2445 = vld [vmem:[%s276 + $0x358] sm:$0xff]
        %v2446 = vld [vmem:[%s276 + $0x360] sm:$0xff]
        %v2447 = vld [vmem:[%s276 + $0x368] sm:$0xff]
        %v2448 = vld [vmem:[%s276 + $0x370] sm:$0xff]
        %v2449 = vld [vmem:[%s276 + $0x378] sm:$0xff]
        %v2450 = vld [vmem:[%s276 + $0x380] sm:$0xff]
        %v2451 = vld [vmem:[%s276 + $0x388] sm:$0xff]
        %v2452 = vld [vmem:[%s276 + $0x390] sm:$0xff]
        %v2453 = vld [vmem:[%s276 + $0x398] sm:$0xff]
        %v2454 = vld [vmem:[%s276 + $0x3a0] sm:$0xff]
        %v2455 = vld [vmem:[%s276 + $0x3a8] sm:$0xff]
        %v2456 = vld [vmem:[%s276 + $0x3b0] sm:$0xff]
        %v2457 = vld [vmem:[%s276 + $0x3b8] sm:$0xff]
        %v2458 = vld [vmem:[%s276 + $0x3c0] sm:$0xff]
        %v2459 = vld [vmem:[%s276 + $0x3c8] sm:$0xff]
        %v2460 = vld [vmem:[%s276 + $0x3d0] sm:$0xff]
        %v2461 = vld [vmem:[%s276 + $0x3d8] sm:$0xff]
        %v2462 = vld [vmem:[%s276 + $0x3e0] sm:$0xff]
        %v2463 = vld [vmem:[%s276 + $0x3e8] sm:$0xff]
        %v2464 = vld [vmem:[%s276 + $0x3f0] sm:$0xff]
        %v2465 = vld [vmem:[%s276 + $0x3f8] sm:$0xff]
        %v2466 = vld [vmem:[%s276 + $0x400] sm:$0xff]
        %v2467 = vld [vmem:[%s276 + $0x408] sm:$0xff]
        %v2468 = vld [vmem:[%s276 + $0x410] sm:$0xff]
        %v2469 = vld [vmem:[%s276 + $0x418] sm:$0xff]
        %v2470 = vld [vmem:[%s276 + $0x420] sm:$0xff]
        %v2471 = vld [vmem:[%s276 + $0x428] sm:$0xff]
        %v2472 = vld [vmem:[%s276 + $0x430] sm:$0xff]
        %v2473 = vld [vmem:[%s276 + $0x438] sm:$0xff]
        %v2474 = vld [vmem:[%s276 + $0x440] sm:$0xff]
        %v2475 = vld [vmem:[%s276 + $0x448] sm:$0xff]
        %v2476 = vld [vmem:[%s276 + $0x450] sm:$0xff]
        %v2477 = vld [vmem:[%s276 + $0x458] sm:$0xff]
        %v2478 = vld [vmem:[%s276 + $0x460] sm:$0xff]
        %v2479 = vld [vmem:[%s276 + $0x468] sm:$0xff]
        %v2480 = vld [vmem:[%s276 + $0x470] sm:$0xff]
        %v2481 = vld [vmem:[%s276 + $0x478] sm:$0xff]
        %v2482 = vld [vmem:[%s276 + $0x480] sm:$0xff]
        %v2483 = vld [vmem:[%s276 + $0x488] sm:$0xff]
        %v2484 = vld [vmem:[%s276 + $0x490] sm:$0xff]
        %v2485 = vld [vmem:[%s276 + $0x498] sm:$0xff]
        %v2486 = vld [vmem:[%s276 + $0x4a0] sm:$0xff]
        %v2487 = vld [vmem:[%s276 + $0x4a8] sm:$0xff]
        %v2488 = vld [vmem:[%s276 + $0x4b0] sm:$0xff]
        %v2489 = vld [vmem:[%s276 + $0x4b8] sm:$0xff]
        %v2490 = vld [vmem:[%s276 + $0x4c0] sm:$0xff]
        %v2491 = vld [vmem:[%s276 + $0x4c8] sm:$0xff]
        %v2492 = vld [vmem:[%s276 + $0x4d0] sm:$0xff]
        %v2493 = vld [vmem:[%s276 + $0x4d8] sm:$0xff]
        %v2494 = vld [vmem:[%s276 + $0x4e0] sm:$0xff]
        %v2495 = vld [vmem:[%s276 + $0x4e8] sm:$0xff]
        %v2496 = vld [vmem:[%s276 + $0x4f0] sm:$0xff]
        %v2497 = vld [vmem:[%s276 + $0x4f8] sm:$0xff]
        %v2498 = vld [vmem:[%s276 + $0x500] sm:$0xff]
        %v2499 = vld [vmem:[%s276 + $0x508] sm:$0xff]
        %v2500 = vld [vmem:[%s276 + $0x510] sm:$0xff]
        %v2501 = vld [vmem:[%s276 + $0x518] sm:$0xff]
        %v2502 = vld [vmem:[%s276 + $0x520] sm:$0xff]
        %v2503 = vld [vmem:[%s276 + $0x528] sm:$0xff]
        %v2504 = vld [vmem:[%s276 + $0x530] sm:$0xff]
        %v2505 = vld [vmem:[%s276 + $0x538] sm:$0xff]
        %v2506 = vld [vmem:[%s276 + $0x540] sm:$0xff]
        %v2507 = vld [vmem:[%s276 + $0x548] sm:$0xff]
        %v2508 = vld [vmem:[%s276 + $0x550] sm:$0xff]
        %v2509 = vld [vmem:[%s276 + $0x558] sm:$0xff]
        %v2510 = vld [vmem:[%s276 + $0x560] sm:$0xff]
        %v2511 = vld [vmem:[%s276 + $0x568] sm:$0xff]
        %v2512 = vld [vmem:[%s276 + $0x570] sm:$0xff]
        %v2513 = vld [vmem:[%s276 + $0x578] sm:$0xff]
        %v2514 = vld [vmem:[%s276 + $0x580] sm:$0xff]
        %v2515 = vld [vmem:[%s276 + $0x588] sm:$0xff]
        %v2516 = vld [vmem:[%s276 + $0x590] sm:$0xff]
        %v2517 = vld [vmem:[%s276 + $0x598] sm:$0xff]
        %v2518 = vld [vmem:[%s276 + $0x5a0] sm:$0xff]
        %v2519 = vld [vmem:[%s276 + $0x5a8] sm:$0xff]
        %v2520 = vld [vmem:[%s276 + $0x5b0] sm:$0xff]
        %v2521 = vld [vmem:[%s276 + $0x5b8] sm:$0xff]
        %v2522 = vld [vmem:[%s276 + $0x5c0] sm:$0xff]
        %v2523 = vld [vmem:[%s276 + $0x5c8] sm:$0xff]
        %v2524 = vld [vmem:[%s276 + $0x5d0] sm:$0xff]
        %v2525 = vld [vmem:[%s276 + $0x5d8] sm:$0xff]
        %v2526 = vld [vmem:[%s276 + $0x5e0] sm:$0xff]
        %v2527 = vld [vmem:[%s276 + $0x5e8] sm:$0xff]
        %v2528 = vld [vmem:[%s276 + $0x5f0] sm:$0xff]
        %v2529 = vld [vmem:[%s276 + $0x5f8] sm:$0xff]
        %v2530 = vld [vmem:[%s276 + $0x600] sm:$0xff]
        %v2531 = vld [vmem:[%s276 + $0x608] sm:$0xff]
        %v2532 = vld [vmem:[%s276 + $0x610] sm:$0xff]
        %v2533 = vld [vmem:[%s276 + $0x618] sm:$0xff]
        %v2534 = vld [vmem:[%s276 + $0x620] sm:$0xff]
        %v2535 = vld [vmem:[%s276 + $0x628] sm:$0xff]
        %v2536 = vld [vmem:[%s276 + $0x630] sm:$0xff]
        %v2537 = vld [vmem:[%s276 + $0x638] sm:$0xff]
        %v2538 = vld [vmem:[%s276 + $0x640] sm:$0xff]
        %v2539 = vld [vmem:[%s276 + $0x648] sm:$0xff]
        %v2540 = vld [vmem:[%s276 + $0x650] sm:$0xff]
        %v2541 = vld [vmem:[%s276 + $0x658] sm:$0xff]
        %v2542 = vld [vmem:[%s276 + $0x660] sm:$0xff]
        %v2543 = vld [vmem:[%s276 + $0x668] sm:$0xff]
        %v2544 = vld [vmem:[%s276 + $0x670] sm:$0xff]
        %v2545 = vld [vmem:[%s276 + $0x678] sm:$0xff]
        %v2546 = vld [vmem:[%s276 + $0x680] sm:$0xff]
        %v2547 = vld [vmem:[%s276 + $0x688] sm:$0xff]
        %v2548 = vld [vmem:[%s276 + $0x690] sm:$0xff]
        %v2549 = vld [vmem:[%s276 + $0x698] sm:$0xff]
        %v2550 = vld [vmem:[%s276 + $0x6a0] sm:$0xff]
        %v2551 = vld [vmem:[%s276 + $0x6a8] sm:$0xff]
        %v2552 = vld [vmem:[%s276 + $0x6b0] sm:$0xff]
        %v2553 = vld [vmem:[%s276 + $0x6b8] sm:$0xff]
        %v2554 = vld [vmem:[%s276 + $0x6c0] sm:$0xff]
        %v2555 = vld [vmem:[%s276 + $0x6c8] sm:$0xff]
        %v2556 = vld [vmem:[%s276 + $0x6d0] sm:$0xff]
        %v2557 = vld [vmem:[%s276 + $0x6d8] sm:$0xff]
        %v2558 = vld [vmem:[%s276 + $0x6e0] sm:$0xff]
        %v2559 = vld [vmem:[%s276 + $0x6e8] sm:$0xff]
        %v2560 = vld [vmem:[%s276 + $0x6f0] sm:$0xff]
        %v2561 = vld [vmem:[%s276 + $0x6f8] sm:$0xff]
        %v2562 = vld [vmem:[%s276 + $0x700] sm:$0xff]
        %v2563 = vld [vmem:[%s276 + $0x708] sm:$0xff]
        %v2564 = vld [vmem:[%s276 + $0x710] sm:$0xff]
        %v2565 = vld [vmem:[%s276 + $0x718] sm:$0xff]
        %v2566 = vld [vmem:[%s276 + $0x720] sm:$0xff]
        %v2567 = vld [vmem:[%s276 + $0x728] sm:$0xff]
        %v2568 = vld [vmem:[%s276 + $0x730] sm:$0xff]
        %v2569 = vld [vmem:[%s276 + $0x738] sm:$0xff]
        %v2570 = vld [vmem:[%s276 + $0x740] sm:$0xff]
        %v2571 = vld [vmem:[%s276 + $0x748] sm:$0xff]
        %v2572 = vld [vmem:[%s276 + $0x750] sm:$0xff]
        %v2573 = vld [vmem:[%s276 + $0x758] sm:$0xff]
        %v2574 = vld [vmem:[%s276 + $0x760] sm:$0xff]
        %v2575 = vld [vmem:[%s276 + $0x768] sm:$0xff]
        %v2576 = vld [vmem:[%s276 + $0x770] sm:$0xff]
        %v2577 = vld [vmem:[%s276 + $0x778] sm:$0xff]
        %v2578 = vld [vmem:[%s276 + $0x780] sm:$0xff]
        %v2579 = vld [vmem:[%s276 + $0x788] sm:$0xff]
        %v2580 = vld [vmem:[%s276 + $0x790] sm:$0xff]
        %v2581 = vld [vmem:[%s276 + $0x798] sm:$0xff]
        %v2582 = vld [vmem:[%s276 + $0x7a0] sm:$0xff]
        %v2583 = vld [vmem:[%s276 + $0x7a8] sm:$0xff]
        %v2584 = vld [vmem:[%s276 + $0x7b0] sm:$0xff]
        %v2585 = vld [vmem:[%s276 + $0x7b8] sm:$0xff]
        %v2586 = vld [vmem:[%s276 + $0x7c0] sm:$0xff]
        %v2587 = vld [vmem:[%s276 + $0x7c8] sm:$0xff]
        %v2588 = vld [vmem:[%s276 + $0x7d0] sm:$0xff]
        %v2589 = vld [vmem:[%s276 + $0x7d8] sm:$0xff]
        %v2590 = vld [vmem:[%s276 + $0x7e0] sm:$0xff]
        %v2591 = vld [vmem:[%s276 + $0x7e8] sm:$0xff]
        %v2592 = vld [vmem:[%s276 + $0x7f0] sm:$0xff]
        %v2593 = vld [vmem:[%s276 + $0x7f8] sm:$0xff]
        %v2594 = vld [vmem:[%s276 + $0x800] sm:$0xff]
        %v2595 = vld [vmem:[%s276 + $0x808] sm:$0xff]
        %v2596 = vld [vmem:[%s276 + $0x810] sm:$0xff]
        %v2597 = vld [vmem:[%s276 + $0x818] sm:$0xff]
        %v2598 = vld [vmem:[%s276 + $0x820] sm:$0xff]
        %v2599 = vld [vmem:[%s276 + $0x828] sm:$0xff]
        %v2600 = vld [vmem:[%s276 + $0x830] sm:$0xff]
        %v2601 = vld [vmem:[%s276 + $0x838] sm:$0xff]
        %v2602 = vld [vmem:[%s276 + $0x840] sm:$0xff]
        %v2603 = vld [vmem:[%s276 + $0x848] sm:$0xff]
        %v2604 = vld [vmem:[%s276 + $0x850] sm:$0xff]
        %v2605 = vld [vmem:[%s276 + $0x858] sm:$0xff]
        %v2606 = vld [vmem:[%s276 + $0x860] sm:$0xff]
        %v2607 = vld [vmem:[%s276 + $0x868] sm:$0xff]
        %v2608 = vld [vmem:[%s276 + $0x870] sm:$0xff]
        %v2609 = vld [vmem:[%s276 + $0x878] sm:$0xff]
        %v2610 = vld [vmem:[%s276 + $0x880] sm:$0xff]
        %v2611 = vld [vmem:[%s276 + $0x888] sm:$0xff]
        %v2612 = vld [vmem:[%s276 + $0x890] sm:$0xff]
        %v2613 = vld [vmem:[%s276 + $0x898] sm:$0xff]
        %v2614 = vld [vmem:[%s276 + $0x8a0] sm:$0xff]
        %v2615 = vld [vmem:[%s276 + $0x8a8] sm:$0xff]
        %v2616 = vld [vmem:[%s276 + $0x8b0] sm:$0xff]
        %v2617 = vld [vmem:[%s276 + $0x8b8] sm:$0xff]
        %v2618 = vld [vmem:[%s276 + $0x8c0] sm:$0xff]
        %v2619 = vld [vmem:[%s276 + $0x8c8] sm:$0xff]
        %v2620 = vld [vmem:[%s276 + $0x8d0] sm:$0xff]
        %v2621 = vld [vmem:[%s276 + $0x8d8] sm:$0xff]
        %v2622 = vld [vmem:[%s276 + $0x8e0] sm:$0xff]
        %v2623 = vld [vmem:[%s276 + $0x8e8] sm:$0xff]
        %v2624 = vld [vmem:[%s276 + $0x8f0] sm:$0xff]
        %v2625 = vld [vmem:[%s276 + $0x8f8] sm:$0xff]
        %v2626 = vld [vmem:[%s276 + $0x900] sm:$0xff]
        %v2627 = vld [vmem:[%s276 + $0x908] sm:$0xff]
        %v2628 = vld [vmem:[%s276 + $0x910] sm:$0xff]
        %v2629 = vld [vmem:[%s276 + $0x918] sm:$0xff]
        %v2630 = vld [vmem:[%s276 + $0x920] sm:$0xff]
        %v2631 = vld [vmem:[%s276 + $0x928] sm:$0xff]
        %v2632 = vld [vmem:[%s276 + $0x930] sm:$0xff]
        %v2633 = vld [vmem:[%s276 + $0x938] sm:$0xff]
        %v2634 = vld [vmem:[%s276 + $0x940] sm:$0xff]
        %v2635 = vld [vmem:[%s276 + $0x948] sm:$0xff]
        %v2636 = vld [vmem:[%s276 + $0x950] sm:$0xff]
        %v2637 = vld [vmem:[%s276 + $0x958] sm:$0xff]
        %v2638 = vld [vmem:[%s276 + $0x960] sm:$0xff]
        %v2639 = vld [vmem:[%s276 + $0x968] sm:$0xff]
        %v2640 = vld [vmem:[%s276 + $0x970] sm:$0xff]
        %v2641 = vld [vmem:[%s276 + $0x978] sm:$0xff]
        %v2642 = vld [vmem:[%s276 + $0x980] sm:$0xff]
        %v2643 = vld [vmem:[%s276 + $0x988] sm:$0xff]
        %v2644 = vld [vmem:[%s276 + $0x990] sm:$0xff]
        %v2645 = vld [vmem:[%s276 + $0x998] sm:$0xff]
        %v2646 = vld [vmem:[%s276 + $0x9a0] sm:$0xff]
        %v2647 = vld [vmem:[%s276 + $0x9a8] sm:$0xff]
        %v2648 = vld [vmem:[%s276 + $0x9b0] sm:$0xff]
        %v2649 = vld [vmem:[%s276 + $0x9b8] sm:$0xff]
        %v2650 = vld [vmem:[%s276 + $0x9c0] sm:$0xff]
        %v2651 = vld [vmem:[%s276 + $0x9c8] sm:$0xff]
        %v2652 = vld [vmem:[%s276 + $0x9d0] sm:$0xff]
        %v2653 = vld [vmem:[%s276 + $0x9d8] sm:$0xff]
        %v2654 = vld [vmem:[%s276 + $0x9e0] sm:$0xff]
        %v2655 = vld [vmem:[%s276 + $0x9e8] sm:$0xff]
        %v2656 = vld [vmem:[%s276 + $0x9f0] sm:$0xff]
        %v2657 = vld [vmem:[%s276 + $0x9f8] sm:$0xff]
        %v2658 = vld [vmem:[%s276 + $0xa00] sm:$0xff]
        %v2659 = vld [vmem:[%s276 + $0xa08] sm:$0xff]
        %v2660 = vld [vmem:[%s276 + $0xa10] sm:$0xff]
        %v2661 = vld [vmem:[%s276 + $0xa18] sm:$0xff]
        %v2662 = vld [vmem:[%s276 + $0xa20] sm:$0xff]
        %v2663 = vld [vmem:[%s276 + $0xa28] sm:$0xff]
        %v2664 = vld [vmem:[%s276 + $0xa30] sm:$0xff]
        %v2665 = vld [vmem:[%s276 + $0xa38] sm:$0xff]
        %v2666 = vld [vmem:[%s276 + $0xa40] sm:$0xff]
        %v2667 = vld [vmem:[%s276 + $0xa48] sm:$0xff]
        %v2668 = vld [vmem:[%s276 + $0xa50] sm:$0xff]
        %v2669 = vld [vmem:[%s276 + $0xa58] sm:$0xff]
        %v2670 = vld [vmem:[%s276 + $0xa60] sm:$0xff]
        %v2671 = vld [vmem:[%s276 + $0xa68] sm:$0xff]
        %v2672 = vld [vmem:[%s276 + $0xa70] sm:$0xff]
        %v2673 = vld [vmem:[%s276 + $0xa78] sm:$0xff]
        %v2674 = vld [vmem:[%s276 + $0xa80] sm:$0xff]
        %v2675 = vld [vmem:[%s276 + $0xa88] sm:$0xff]
        %v2676 = vld [vmem:[%s276 + $0xa90] sm:$0xff]
        %v2677 = vld [vmem:[%s276 + $0xa98] sm:$0xff]
        %v2678 = vld [vmem:[%s276 + $0xaa0] sm:$0xff]
        %v2679 = vld [vmem:[%s276 + $0xaa8] sm:$0xff]
        %v2680 = vld [vmem:[%s276 + $0xab0] sm:$0xff]
        %v2681 = vld [vmem:[%s276 + $0xab8] sm:$0xff]
        %v2682 = vld [vmem:[%s276 + $0xac0] sm:$0xff]
        %v2683 = vld [vmem:[%s276 + $0xac8] sm:$0xff]
        %v2684 = vld [vmem:[%s276 + $0xad0] sm:$0xff]
        %v2685 = vld [vmem:[%s276 + $0xad8] sm:$0xff]
        %v2686 = vld [vmem:[%s276 + $0xae0] sm:$0xff]
        %v2687 = vld [vmem:[%s276 + $0xae8] sm:$0xff]
        %v2688 = vld [vmem:[%s276 + $0xaf0] sm:$0xff]
        %v2689 = vld [vmem:[%s276 + $0xaf8] sm:$0xff]
        %v2690 = vld [vmem:[%s276 + $0xb00] sm:$0xff]
        %v2691 = vld [vmem:[%s276 + $0xb08] sm:$0xff]
        %v2692 = vld [vmem:[%s276 + $0xb10] sm:$0xff]
        %v2693 = vld [vmem:[%s276 + $0xb18] sm:$0xff]
        %v2694 = vld [vmem:[%s276 + $0xb20] sm:$0xff]
        %v2695 = vld [vmem:[%s276 + $0xb28] sm:$0xff]
        %v2696 = vld [vmem:[%s276 + $0xb30] sm:$0xff]
        %v2697 = vld [vmem:[%s276 + $0xb38] sm:$0xff]
        %v2698 = vld [vmem:[%s276 + $0xb40] sm:$0xff]
        %v2699 = vld [vmem:[%s276 + $0xb48] sm:$0xff]
        %v2700 = vld [vmem:[%s276 + $0xb50] sm:$0xff]
        %v2701 = vld [vmem:[%s276 + $0xb58] sm:$0xff]
        %v2702 = vld [vmem:[%s276 + $0xb60] sm:$0xff]
        %v2703 = vld [vmem:[%s276 + $0xb68] sm:$0xff]
        %v2704 = vld [vmem:[%s276 + $0xb70] sm:$0xff]
        %v2705 = vld [vmem:[%s276 + $0xb78] sm:$0xff]
        %v2706 = vld [vmem:[%s276 + $0xb80] sm:$0xff]
        %v2707 = vld [vmem:[%s276 + $0xb88] sm:$0xff]
        %v2708 = vld [vmem:[%s276 + $0xb90] sm:$0xff]
        %v2709 = vld [vmem:[%s276 + $0xb98] sm:$0xff]
        %v2710 = vld [vmem:[%s276 + $0xba0] sm:$0xff]
        %v2711 = vld [vmem:[%s276 + $0xba8] sm:$0xff]
        %v2712 = vld [vmem:[%s276 + $0xbb0] sm:$0xff]
        %v2713 = vld [vmem:[%s276 + $0xbb8] sm:$0xff]
        %v2714 = vld [vmem:[%s276 + $0xbc0] sm:$0xff]
        %v2715 = vld [vmem:[%s276 + $0xbc8] sm:$0xff]
        %v2716 = vld [vmem:[%s276 + $0xbd0] sm:$0xff]
        %v2717 = vld [vmem:[%s276 + $0xbd8] sm:$0xff]
        %v2718 = vld [vmem:[%s276 + $0xbe0] sm:$0xff]
        %v2719 = vld [vmem:[%s276 + $0xbe8] sm:$0xff]
        %v2720 = vld [vmem:[%s276 + $0xbf0] sm:$0xff]
        %v2721 = vld [vmem:[%s276 + $0xbf8] sm:$0xff]
        %v2722 = vld [vmem:[%s276 + $0xc00] sm:$0xff]
        %v2723 = vld [vmem:[%s276 + $0xc08] sm:$0xff]
        %v2724 = vld [vmem:[%s276 + $0xc10] sm:$0xff]
        %v2725 = vld [vmem:[%s276 + $0xc18] sm:$0xff]
        %v2726 = vld [vmem:[%s276 + $0xc20] sm:$0xff]
        %v2727 = vld [vmem:[%s276 + $0xc28] sm:$0xff]
        %v2728 = vld [vmem:[%s276 + $0xc30] sm:$0xff]
        %v2729 = vld [vmem:[%s276 + $0xc38] sm:$0xff]
        %v2730 = vld [vmem:[%s276 + $0xc40] sm:$0xff]
        %v2731 = vld [vmem:[%s276 + $0xc48] sm:$0xff]
        %v2732 = vld [vmem:[%s276 + $0xc50] sm:$0xff]
        %v2733 = vld [vmem:[%s276 + $0xc58] sm:$0xff]
        %v2734 = vld [vmem:[%s276 + $0xc60] sm:$0xff]
        %v2735 = vld [vmem:[%s276 + $0xc68] sm:$0xff]
        %v2736 = vld [vmem:[%s276 + $0xc70] sm:$0xff]
        %v2737 = vld [vmem:[%s276 + $0xc78] sm:$0xff]
        %v2738 = vld [vmem:[%s276 + $0xc80] sm:$0xff]
        %v2739 = vld [vmem:[%s276 + $0xc88] sm:$0xff]
        %v2740 = vld [vmem:[%s276 + $0xc90] sm:$0xff]
        %v2741 = vld [vmem:[%s276 + $0xc98] sm:$0xff]
        %v2742 = vld [vmem:[%s276 + $0xca0] sm:$0xff]
        %v2743 = vld [vmem:[%s276 + $0xca8] sm:$0xff]
        %v2744 = vld [vmem:[%s276 + $0xcb0] sm:$0xff]
        %v2745 = vld [vmem:[%s276 + $0xcb8] sm:$0xff]
        %v2746 = vld [vmem:[%s276 + $0xcc0] sm:$0xff]
        %v2747 = vld [vmem:[%s276 + $0xcc8] sm:$0xff]
        %v2748 = vld [vmem:[%s276 + $0xcd0] sm:$0xff]
        %v2749 = vld [vmem:[%s276 + $0xcd8] sm:$0xff]
        %v2750 = vld [vmem:[%s276 + $0xce0] sm:$0xff]
        %v2751 = vld [vmem:[%s276 + $0xce8] sm:$0xff]
        %v2752 = vld [vmem:[%s276 + $0xcf0] sm:$0xff]
        %v2753 = vld [vmem:[%s276 + $0xcf8] sm:$0xff]
        %v2754 = vld [vmem:[%s276 + $0xd00] sm:$0xff]
        %v2755 = vld [vmem:[%s276 + $0xd08] sm:$0xff]
        %v2756 = vld [vmem:[%s276 + $0xd10] sm:$0xff]
        %v2757 = vld [vmem:[%s276 + $0xd18] sm:$0xff]
        %v2758 = vld [vmem:[%s276 + $0xd20] sm:$0xff]
        %v2759 = vld [vmem:[%s276 + $0xd28] sm:$0xff]
        %v2760 = vld [vmem:[%s276 + $0xd30] sm:$0xff]
        %v2761 = vld [vmem:[%s276 + $0xd38] sm:$0xff]
        %v2762 = vld [vmem:[%s276 + $0xd40] sm:$0xff]
        %v2763 = vld [vmem:[%s276 + $0xd48] sm:$0xff]
        %v2764 = vld [vmem:[%s276 + $0xd50] sm:$0xff]
        %v2765 = vld [vmem:[%s276 + $0xd58] sm:$0xff]
        %v2766 = vld [vmem:[%s276 + $0xd60] sm:$0xff]
        %v2767 = vld [vmem:[%s276 + $0xd68] sm:$0xff]
        %v2768 = vld [vmem:[%s276 + $0xd70] sm:$0xff]
        %v2769 = vld [vmem:[%s276 + $0xd78] sm:$0xff]
        %v2770 = vld [vmem:[%s276 + $0xd80] sm:$0xff]
        %v2771 = vld [vmem:[%s276 + $0xd88] sm:$0xff]
        %v2772 = vld [vmem:[%s276 + $0xd90] sm:$0xff]
        %v2773 = vld [vmem:[%s276 + $0xd98] sm:$0xff]
        %v2774 = vld [vmem:[%s276 + $0xda0] sm:$0xff]
        %v2775 = vld [vmem:[%s276 + $0xda8] sm:$0xff]
        %v2776 = vld [vmem:[%s276 + $0xdb0] sm:$0xff]
        %v2777 = vld [vmem:[%s276 + $0xdb8] sm:$0xff]
        %v2778 = vld [vmem:[%s276 + $0xdc0] sm:$0xff]
        %v2779 = vld [vmem:[%s276 + $0xdc8] sm:$0xff]
        %v2780 = vld [vmem:[%s276 + $0xdd0] sm:$0xff]
        %v2781 = vld [vmem:[%s276 + $0xdd8] sm:$0xff]
        %v2782 = vld [vmem:[%s276 + $0xde0] sm:$0xff]
        %v2783 = vld [vmem:[%s276 + $0xde8] sm:$0xff]
        %v2784 = vld [vmem:[%s276 + $0xdf0] sm:$0xff]
        %v2785 = vld [vmem:[%s276 + $0xdf8] sm:$0xff]
        %v2786 = vld [vmem:[%s276 + $0xe00] sm:$0xff]
        %v2787 = vld [vmem:[%s276 + $0xe08] sm:$0xff]
        %v2788 = vld [vmem:[%s276 + $0xe10] sm:$0xff]
        %v2789 = vld [vmem:[%s276 + $0xe18] sm:$0xff]
        %v2790 = vld [vmem:[%s276 + $0xe20] sm:$0xff]
        %v2791 = vld [vmem:[%s276 + $0xe28] sm:$0xff]
        %v2792 = vld [vmem:[%s276 + $0xe30] sm:$0xff]
        %v2793 = vld [vmem:[%s276 + $0xe38] sm:$0xff]
        %v2794 = vld [vmem:[%s276 + $0xe40] sm:$0xff]
        %v2795 = vld [vmem:[%s276 + $0xe48] sm:$0xff]
        %v2796 = vld [vmem:[%s276 + $0xe50] sm:$0xff]
        %v2797 = vld [vmem:[%s276 + $0xe58] sm:$0xff]
        %v2798 = vld [vmem:[%s276 + $0xe60] sm:$0xff]
        %v2799 = vld [vmem:[%s276 + $0xe68] sm:$0xff]
        %v2800 = vld [vmem:[%s276 + $0xe70] sm:$0xff]
        %v2801 = vld [vmem:[%s276 + $0xe78] sm:$0xff]
        %v2802 = vld [vmem:[%s276 + $0xe80] sm:$0xff]
        %v2803 = vld [vmem:[%s276 + $0xe88] sm:$0xff]
        %v2804 = vld [vmem:[%s276 + $0xe90] sm:$0xff]
        %v2805 = vld [vmem:[%s276 + $0xe98] sm:$0xff]
        %v2806 = vld [vmem:[%s276 + $0xea0] sm:$0xff]
        %v2807 = vld [vmem:[%s276 + $0xea8] sm:$0xff]
        %v2808 = vld [vmem:[%s276 + $0xeb0] sm:$0xff]
        %v2809 = vld [vmem:[%s276 + $0xeb8] sm:$0xff]
        %v2810 = vld [vmem:[%s276 + $0xec0] sm:$0xff]
        %v2811 = vld [vmem:[%s276 + $0xec8] sm:$0xff]
        %v2812 = vld [vmem:[%s276 + $0xed0] sm:$0xff]
        %v2813 = vld [vmem:[%s276 + $0xed8] sm:$0xff]
        %v2814 = vld [vmem:[%s276 + $0xee0] sm:$0xff]
        %v2815 = vld [vmem:[%s276 + $0xee8] sm:$0xff]
        %v2816 = vld [vmem:[%s276 + $0xef0] sm:$0xff]
        %v2817 = vld [vmem:[%s276 + $0xef8] sm:$0xff]
        %v2818 = vld [vmem:[%s276 + $0xf00] sm:$0xff]
        %v2819 = vld [vmem:[%s276 + $0xf08] sm:$0xff]
        %v2820 = vld [vmem:[%s276 + $0xf10] sm:$0xff]
        %v2821 = vld [vmem:[%s276 + $0xf18] sm:$0xff]
        %v2822 = vld [vmem:[%s276 + $0xf20] sm:$0xff]
        %v2823 = vld [vmem:[%s276 + $0xf28] sm:$0xff]
        %v2824 = vld [vmem:[%s276 + $0xf30] sm:$0xff]
        %v2825 = vld [vmem:[%s276 + $0xf38] sm:$0xff]
        %v2826 = vld [vmem:[%s276 + $0xf40] sm:$0xff]
        %v2827 = vld [vmem:[%s276 + $0xf48] sm:$0xff]
        %v2828 = vld [vmem:[%s276 + $0xf50] sm:$0xff]
        %v2829 = vld [vmem:[%s276 + $0xf58] sm:$0xff]
        %v2830 = vld [vmem:[%s276 + $0xf60] sm:$0xff]
        %v2831 = vld [vmem:[%s276 + $0xf68] sm:$0xff]
        %v2832 = vld [vmem:[%s276 + $0xf70] sm:$0xff]
        %v2833 = vld [vmem:[%s276 + $0xf78] sm:$0xff]
        %v2834 = vld [vmem:[%s276 + $0xf80] sm:$0xff]
        %v2835 = vld [vmem:[%s276 + $0xf88] sm:$0xff]
        %v2836 = vld [vmem:[%s276 + $0xf90] sm:$0xff]
        %v2837 = vld [vmem:[%s276 + $0xf98] sm:$0xff]
        %v2838 = vld [vmem:[%s276 + $0xfa0] sm:$0xff]
        %v2839 = vld [vmem:[%s276 + $0xfa8] sm:$0xff]
        %v2840 = vld [vmem:[%s276 + $0xfb0] sm:$0xff]
        %v2841 = vld [vmem:[%s276 + $0xfb8] sm:$0xff]
        %v2842 = vld [vmem:[%s276 + $0xfc0] sm:$0xff]
        %v2843 = vld [vmem:[%s276 + $0xfc8] sm:$0xff]
        %v2844 = vld [vmem:[%s276 + $0xfd0] sm:$0xff]
        %v2845 = vld [vmem:[%s276 + $0xfd8] sm:$0xff]
        %v2846 = vld [vmem:[%s276 + $0xfe0] sm:$0xff]
        %v2847 = vld [vmem:[%s276 + $0xfe8] sm:$0xff]
        %v2848 = vld [vmem:[%s276 + $0xff0] sm:$0xff]
        %v2849 = vld [vmem:[%s276 + $0xff8] sm:$0xff]
        %s2850 = smul.u32 %s23, 8
        %s2851 = scalar_lea.vmem [#allocation8], %s2850
        %v2852 = vld [vmem:[%s2851] sm:$0xff]
        %v2854 = vperm.slane %v2852, 0
        %v2855 = vperm.slane %v2852, 1
        %v2856 = vperm.slane %v2852, 2
        %v2857 = vperm.slane %v2852, 3
        %v2858 = vperm.slane %v2852, 4
        %v2859 = vperm.slane %v2852, 5
        %v2860 = vperm.slane %v2852, 6
        %v2861 = vperm.slane %v2852, 7
        %v3382 = vunpack.c.l.b16 %v2338
        %v3383 = vunpack.c.h.b16 %v2338
        %v3384 = vunpack.c.l.b16 %v2339
        %v3385 = vunpack.c.h.b16 %v2339
        %v3386 = vunpack.c.l.b16 %v2340
        %v3387 = vunpack.c.h.b16 %v2340
        %v3388 = vunpack.c.l.b16 %v2341
        %v3389 = vunpack.c.h.b16 %v2341
        %v3390 = vunpack.c.l.b16 %v2342
        %v3391 = vunpack.c.h.b16 %v2342
        %v3392 = vunpack.c.l.b16 %v2343
        %v3393 = vunpack.c.h.b16 %v2343
        %v3394 = vunpack.c.l.b16 %v2344
        %v3395 = vunpack.c.h.b16 %v2344
        %v3396 = vunpack.c.l.b16 %v2345
        %v3397 = vunpack.c.h.b16 %v2345
        %v3398 = vunpack.c.l.b16 %v2346
        %v3399 = vunpack.c.h.b16 %v2346
        %v3400 = vunpack.c.l.b16 %v2347
        %v3401 = vunpack.c.h.b16 %v2347
        %v3402 = vunpack.c.l.b16 %v2348
        %v3403 = vunpack.c.h.b16 %v2348
        %v3404 = vunpack.c.l.b16 %v2349
        %v3405 = vunpack.c.h.b16 %v2349
        %v3406 = vunpack.c.l.b16 %v2350
        %v3407 = vunpack.c.h.b16 %v2350
        %v3408 = vunpack.c.l.b16 %v2351
        %v3409 = vunpack.c.h.b16 %v2351
        %v3410 = vunpack.c.l.b16 %v2352
        %v3411 = vunpack.c.h.b16 %v2352
        %v3412 = vunpack.c.l.b16 %v2353
        %v3413 = vunpack.c.h.b16 %v2353
        %v3414 = vunpack.c.l.b16 %v2354
        %v3415 = vunpack.c.h.b16 %v2354
        %v3416 = vunpack.c.l.b16 %v2355
        %v3417 = vunpack.c.h.b16 %v2355
        %v3418 = vunpack.c.l.b16 %v2356
        %v3419 = vunpack.c.h.b16 %v2356
        %v3420 = vunpack.c.l.b16 %v2357
        %v3421 = vunpack.c.h.b16 %v2357
        %v3422 = vunpack.c.l.b16 %v2358
        %v3423 = vunpack.c.h.b16 %v2358
        %v3424 = vunpack.c.l.b16 %v2359
        %v3425 = vunpack.c.h.b16 %v2359
        %v3426 = vunpack.c.l.b16 %v2360
        %v3427 = vunpack.c.h.b16 %v2360
        %v3428 = vunpack.c.l.b16 %v2361
        %v3429 = vunpack.c.h.b16 %v2361
        %v3430 = vunpack.c.l.b16 %v2362
        %v3431 = vunpack.c.h.b16 %v2362
        %v3432 = vunpack.c.l.b16 %v2363
        %v3433 = vunpack.c.h.b16 %v2363
        %v3434 = vunpack.c.l.b16 %v2364
        %v3435 = vunpack.c.h.b16 %v2364
        %v3436 = vunpack.c.l.b16 %v2365
        %v3437 = vunpack.c.h.b16 %v2365
        %v3438 = vunpack.c.l.b16 %v2366
        %v3439 = vunpack.c.h.b16 %v2366
        %v3440 = vunpack.c.l.b16 %v2367
        %v3441 = vunpack.c.h.b16 %v2367
        %v3442 = vunpack.c.l.b16 %v2368
        %v3443 = vunpack.c.h.b16 %v2368
        %v3444 = vunpack.c.l.b16 %v2369
        %v3445 = vunpack.c.h.b16 %v2369
        %v3446 = vunpack.c.l.b16 %v2370
        %v3447 = vunpack.c.h.b16 %v2370
        %v3448 = vunpack.c.l.b16 %v2371
        %v3449 = vunpack.c.h.b16 %v2371
        %v3450 = vunpack.c.l.b16 %v2372
        %v3451 = vunpack.c.h.b16 %v2372
        %v3452 = vunpack.c.l.b16 %v2373
        %v3453 = vunpack.c.h.b16 %v2373
        %v3454 = vunpack.c.l.b16 %v2374
        %v3455 = vunpack.c.h.b16 %v2374
        %v3456 = vunpack.c.l.b16 %v2375
        %v3457 = vunpack.c.h.b16 %v2375
        %v3458 = vunpack.c.l.b16 %v2376
        %v3459 = vunpack.c.h.b16 %v2376
        %v3460 = vunpack.c.l.b16 %v2377
        %v3461 = vunpack.c.h.b16 %v2377
        %v3462 = vunpack.c.l.b16 %v2378
        %v3463 = vunpack.c.h.b16 %v2378
        %v3464 = vunpack.c.l.b16 %v2379
        %v3465 = vunpack.c.h.b16 %v2379
        %v3466 = vunpack.c.l.b16 %v2380
        %v3467 = vunpack.c.h.b16 %v2380
        %v3468 = vunpack.c.l.b16 %v2381
        %v3469 = vunpack.c.h.b16 %v2381
        %v3470 = vunpack.c.l.b16 %v2382
        %v3471 = vunpack.c.h.b16 %v2382
        %v3472 = vunpack.c.l.b16 %v2383
        %v3473 = vunpack.c.h.b16 %v2383
        %v3474 = vunpack.c.l.b16 %v2384
        %v3475 = vunpack.c.h.b16 %v2384
        %v3476 = vunpack.c.l.b16 %v2385
        %v3477 = vunpack.c.h.b16 %v2385
        %v3478 = vunpack.c.l.b16 %v2386
        %v3479 = vunpack.c.h.b16 %v2386
        %v3480 = vunpack.c.l.b16 %v2387
        %v3481 = vunpack.c.h.b16 %v2387
        %v3482 = vunpack.c.l.b16 %v2388
        %v3483 = vunpack.c.h.b16 %v2388
        %v3484 = vunpack.c.l.b16 %v2389
        %v3485 = vunpack.c.h.b16 %v2389
        %v3486 = vunpack.c.l.b16 %v2390
        %v3487 = vunpack.c.h.b16 %v2390
        %v3488 = vunpack.c.l.b16 %v2391
        %v3489 = vunpack.c.h.b16 %v2391
        %v3490 = vunpack.c.l.b16 %v2392
        %v3491 = vunpack.c.h.b16 %v2392
        %v3492 = vunpack.c.l.b16 %v2393
        %v3493 = vunpack.c.h.b16 %v2393
        %v3494 = vunpack.c.l.b16 %v2394
        %v3495 = vunpack.c.h.b16 %v2394
        %v3496 = vunpack.c.l.b16 %v2395
        %v3497 = vunpack.c.h.b16 %v2395
        %v3498 = vunpack.c.l.b16 %v2396
        %v3499 = vunpack.c.h.b16 %v2396
        %v3500 = vunpack.c.l.b16 %v2397
        %v3501 = vunpack.c.h.b16 %v2397
        %v3502 = vunpack.c.l.b16 %v2398
        %v3503 = vunpack.c.h.b16 %v2398
        %v3504 = vunpack.c.l.b16 %v2399
        %v3505 = vunpack.c.h.b16 %v2399
        %v3506 = vunpack.c.l.b16 %v2400
        %v3507 = vunpack.c.h.b16 %v2400
        %v3508 = vunpack.c.l.b16 %v2401
        %v3509 = vunpack.c.h.b16 %v2401
        %v3510 = vunpack.c.l.b16 %v2402
        %v3511 = vunpack.c.h.b16 %v2402
        %v3512 = vunpack.c.l.b16 %v2403
        %v3513 = vunpack.c.h.b16 %v2403
        %v3514 = vunpack.c.l.b16 %v2404
        %v3515 = vunpack.c.h.b16 %v2404
        %v3516 = vunpack.c.l.b16 %v2405
        %v3517 = vunpack.c.h.b16 %v2405
        %v3518 = vunpack.c.l.b16 %v2406
        %v3519 = vunpack.c.h.b16 %v2406
        %v3520 = vunpack.c.l.b16 %v2407
        %v3521 = vunpack.c.h.b16 %v2407
        %v3522 = vunpack.c.l.b16 %v2408
        %v3523 = vunpack.c.h.b16 %v2408
        %v3524 = vunpack.c.l.b16 %v2409
        %v3525 = vunpack.c.h.b16 %v2409
        %v3526 = vunpack.c.l.b16 %v2410
        %v3527 = vunpack.c.h.b16 %v2410
        %v3528 = vunpack.c.l.b16 %v2411
        %v3529 = vunpack.c.h.b16 %v2411
        %v3530 = vunpack.c.l.b16 %v2412
        %v3531 = vunpack.c.h.b16 %v2412
        %v3532 = vunpack.c.l.b16 %v2413
        %v3533 = vunpack.c.h.b16 %v2413
        %v3534 = vunpack.c.l.b16 %v2414
        %v3535 = vunpack.c.h.b16 %v2414
        %v3536 = vunpack.c.l.b16 %v2415
        %v3537 = vunpack.c.h.b16 %v2415
        %v3538 = vunpack.c.l.b16 %v2416
        %v3539 = vunpack.c.h.b16 %v2416
        %v3540 = vunpack.c.l.b16 %v2417
        %v3541 = vunpack.c.h.b16 %v2417
        %v3542 = vunpack.c.l.b16 %v2418
        %v3543 = vunpack.c.h.b16 %v2418
        %v3544 = vunpack.c.l.b16 %v2419
        %v3545 = vunpack.c.h.b16 %v2419
        %v3546 = vunpack.c.l.b16 %v2420
        %v3547 = vunpack.c.h.b16 %v2420
        %v3548 = vunpack.c.l.b16 %v2421
        %v3549 = vunpack.c.h.b16 %v2421
        %v3550 = vunpack.c.l.b16 %v2422
        %v3551 = vunpack.c.h.b16 %v2422
        %v3552 = vunpack.c.l.b16 %v2423
        %v3553 = vunpack.c.h.b16 %v2423
        %v3554 = vunpack.c.l.b16 %v2424
        %v3555 = vunpack.c.h.b16 %v2424
        %v3556 = vunpack.c.l.b16 %v2425
        %v3557 = vunpack.c.h.b16 %v2425
        %v3558 = vunpack.c.l.b16 %v2426
        %v3559 = vunpack.c.h.b16 %v2426
        %v3560 = vunpack.c.l.b16 %v2427
        %v3561 = vunpack.c.h.b16 %v2427
        %v3562 = vunpack.c.l.b16 %v2428
        %v3563 = vunpack.c.h.b16 %v2428
        %v3564 = vunpack.c.l.b16 %v2429
        %v3565 = vunpack.c.h.b16 %v2429
        %v3566 = vunpack.c.l.b16 %v2430
        %v3567 = vunpack.c.h.b16 %v2430
        %v3568 = vunpack.c.l.b16 %v2431
        %v3569 = vunpack.c.h.b16 %v2431
        %v3570 = vunpack.c.l.b16 %v2432
        %v3571 = vunpack.c.h.b16 %v2432
        %v3572 = vunpack.c.l.b16 %v2433
        %v3573 = vunpack.c.h.b16 %v2433
        %v3574 = vunpack.c.l.b16 %v2434
        %v3575 = vunpack.c.h.b16 %v2434
        %v3576 = vunpack.c.l.b16 %v2435
        %v3577 = vunpack.c.h.b16 %v2435
        %v3578 = vunpack.c.l.b16 %v2436
        %v3579 = vunpack.c.h.b16 %v2436
        %v3580 = vunpack.c.l.b16 %v2437
        %v3581 = vunpack.c.h.b16 %v2437
        %v3582 = vunpack.c.l.b16 %v2438
        %v3583 = vunpack.c.h.b16 %v2438
        %v3584 = vunpack.c.l.b16 %v2439
        %v3585 = vunpack.c.h.b16 %v2439
        %v3586 = vunpack.c.l.b16 %v2440
        %v3587 = vunpack.c.h.b16 %v2440
        %v3588 = vunpack.c.l.b16 %v2441
        %v3589 = vunpack.c.h.b16 %v2441
        %v3590 = vunpack.c.l.b16 %v2442
        %v3591 = vunpack.c.h.b16 %v2442
        %v3592 = vunpack.c.l.b16 %v2443
        %v3593 = vunpack.c.h.b16 %v2443
        %v3594 = vunpack.c.l.b16 %v2444
        %v3595 = vunpack.c.h.b16 %v2444
        %v3596 = vunpack.c.l.b16 %v2445
        %v3597 = vunpack.c.h.b16 %v2445
        %v3598 = vunpack.c.l.b16 %v2446
        %v3599 = vunpack.c.h.b16 %v2446
        %v3600 = vunpack.c.l.b16 %v2447
        %v3601 = vunpack.c.h.b16 %v2447
        %v3602 = vunpack.c.l.b16 %v2448
        %v3603 = vunpack.c.h.b16 %v2448
        %v3604 = vunpack.c.l.b16 %v2449
        %v3605 = vunpack.c.h.b16 %v2449
        %v3606 = vunpack.c.l.b16 %v2450
        %v3607 = vunpack.c.h.b16 %v2450
        %v3608 = vunpack.c.l.b16 %v2451
        %v3609 = vunpack.c.h.b16 %v2451
        %v3610 = vunpack.c.l.b16 %v2452
        %v3611 = vunpack.c.h.b16 %v2452
        %v3612 = vunpack.c.l.b16 %v2453
        %v3613 = vunpack.c.h.b16 %v2453
        %v3614 = vunpack.c.l.b16 %v2454
        %v3615 = vunpack.c.h.b16 %v2454
        %v3616 = vunpack.c.l.b16 %v2455
        %v3617 = vunpack.c.h.b16 %v2455
        %v3618 = vunpack.c.l.b16 %v2456
        %v3619 = vunpack.c.h.b16 %v2456
        %v3620 = vunpack.c.l.b16 %v2457
        %v3621 = vunpack.c.h.b16 %v2457
        %v3622 = vunpack.c.l.b16 %v2458
        %v3623 = vunpack.c.h.b16 %v2458
        %v3624 = vunpack.c.l.b16 %v2459
        %v3625 = vunpack.c.h.b16 %v2459
        %v3626 = vunpack.c.l.b16 %v2460
        %v3627 = vunpack.c.h.b16 %v2460
        %v3628 = vunpack.c.l.b16 %v2461
        %v3629 = vunpack.c.h.b16 %v2461
        %v3630 = vunpack.c.l.b16 %v2462
        %v3631 = vunpack.c.h.b16 %v2462
        %v3632 = vunpack.c.l.b16 %v2463
        %v3633 = vunpack.c.h.b16 %v2463
        %v3634 = vunpack.c.l.b16 %v2464
        %v3635 = vunpack.c.h.b16 %v2464
        %v3636 = vunpack.c.l.b16 %v2465
        %v3637 = vunpack.c.h.b16 %v2465
        %v3638 = vunpack.c.l.b16 %v2466
        %v3639 = vunpack.c.h.b16 %v2466
        %v3640 = vunpack.c.l.b16 %v2467
        %v3641 = vunpack.c.h.b16 %v2467
        %v3642 = vunpack.c.l.b16 %v2468
        %v3643 = vunpack.c.h.b16 %v2468
        %v3644 = vunpack.c.l.b16 %v2469
        %v3645 = vunpack.c.h.b16 %v2469
        %v3646 = vunpack.c.l.b16 %v2470
        %v3647 = vunpack.c.h.b16 %v2470
        %v3648 = vunpack.c.l.b16 %v2471
        %v3649 = vunpack.c.h.b16 %v2471
        %v3650 = vunpack.c.l.b16 %v2472
        %v3651 = vunpack.c.h.b16 %v2472
        %v3652 = vunpack.c.l.b16 %v2473
        %v3653 = vunpack.c.h.b16 %v2473
        %v3654 = vunpack.c.l.b16 %v2474
        %v3655 = vunpack.c.h.b16 %v2474
        %v3656 = vunpack.c.l.b16 %v2475
        %v3657 = vunpack.c.h.b16 %v2475
        %v3658 = vunpack.c.l.b16 %v2476
        %v3659 = vunpack.c.h.b16 %v2476
        %v3660 = vunpack.c.l.b16 %v2477
        %v3661 = vunpack.c.h.b16 %v2477
        %v3662 = vunpack.c.l.b16 %v2478
        %v3663 = vunpack.c.h.b16 %v2478
        %v3664 = vunpack.c.l.b16 %v2479
        %v3665 = vunpack.c.h.b16 %v2479
        %v3666 = vunpack.c.l.b16 %v2480
        %v3667 = vunpack.c.h.b16 %v2480
        %v3668 = vunpack.c.l.b16 %v2481
        %v3669 = vunpack.c.h.b16 %v2481
        %v3670 = vunpack.c.l.b16 %v2482
        %v3671 = vunpack.c.h.b16 %v2482
        %v3672 = vunpack.c.l.b16 %v2483
        %v3673 = vunpack.c.h.b16 %v2483
        %v3674 = vunpack.c.l.b16 %v2484
        %v3675 = vunpack.c.h.b16 %v2484
        %v3676 = vunpack.c.l.b16 %v2485
        %v3677 = vunpack.c.h.b16 %v2485
        %v3678 = vunpack.c.l.b16 %v2486
        %v3679 = vunpack.c.h.b16 %v2486
        %v3680 = vunpack.c.l.b16 %v2487
        %v3681 = vunpack.c.h.b16 %v2487
        %v3682 = vunpack.c.l.b16 %v2488
        %v3683 = vunpack.c.h.b16 %v2488
        %v3684 = vunpack.c.l.b16 %v2489
        %v3685 = vunpack.c.h.b16 %v2489
        %v3686 = vunpack.c.l.b16 %v2490
        %v3687 = vunpack.c.h.b16 %v2490
        %v3688 = vunpack.c.l.b16 %v2491
        %v3689 = vunpack.c.h.b16 %v2491
        %v3690 = vunpack.c.l.b16 %v2492
        %v3691 = vunpack.c.h.b16 %v2492
        %v3692 = vunpack.c.l.b16 %v2493
        %v3693 = vunpack.c.h.b16 %v2493
        %v3694 = vunpack.c.l.b16 %v2494
        %v3695 = vunpack.c.h.b16 %v2494
        %v3696 = vunpack.c.l.b16 %v2495
        %v3697 = vunpack.c.h.b16 %v2495
        %v3698 = vunpack.c.l.b16 %v2496
        %v3699 = vunpack.c.h.b16 %v2496
        %v3700 = vunpack.c.l.b16 %v2497
        %v3701 = vunpack.c.h.b16 %v2497
        %v3702 = vunpack.c.l.b16 %v2498
        %v3703 = vunpack.c.h.b16 %v2498
        %v3704 = vunpack.c.l.b16 %v2499
        %v3705 = vunpack.c.h.b16 %v2499
        %v3706 = vunpack.c.l.b16 %v2500
        %v3707 = vunpack.c.h.b16 %v2500
        %v3708 = vunpack.c.l.b16 %v2501
        %v3709 = vunpack.c.h.b16 %v2501
        %v3710 = vunpack.c.l.b16 %v2502
        %v3711 = vunpack.c.h.b16 %v2502
        %v3712 = vunpack.c.l.b16 %v2503
        %v3713 = vunpack.c.h.b16 %v2503
        %v3714 = vunpack.c.l.b16 %v2504
        %v3715 = vunpack.c.h.b16 %v2504
        %v3716 = vunpack.c.l.b16 %v2505
        %v3717 = vunpack.c.h.b16 %v2505
        %v3718 = vunpack.c.l.b16 %v2506
        %v3719 = vunpack.c.h.b16 %v2506
        %v3720 = vunpack.c.l.b16 %v2507
        %v3721 = vunpack.c.h.b16 %v2507
        %v3722 = vunpack.c.l.b16 %v2508
        %v3723 = vunpack.c.h.b16 %v2508
        %v3724 = vunpack.c.l.b16 %v2509
        %v3725 = vunpack.c.h.b16 %v2509
        %v3726 = vunpack.c.l.b16 %v2510
        %v3727 = vunpack.c.h.b16 %v2510
        %v3728 = vunpack.c.l.b16 %v2511
        %v3729 = vunpack.c.h.b16 %v2511
        %v3730 = vunpack.c.l.b16 %v2512
        %v3731 = vunpack.c.h.b16 %v2512
        %v3732 = vunpack.c.l.b16 %v2513
        %v3733 = vunpack.c.h.b16 %v2513
        %v3734 = vunpack.c.l.b16 %v2514
        %v3735 = vunpack.c.h.b16 %v2514
        %v3736 = vunpack.c.l.b16 %v2515
        %v3737 = vunpack.c.h.b16 %v2515
        %v3738 = vunpack.c.l.b16 %v2516
        %v3739 = vunpack.c.h.b16 %v2516
        %v3740 = vunpack.c.l.b16 %v2517
        %v3741 = vunpack.c.h.b16 %v2517
        %v3742 = vunpack.c.l.b16 %v2518
        %v3743 = vunpack.c.h.b16 %v2518
        %v3744 = vunpack.c.l.b16 %v2519
        %v3745 = vunpack.c.h.b16 %v2519
        %v3746 = vunpack.c.l.b16 %v2520
        %v3747 = vunpack.c.h.b16 %v2520
        %v3748 = vunpack.c.l.b16 %v2521
        %v3749 = vunpack.c.h.b16 %v2521
        %v3750 = vunpack.c.l.b16 %v2522
        %v3751 = vunpack.c.h.b16 %v2522
        %v3752 = vunpack.c.l.b16 %v2523
        %v3753 = vunpack.c.h.b16 %v2523
        %v3754 = vunpack.c.l.b16 %v2524
        %v3755 = vunpack.c.h.b16 %v2524
        %v3756 = vunpack.c.l.b16 %v2525
        %v3757 = vunpack.c.h.b16 %v2525
        %v3758 = vunpack.c.l.b16 %v2526
        %v3759 = vunpack.c.h.b16 %v2526
        %v3760 = vunpack.c.l.b16 %v2527
        %v3761 = vunpack.c.h.b16 %v2527
        %v3762 = vunpack.c.l.b16 %v2528
        %v3763 = vunpack.c.h.b16 %v2528
        %v3764 = vunpack.c.l.b16 %v2529
        %v3765 = vunpack.c.h.b16 %v2529
        %v3766 = vunpack.c.l.b16 %v2530
        %v3767 = vunpack.c.h.b16 %v2530
        %v3768 = vunpack.c.l.b16 %v2531
        %v3769 = vunpack.c.h.b16 %v2531
        %v3770 = vunpack.c.l.b16 %v2532
        %v3771 = vunpack.c.h.b16 %v2532
        %v3772 = vunpack.c.l.b16 %v2533
        %v3773 = vunpack.c.h.b16 %v2533
        %v3774 = vunpack.c.l.b16 %v2534
        %v3775 = vunpack.c.h.b16 %v2534
        %v3776 = vunpack.c.l.b16 %v2535
        %v3777 = vunpack.c.h.b16 %v2535
        %v3778 = vunpack.c.l.b16 %v2536
        %v3779 = vunpack.c.h.b16 %v2536
        %v3780 = vunpack.c.l.b16 %v2537
        %v3781 = vunpack.c.h.b16 %v2537
        %v3782 = vunpack.c.l.b16 %v2538
        %v3783 = vunpack.c.h.b16 %v2538
        %v3784 = vunpack.c.l.b16 %v2539
        %v3785 = vunpack.c.h.b16 %v2539
        %v3786 = vunpack.c.l.b16 %v2540
        %v3787 = vunpack.c.h.b16 %v2540
        %v3788 = vunpack.c.l.b16 %v2541
        %v3789 = vunpack.c.h.b16 %v2541
        %v3790 = vunpack.c.l.b16 %v2542
        %v3791 = vunpack.c.h.b16 %v2542
        %v3792 = vunpack.c.l.b16 %v2543
        %v3793 = vunpack.c.h.b16 %v2543
        %v3794 = vunpack.c.l.b16 %v2544
        %v3795 = vunpack.c.h.b16 %v2544
        %v3796 = vunpack.c.l.b16 %v2545
        %v3797 = vunpack.c.h.b16 %v2545
        %v3798 = vunpack.c.l.b16 %v2546
        %v3799 = vunpack.c.h.b16 %v2546
        %v3800 = vunpack.c.l.b16 %v2547
        %v3801 = vunpack.c.h.b16 %v2547
        %v3802 = vunpack.c.l.b16 %v2548
        %v3803 = vunpack.c.h.b16 %v2548
        %v3804 = vunpack.c.l.b16 %v2549
        %v3805 = vunpack.c.h.b16 %v2549
        %v3806 = vunpack.c.l.b16 %v2550
        %v3807 = vunpack.c.h.b16 %v2550
        %v3808 = vunpack.c.l.b16 %v2551
        %v3809 = vunpack.c.h.b16 %v2551
        %v3810 = vunpack.c.l.b16 %v2552
        %v3811 = vunpack.c.h.b16 %v2552
        %v3812 = vunpack.c.l.b16 %v2553
        %v3813 = vunpack.c.h.b16 %v2553
        %v3814 = vunpack.c.l.b16 %v2554
        %v3815 = vunpack.c.h.b16 %v2554
        %v3816 = vunpack.c.l.b16 %v2555
        %v3817 = vunpack.c.h.b16 %v2555
        %v3818 = vunpack.c.l.b16 %v2556
        %v3819 = vunpack.c.h.b16 %v2556
        %v3820 = vunpack.c.l.b16 %v2557
        %v3821 = vunpack.c.h.b16 %v2557
        %v3822 = vunpack.c.l.b16 %v2558
        %v3823 = vunpack.c.h.b16 %v2558
        %v3824 = vunpack.c.l.b16 %v2559
        %v3825 = vunpack.c.h.b16 %v2559
        %v3826 = vunpack.c.l.b16 %v2560
        %v3827 = vunpack.c.h.b16 %v2560
        %v3828 = vunpack.c.l.b16 %v2561
        %v3829 = vunpack.c.h.b16 %v2561
        %v3830 = vunpack.c.l.b16 %v2562
        %v3831 = vunpack.c.h.b16 %v2562
        %v3832 = vunpack.c.l.b16 %v2563
        %v3833 = vunpack.c.h.b16 %v2563
        %v3834 = vunpack.c.l.b16 %v2564
        %v3835 = vunpack.c.h.b16 %v2564
        %v3836 = vunpack.c.l.b16 %v2565
        %v3837 = vunpack.c.h.b16 %v2565
        %v3838 = vunpack.c.l.b16 %v2566
        %v3839 = vunpack.c.h.b16 %v2566
        %v3840 = vunpack.c.l.b16 %v2567
        %v3841 = vunpack.c.h.b16 %v2567
        %v3842 = vunpack.c.l.b16 %v2568
        %v3843 = vunpack.c.h.b16 %v2568
        %v3844 = vunpack.c.l.b16 %v2569
        %v3845 = vunpack.c.h.b16 %v2569
        %v3846 = vunpack.c.l.b16 %v2570
        %v3847 = vunpack.c.h.b16 %v2570
        %v3848 = vunpack.c.l.b16 %v2571
        %v3849 = vunpack.c.h.b16 %v2571
        %v3850 = vunpack.c.l.b16 %v2572
        %v3851 = vunpack.c.h.b16 %v2572
        %v3852 = vunpack.c.l.b16 %v2573
        %v3853 = vunpack.c.h.b16 %v2573
        %v3854 = vunpack.c.l.b16 %v2574
        %v3855 = vunpack.c.h.b16 %v2574
        %v3856 = vunpack.c.l.b16 %v2575
        %v3857 = vunpack.c.h.b16 %v2575
        %v3858 = vunpack.c.l.b16 %v2576
        %v3859 = vunpack.c.h.b16 %v2576
        %v3860 = vunpack.c.l.b16 %v2577
        %v3861 = vunpack.c.h.b16 %v2577
        %v3862 = vunpack.c.l.b16 %v2578
        %v3863 = vunpack.c.h.b16 %v2578
        %v3864 = vunpack.c.l.b16 %v2579
        %v3865 = vunpack.c.h.b16 %v2579
        %v3866 = vunpack.c.l.b16 %v2580
        %v3867 = vunpack.c.h.b16 %v2580
        %v3868 = vunpack.c.l.b16 %v2581
        %v3869 = vunpack.c.h.b16 %v2581
        %v3870 = vunpack.c.l.b16 %v2582
        %v3871 = vunpack.c.h.b16 %v2582
        %v3872 = vunpack.c.l.b16 %v2583
        %v3873 = vunpack.c.h.b16 %v2583
        %v3874 = vunpack.c.l.b16 %v2584
        %v3875 = vunpack.c.h.b16 %v2584
        %v3876 = vunpack.c.l.b16 %v2585
        %v3877 = vunpack.c.h.b16 %v2585
        %v3878 = vunpack.c.l.b16 %v2586
        %v3879 = vunpack.c.h.b16 %v2586
        %v3880 = vunpack.c.l.b16 %v2587
        %v3881 = vunpack.c.h.b16 %v2587
        %v3882 = vunpack.c.l.b16 %v2588
        %v3883 = vunpack.c.h.b16 %v2588
        %v3884 = vunpack.c.l.b16 %v2589
        %v3885 = vunpack.c.h.b16 %v2589
        %v3886 = vunpack.c.l.b16 %v2590
        %v3887 = vunpack.c.h.b16 %v2590
        %v3888 = vunpack.c.l.b16 %v2591
        %v3889 = vunpack.c.h.b16 %v2591
        %v3890 = vunpack.c.l.b16 %v2592
        %v3891 = vunpack.c.h.b16 %v2592
        %v3892 = vunpack.c.l.b16 %v2593
        %v3893 = vunpack.c.h.b16 %v2593
        %v3894 = vunpack.c.l.b16 %v2594
        %v3895 = vunpack.c.h.b16 %v2594
        %v3896 = vunpack.c.l.b16 %v2595
        %v3897 = vunpack.c.h.b16 %v2595
        %v3898 = vunpack.c.l.b16 %v2596
        %v3899 = vunpack.c.h.b16 %v2596
        %v3900 = vunpack.c.l.b16 %v2597
        %v3901 = vunpack.c.h.b16 %v2597
        %v3902 = vunpack.c.l.b16 %v2598
        %v3903 = vunpack.c.h.b16 %v2598
        %v3904 = vunpack.c.l.b16 %v2599
        %v3905 = vunpack.c.h.b16 %v2599
        %v3906 = vunpack.c.l.b16 %v2600
        %v3907 = vunpack.c.h.b16 %v2600
        %v3908 = vunpack.c.l.b16 %v2601
        %v3909 = vunpack.c.h.b16 %v2601
        %v3910 = vunpack.c.l.b16 %v2602
        %v3911 = vunpack.c.h.b16 %v2602
        %v3912 = vunpack.c.l.b16 %v2603
        %v3913 = vunpack.c.h.b16 %v2603
        %v3914 = vunpack.c.l.b16 %v2604
        %v3915 = vunpack.c.h.b16 %v2604
        %v3916 = vunpack.c.l.b16 %v2605
        %v3917 = vunpack.c.h.b16 %v2605
        %v3918 = vunpack.c.l.b16 %v2606
        %v3919 = vunpack.c.h.b16 %v2606
        %v3920 = vunpack.c.l.b16 %v2607
        %v3921 = vunpack.c.h.b16 %v2607
        %v3922 = vunpack.c.l.b16 %v2608
        %v3923 = vunpack.c.h.b16 %v2608
        %v3924 = vunpack.c.l.b16 %v2609
        %v3925 = vunpack.c.h.b16 %v2609
        %v3926 = vunpack.c.l.b16 %v2610
        %v3927 = vunpack.c.h.b16 %v2610
        %v3928 = vunpack.c.l.b16 %v2611
        %v3929 = vunpack.c.h.b16 %v2611
        %v3930 = vunpack.c.l.b16 %v2612
        %v3931 = vunpack.c.h.b16 %v2612
        %v3932 = vunpack.c.l.b16 %v2613
        %v3933 = vunpack.c.h.b16 %v2613
        %v3934 = vunpack.c.l.b16 %v2614
        %v3935 = vunpack.c.h.b16 %v2614
        %v3936 = vunpack.c.l.b16 %v2615
        %v3937 = vunpack.c.h.b16 %v2615
        %v3938 = vunpack.c.l.b16 %v2616
        %v3939 = vunpack.c.h.b16 %v2616
        %v3940 = vunpack.c.l.b16 %v2617
        %v3941 = vunpack.c.h.b16 %v2617
        %v3942 = vunpack.c.l.b16 %v2618
        %v3943 = vunpack.c.h.b16 %v2618
        %v3944 = vunpack.c.l.b16 %v2619
        %v3945 = vunpack.c.h.b16 %v2619
        %v3946 = vunpack.c.l.b16 %v2620
        %v3947 = vunpack.c.h.b16 %v2620
        %v3948 = vunpack.c.l.b16 %v2621
        %v3949 = vunpack.c.h.b16 %v2621
        %v3950 = vunpack.c.l.b16 %v2622
        %v3951 = vunpack.c.h.b16 %v2622
        %v3952 = vunpack.c.l.b16 %v2623
        %v3953 = vunpack.c.h.b16 %v2623
        %v3954 = vunpack.c.l.b16 %v2624
        %v3955 = vunpack.c.h.b16 %v2624
        %v3956 = vunpack.c.l.b16 %v2625
        %v3957 = vunpack.c.h.b16 %v2625
        %v3958 = vunpack.c.l.b16 %v2626
        %v3959 = vunpack.c.h.b16 %v2626
        %v3960 = vunpack.c.l.b16 %v2627
        %v3961 = vunpack.c.h.b16 %v2627
        %v3962 = vunpack.c.l.b16 %v2628
        %v3963 = vunpack.c.h.b16 %v2628
        %v3964 = vunpack.c.l.b16 %v2629
        %v3965 = vunpack.c.h.b16 %v2629
        %v3966 = vunpack.c.l.b16 %v2630
        %v3967 = vunpack.c.h.b16 %v2630
        %v3968 = vunpack.c.l.b16 %v2631
        %v3969 = vunpack.c.h.b16 %v2631
        %v3970 = vunpack.c.l.b16 %v2632
        %v3971 = vunpack.c.h.b16 %v2632
        %v3972 = vunpack.c.l.b16 %v2633
        %v3973 = vunpack.c.h.b16 %v2633
        %v3974 = vunpack.c.l.b16 %v2634
        %v3975 = vunpack.c.h.b16 %v2634
        %v3976 = vunpack.c.l.b16 %v2635
        %v3977 = vunpack.c.h.b16 %v2635
        %v3978 = vunpack.c.l.b16 %v2636
        %v3979 = vunpack.c.h.b16 %v2636
        %v3980 = vunpack.c.l.b16 %v2637
        %v3981 = vunpack.c.h.b16 %v2637
        %v3982 = vunpack.c.l.b16 %v2638
        %v3983 = vunpack.c.h.b16 %v2638
        %v3984 = vunpack.c.l.b16 %v2639
        %v3985 = vunpack.c.h.b16 %v2639
        %v3986 = vunpack.c.l.b16 %v2640
        %v3987 = vunpack.c.h.b16 %v2640
        %v3988 = vunpack.c.l.b16 %v2641
        %v3989 = vunpack.c.h.b16 %v2641
        %v3990 = vunpack.c.l.b16 %v2642
        %v3991 = vunpack.c.h.b16 %v2642
        %v3992 = vunpack.c.l.b16 %v2643
        %v3993 = vunpack.c.h.b16 %v2643
        %v3994 = vunpack.c.l.b16 %v2644
        %v3995 = vunpack.c.h.b16 %v2644
        %v3996 = vunpack.c.l.b16 %v2645
        %v3997 = vunpack.c.h.b16 %v2645
        %v3998 = vunpack.c.l.b16 %v2646
        %v3999 = vunpack.c.h.b16 %v2646
        %v4000 = vunpack.c.l.b16 %v2647
        %v4001 = vunpack.c.h.b16 %v2647
        %v4002 = vunpack.c.l.b16 %v2648
        %v4003 = vunpack.c.h.b16 %v2648
        %v4004 = vunpack.c.l.b16 %v2649
        %v4005 = vunpack.c.h.b16 %v2649
        %v4006 = vunpack.c.l.b16 %v2650
        %v4007 = vunpack.c.h.b16 %v2650
        %v4008 = vunpack.c.l.b16 %v2651
        %v4009 = vunpack.c.h.b16 %v2651
        %v4010 = vunpack.c.l.b16 %v2652
        %v4011 = vunpack.c.h.b16 %v2652
        %v4012 = vunpack.c.l.b16 %v2653
        %v4013 = vunpack.c.h.b16 %v2653
        %v4014 = vunpack.c.l.b16 %v2654
        %v4015 = vunpack.c.h.b16 %v2654
        %v4016 = vunpack.c.l.b16 %v2655
        %v4017 = vunpack.c.h.b16 %v2655
        %v4018 = vunpack.c.l.b16 %v2656
        %v4019 = vunpack.c.h.b16 %v2656
        %v4020 = vunpack.c.l.b16 %v2657
        %v4021 = vunpack.c.h.b16 %v2657
        %v4022 = vunpack.c.l.b16 %v2658
        %v4023 = vunpack.c.h.b16 %v2658
        %v4024 = vunpack.c.l.b16 %v2659
        %v4025 = vunpack.c.h.b16 %v2659
        %v4026 = vunpack.c.l.b16 %v2660
        %v4027 = vunpack.c.h.b16 %v2660
        %v4028 = vunpack.c.l.b16 %v2661
        %v4029 = vunpack.c.h.b16 %v2661
        %v4030 = vunpack.c.l.b16 %v2662
        %v4031 = vunpack.c.h.b16 %v2662
        %v4032 = vunpack.c.l.b16 %v2663
        %v4033 = vunpack.c.h.b16 %v2663
        %v4034 = vunpack.c.l.b16 %v2664
        %v4035 = vunpack.c.h.b16 %v2664
        %v4036 = vunpack.c.l.b16 %v2665
        %v4037 = vunpack.c.h.b16 %v2665
        %v4038 = vunpack.c.l.b16 %v2666
        %v4039 = vunpack.c.h.b16 %v2666
        %v4040 = vunpack.c.l.b16 %v2667
        %v4041 = vunpack.c.h.b16 %v2667
        %v4042 = vunpack.c.l.b16 %v2668
        %v4043 = vunpack.c.h.b16 %v2668
        %v4044 = vunpack.c.l.b16 %v2669
        %v4045 = vunpack.c.h.b16 %v2669
        %v4046 = vunpack.c.l.b16 %v2670
        %v4047 = vunpack.c.h.b16 %v2670
        %v4048 = vunpack.c.l.b16 %v2671
        %v4049 = vunpack.c.h.b16 %v2671
        %v4050 = vunpack.c.l.b16 %v2672
        %v4051 = vunpack.c.h.b16 %v2672
        %v4052 = vunpack.c.l.b16 %v2673
        %v4053 = vunpack.c.h.b16 %v2673
        %v4054 = vunpack.c.l.b16 %v2674
        %v4055 = vunpack.c.h.b16 %v2674
        %v4056 = vunpack.c.l.b16 %v2675
        %v4057 = vunpack.c.h.b16 %v2675
        %v4058 = vunpack.c.l.b16 %v2676
        %v4059 = vunpack.c.h.b16 %v2676
        %v4060 = vunpack.c.l.b16 %v2677
        %v4061 = vunpack.c.h.b16 %v2677
        %v4062 = vunpack.c.l.b16 %v2678
        %v4063 = vunpack.c.h.b16 %v2678
        %v4064 = vunpack.c.l.b16 %v2679
        %v4065 = vunpack.c.h.b16 %v2679
        %v4066 = vunpack.c.l.b16 %v2680
        %v4067 = vunpack.c.h.b16 %v2680
        %v4068 = vunpack.c.l.b16 %v2681
        %v4069 = vunpack.c.h.b16 %v2681
        %v4070 = vunpack.c.l.b16 %v2682
        %v4071 = vunpack.c.h.b16 %v2682
        %v4072 = vunpack.c.l.b16 %v2683
        %v4073 = vunpack.c.h.b16 %v2683
        %v4074 = vunpack.c.l.b16 %v2684
        %v4075 = vunpack.c.h.b16 %v2684
        %v4076 = vunpack.c.l.b16 %v2685
        %v4077 = vunpack.c.h.b16 %v2685
        %v4078 = vunpack.c.l.b16 %v2686
        %v4079 = vunpack.c.h.b16 %v2686
        %v4080 = vunpack.c.l.b16 %v2687
        %v4081 = vunpack.c.h.b16 %v2687
        %v4082 = vunpack.c.l.b16 %v2688
        %v4083 = vunpack.c.h.b16 %v2688
        %v4084 = vunpack.c.l.b16 %v2689
        %v4085 = vunpack.c.h.b16 %v2689
        %v4086 = vunpack.c.l.b16 %v2690
        %v4087 = vunpack.c.h.b16 %v2690
        %v4088 = vunpack.c.l.b16 %v2691
        %v4089 = vunpack.c.h.b16 %v2691
        %v4090 = vunpack.c.l.b16 %v2692
        %v4091 = vunpack.c.h.b16 %v2692
        %v4092 = vunpack.c.l.b16 %v2693
        %v4093 = vunpack.c.h.b16 %v2693
        %v4094 = vunpack.c.l.b16 %v2694
        %v4095 = vunpack.c.h.b16 %v2694
        %v4096 = vunpack.c.l.b16 %v2695
        %v4097 = vunpack.c.h.b16 %v2695
        %v4098 = vunpack.c.l.b16 %v2696
        %v4099 = vunpack.c.h.b16 %v2696
        %v4100 = vunpack.c.l.b16 %v2697
        %v4101 = vunpack.c.h.b16 %v2697
        %v4102 = vunpack.c.l.b16 %v2698
        %v4103 = vunpack.c.h.b16 %v2698
        %v4104 = vunpack.c.l.b16 %v2699
        %v4105 = vunpack.c.h.b16 %v2699
        %v4106 = vunpack.c.l.b16 %v2700
        %v4107 = vunpack.c.h.b16 %v2700
        %v4108 = vunpack.c.l.b16 %v2701
        %v4109 = vunpack.c.h.b16 %v2701
        %v4110 = vunpack.c.l.b16 %v2702
        %v4111 = vunpack.c.h.b16 %v2702
        %v4112 = vunpack.c.l.b16 %v2703
        %v4113 = vunpack.c.h.b16 %v2703
        %v4114 = vunpack.c.l.b16 %v2704
        %v4115 = vunpack.c.h.b16 %v2704
        %v4116 = vunpack.c.l.b16 %v2705
        %v4117 = vunpack.c.h.b16 %v2705
        %v4118 = vunpack.c.l.b16 %v2706
        %v4119 = vunpack.c.h.b16 %v2706
        %v4120 = vunpack.c.l.b16 %v2707
        %v4121 = vunpack.c.h.b16 %v2707
        %v4122 = vunpack.c.l.b16 %v2708
        %v4123 = vunpack.c.h.b16 %v2708
        %v4124 = vunpack.c.l.b16 %v2709
        %v4125 = vunpack.c.h.b16 %v2709
        %v4126 = vunpack.c.l.b16 %v2710
        %v4127 = vunpack.c.h.b16 %v2710
        %v4128 = vunpack.c.l.b16 %v2711
        %v4129 = vunpack.c.h.b16 %v2711
        %v4130 = vunpack.c.l.b16 %v2712
        %v4131 = vunpack.c.h.b16 %v2712
        %v4132 = vunpack.c.l.b16 %v2713
        %v4133 = vunpack.c.h.b16 %v2713
        %v4134 = vunpack.c.l.b16 %v2714
        %v4135 = vunpack.c.h.b16 %v2714
        %v4136 = vunpack.c.l.b16 %v2715
        %v4137 = vunpack.c.h.b16 %v2715
        %v4138 = vunpack.c.l.b16 %v2716
        %v4139 = vunpack.c.h.b16 %v2716
        %v4140 = vunpack.c.l.b16 %v2717
        %v4141 = vunpack.c.h.b16 %v2717
        %v4142 = vunpack.c.l.b16 %v2718
        %v4143 = vunpack.c.h.b16 %v2718
        %v4144 = vunpack.c.l.b16 %v2719
        %v4145 = vunpack.c.h.b16 %v2719
        %v4146 = vunpack.c.l.b16 %v2720
        %v4147 = vunpack.c.h.b16 %v2720
        %v4148 = vunpack.c.l.b16 %v2721
        %v4149 = vunpack.c.h.b16 %v2721
        %v4150 = vunpack.c.l.b16 %v2722
        %v4151 = vunpack.c.h.b16 %v2722
        %v4152 = vunpack.c.l.b16 %v2723
        %v4153 = vunpack.c.h.b16 %v2723
        %v4154 = vunpack.c.l.b16 %v2724
        %v4155 = vunpack.c.h.b16 %v2724
        %v4156 = vunpack.c.l.b16 %v2725
        %v4157 = vunpack.c.h.b16 %v2725
        %v4158 = vunpack.c.l.b16 %v2726
        %v4159 = vunpack.c.h.b16 %v2726
        %v4160 = vunpack.c.l.b16 %v2727
        %v4161 = vunpack.c.h.b16 %v2727
        %v4162 = vunpack.c.l.b16 %v2728
        %v4163 = vunpack.c.h.b16 %v2728
        %v4164 = vunpack.c.l.b16 %v2729
        %v4165 = vunpack.c.h.b16 %v2729
        %v4166 = vunpack.c.l.b16 %v2730
        %v4167 = vunpack.c.h.b16 %v2730
        %v4168 = vunpack.c.l.b16 %v2731
        %v4169 = vunpack.c.h.b16 %v2731
        %v4170 = vunpack.c.l.b16 %v2732
        %v4171 = vunpack.c.h.b16 %v2732
        %v4172 = vunpack.c.l.b16 %v2733
        %v4173 = vunpack.c.h.b16 %v2733
        %v4174 = vunpack.c.l.b16 %v2734
        %v4175 = vunpack.c.h.b16 %v2734
        %v4176 = vunpack.c.l.b16 %v2735
        %v4177 = vunpack.c.h.b16 %v2735
        %v4178 = vunpack.c.l.b16 %v2736
        %v4179 = vunpack.c.h.b16 %v2736
        %v4180 = vunpack.c.l.b16 %v2737
        %v4181 = vunpack.c.h.b16 %v2737
        %v4182 = vunpack.c.l.b16 %v2738
        %v4183 = vunpack.c.h.b16 %v2738
        %v4184 = vunpack.c.l.b16 %v2739
        %v4185 = vunpack.c.h.b16 %v2739
        %v4186 = vunpack.c.l.b16 %v2740
        %v4187 = vunpack.c.h.b16 %v2740
        %v4188 = vunpack.c.l.b16 %v2741
        %v4189 = vunpack.c.h.b16 %v2741
        %v4190 = vunpack.c.l.b16 %v2742
        %v4191 = vunpack.c.h.b16 %v2742
        %v4192 = vunpack.c.l.b16 %v2743
        %v4193 = vunpack.c.h.b16 %v2743
        %v4194 = vunpack.c.l.b16 %v2744
        %v4195 = vunpack.c.h.b16 %v2744
        %v4196 = vunpack.c.l.b16 %v2745
        %v4197 = vunpack.c.h.b16 %v2745
        %v4198 = vunpack.c.l.b16 %v2746
        %v4199 = vunpack.c.h.b16 %v2746
        %v4200 = vunpack.c.l.b16 %v2747
        %v4201 = vunpack.c.h.b16 %v2747
        %v4202 = vunpack.c.l.b16 %v2748
        %v4203 = vunpack.c.h.b16 %v2748
        %v4204 = vunpack.c.l.b16 %v2749
        %v4205 = vunpack.c.h.b16 %v2749
        %v4206 = vunpack.c.l.b16 %v2750
        %v4207 = vunpack.c.h.b16 %v2750
        %v4208 = vunpack.c.l.b16 %v2751
        %v4209 = vunpack.c.h.b16 %v2751
        %v4210 = vunpack.c.l.b16 %v2752
        %v4211 = vunpack.c.h.b16 %v2752
        %v4212 = vunpack.c.l.b16 %v2753
        %v4213 = vunpack.c.h.b16 %v2753
        %v4214 = vunpack.c.l.b16 %v2754
        %v4215 = vunpack.c.h.b16 %v2754
        %v4216 = vunpack.c.l.b16 %v2755
        %v4217 = vunpack.c.h.b16 %v2755
        %v4218 = vunpack.c.l.b16 %v2756
        %v4219 = vunpack.c.h.b16 %v2756
        %v4220 = vunpack.c.l.b16 %v2757
        %v4221 = vunpack.c.h.b16 %v2757
        %v4222 = vunpack.c.l.b16 %v2758
        %v4223 = vunpack.c.h.b16 %v2758
        %v4224 = vunpack.c.l.b16 %v2759
        %v4225 = vunpack.c.h.b16 %v2759
        %v4226 = vunpack.c.l.b16 %v2760
        %v4227 = vunpack.c.h.b16 %v2760
        %v4228 = vunpack.c.l.b16 %v2761
        %v4229 = vunpack.c.h.b16 %v2761
        %v4230 = vunpack.c.l.b16 %v2762
        %v4231 = vunpack.c.h.b16 %v2762
        %v4232 = vunpack.c.l.b16 %v2763
        %v4233 = vunpack.c.h.b16 %v2763
        %v4234 = vunpack.c.l.b16 %v2764
        %v4235 = vunpack.c.h.b16 %v2764
        %v4236 = vunpack.c.l.b16 %v2765
        %v4237 = vunpack.c.h.b16 %v2765
        %v4238 = vunpack.c.l.b16 %v2766
        %v4239 = vunpack.c.h.b16 %v2766
        %v4240 = vunpack.c.l.b16 %v2767
        %v4241 = vunpack.c.h.b16 %v2767
        %v4242 = vunpack.c.l.b16 %v2768
        %v4243 = vunpack.c.h.b16 %v2768
        %v4244 = vunpack.c.l.b16 %v2769
        %v4245 = vunpack.c.h.b16 %v2769
        %v4246 = vunpack.c.l.b16 %v2770
        %v4247 = vunpack.c.h.b16 %v2770
        %v4248 = vunpack.c.l.b16 %v2771
        %v4249 = vunpack.c.h.b16 %v2771
        %v4250 = vunpack.c.l.b16 %v2772
        %v4251 = vunpack.c.h.b16 %v2772
        %v4252 = vunpack.c.l.b16 %v2773
        %v4253 = vunpack.c.h.b16 %v2773
        %v4254 = vunpack.c.l.b16 %v2774
        %v4255 = vunpack.c.h.b16 %v2774
        %v4256 = vunpack.c.l.b16 %v2775
        %v4257 = vunpack.c.h.b16 %v2775
        %v4258 = vunpack.c.l.b16 %v2776
        %v4259 = vunpack.c.h.b16 %v2776
        %v4260 = vunpack.c.l.b16 %v2777
        %v4261 = vunpack.c.h.b16 %v2777
        %v4262 = vunpack.c.l.b16 %v2778
        %v4263 = vunpack.c.h.b16 %v2778
        %v4264 = vunpack.c.l.b16 %v2779
        %v4265 = vunpack.c.h.b16 %v2779
        %v4266 = vunpack.c.l.b16 %v2780
        %v4267 = vunpack.c.h.b16 %v2780
        %v4268 = vunpack.c.l.b16 %v2781
        %v4269 = vunpack.c.h.b16 %v2781
        %v4270 = vunpack.c.l.b16 %v2782
        %v4271 = vunpack.c.h.b16 %v2782
        %v4272 = vunpack.c.l.b16 %v2783
        %v4273 = vunpack.c.h.b16 %v2783
        %v4274 = vunpack.c.l.b16 %v2784
        %v4275 = vunpack.c.h.b16 %v2784
        %v4276 = vunpack.c.l.b16 %v2785
        %v4277 = vunpack.c.h.b16 %v2785
        %v4278 = vunpack.c.l.b16 %v2786
        %v4279 = vunpack.c.h.b16 %v2786
        %v4280 = vunpack.c.l.b16 %v2787
        %v4281 = vunpack.c.h.b16 %v2787
        %v4282 = vunpack.c.l.b16 %v2788
        %v4283 = vunpack.c.h.b16 %v2788
        %v4284 = vunpack.c.l.b16 %v2789
        %v4285 = vunpack.c.h.b16 %v2789
        %v4286 = vunpack.c.l.b16 %v2790
        %v4287 = vunpack.c.h.b16 %v2790
        %v4288 = vunpack.c.l.b16 %v2791
        %v4289 = vunpack.c.h.b16 %v2791
        %v4290 = vunpack.c.l.b16 %v2792
        %v4291 = vunpack.c.h.b16 %v2792
        %v4292 = vunpack.c.l.b16 %v2793
        %v4293 = vunpack.c.h.b16 %v2793
        %v4294 = vunpack.c.l.b16 %v2794
        %v4295 = vunpack.c.h.b16 %v2794
        %v4296 = vunpack.c.l.b16 %v2795
        %v4297 = vunpack.c.h.b16 %v2795
        %v4298 = vunpack.c.l.b16 %v2796
        %v4299 = vunpack.c.h.b16 %v2796
        %v4300 = vunpack.c.l.b16 %v2797
        %v4301 = vunpack.c.h.b16 %v2797
        %v4302 = vunpack.c.l.b16 %v2798
        %v4303 = vunpack.c.h.b16 %v2798
        %v4304 = vunpack.c.l.b16 %v2799
        %v4305 = vunpack.c.h.b16 %v2799
        %v4306 = vunpack.c.l.b16 %v2800
        %v4307 = vunpack.c.h.b16 %v2800
        %v4308 = vunpack.c.l.b16 %v2801
        %v4309 = vunpack.c.h.b16 %v2801
        %v4310 = vunpack.c.l.b16 %v2802
        %v4311 = vunpack.c.h.b16 %v2802
        %v4312 = vunpack.c.l.b16 %v2803
        %v4313 = vunpack.c.h.b16 %v2803
        %v4314 = vunpack.c.l.b16 %v2804
        %v4315 = vunpack.c.h.b16 %v2804
        %v4316 = vunpack.c.l.b16 %v2805
        %v4317 = vunpack.c.h.b16 %v2805
        %v4318 = vunpack.c.l.b16 %v2806
        %v4319 = vunpack.c.h.b16 %v2806
        %v4320 = vunpack.c.l.b16 %v2807
        %v4321 = vunpack.c.h.b16 %v2807
        %v4322 = vunpack.c.l.b16 %v2808
        %v4323 = vunpack.c.h.b16 %v2808
        %v4324 = vunpack.c.l.b16 %v2809
        %v4325 = vunpack.c.h.b16 %v2809
        %v4326 = vunpack.c.l.b16 %v2810
        %v4327 = vunpack.c.h.b16 %v2810
        %v4328 = vunpack.c.l.b16 %v2811
        %v4329 = vunpack.c.h.b16 %v2811
        %v4330 = vunpack.c.l.b16 %v2812
        %v4331 = vunpack.c.h.b16 %v2812
        %v4332 = vunpack.c.l.b16 %v2813
        %v4333 = vunpack.c.h.b16 %v2813
        %v4334 = vunpack.c.l.b16 %v2814
        %v4335 = vunpack.c.h.b16 %v2814
        %v4336 = vunpack.c.l.b16 %v2815
        %v4337 = vunpack.c.h.b16 %v2815
        %v4338 = vunpack.c.l.b16 %v2816
        %v4339 = vunpack.c.h.b16 %v2816
        %v4340 = vunpack.c.l.b16 %v2817
        %v4341 = vunpack.c.h.b16 %v2817
        %v4342 = vunpack.c.l.b16 %v2818
        %v4343 = vunpack.c.h.b16 %v2818
        %v4344 = vunpack.c.l.b16 %v2819
        %v4345 = vunpack.c.h.b16 %v2819
        %v4346 = vunpack.c.l.b16 %v2820
        %v4347 = vunpack.c.h.b16 %v2820
        %v4348 = vunpack.c.l.b16 %v2821
        %v4349 = vunpack.c.h.b16 %v2821
        %v4350 = vunpack.c.l.b16 %v2822
        %v4351 = vunpack.c.h.b16 %v2822
        %v4352 = vunpack.c.l.b16 %v2823
        %v4353 = vunpack.c.h.b16 %v2823
        %v4354 = vunpack.c.l.b16 %v2824
        %v4355 = vunpack.c.h.b16 %v2824
        %v4356 = vunpack.c.l.b16 %v2825
        %v4357 = vunpack.c.h.b16 %v2825
        %v4358 = vunpack.c.l.b16 %v2826
        %v4359 = vunpack.c.h.b16 %v2826
        %v4360 = vunpack.c.l.b16 %v2827
        %v4361 = vunpack.c.h.b16 %v2827
        %v4362 = vunpack.c.l.b16 %v2828
        %v4363 = vunpack.c.h.b16 %v2828
        %v4364 = vunpack.c.l.b16 %v2829
        %v4365 = vunpack.c.h.b16 %v2829
        %v4366 = vunpack.c.l.b16 %v2830
        %v4367 = vunpack.c.h.b16 %v2830
        %v4368 = vunpack.c.l.b16 %v2831
        %v4369 = vunpack.c.h.b16 %v2831
        %v4370 = vunpack.c.l.b16 %v2832
        %v4371 = vunpack.c.h.b16 %v2832
        %v4372 = vunpack.c.l.b16 %v2833
        %v4373 = vunpack.c.h.b16 %v2833
        %v4374 = vunpack.c.l.b16 %v2834
        %v4375 = vunpack.c.h.b16 %v2834
        %v4376 = vunpack.c.l.b16 %v2835
        %v4377 = vunpack.c.h.b16 %v2835
        %v4378 = vunpack.c.l.b16 %v2836
        %v4379 = vunpack.c.h.b16 %v2836
        %v4380 = vunpack.c.l.b16 %v2837
        %v4381 = vunpack.c.h.b16 %v2837
        %v4382 = vunpack.c.l.b16 %v2838
        %v4383 = vunpack.c.h.b16 %v2838
        %v4384 = vunpack.c.l.b16 %v2839
        %v4385 = vunpack.c.h.b16 %v2839
        %v4386 = vunpack.c.l.b16 %v2840
        %v4387 = vunpack.c.h.b16 %v2840
        %v4388 = vunpack.c.l.b16 %v2841
        %v4389 = vunpack.c.h.b16 %v2841
        %v4390 = vunpack.c.l.b16 %v2842
        %v4391 = vunpack.c.h.b16 %v2842
        %v4392 = vunpack.c.l.b16 %v2843
        %v4393 = vunpack.c.h.b16 %v2843
        %v4394 = vunpack.c.l.b16 %v2844
        %v4395 = vunpack.c.h.b16 %v2844
        %v4396 = vunpack.c.l.b16 %v2845
        %v4397 = vunpack.c.h.b16 %v2845
        %v4398 = vunpack.c.l.b16 %v2846
        %v4399 = vunpack.c.h.b16 %v2846
        %v4400 = vunpack.c.l.b16 %v2847
        %v4401 = vunpack.c.h.b16 %v2847
        %v4402 = vunpack.c.l.b16 %v2848
        %v4403 = vunpack.c.h.b16 %v2848
        %v4404 = vunpack.c.l.b16 %v2849
        %v4405 = vunpack.c.h.b16 %v2849
        %v4406 = vpack.c.b16 %v3390, %v3382
        %v4407 = vpack.c.b16 %v3391, %v3383
        %v4408 = vpack.c.b16 %v3392, %v3384
        %v4409 = vpack.c.b16 %v3393, %v3385
        %v4410 = vpack.c.b16 %v3394, %v3386
        %v4411 = vpack.c.b16 %v3395, %v3387
        %v4412 = vpack.c.b16 %v3396, %v3388
        %v4413 = vpack.c.b16 %v3397, %v3389
        %v4414 = vpack.c.b16 %v3406, %v3398
        %v4415 = vpack.c.b16 %v3407, %v3399
        %v4416 = vpack.c.b16 %v3408, %v3400
        %v4417 = vpack.c.b16 %v3409, %v3401
        %v4418 = vpack.c.b16 %v3410, %v3402
        %v4419 = vpack.c.b16 %v3411, %v3403
        %v4420 = vpack.c.b16 %v3412, %v3404
        %v4421 = vpack.c.b16 %v3413, %v3405
        %v4422 = vpack.c.b16 %v3422, %v3414
        %v4423 = vpack.c.b16 %v3423, %v3415
        %v4424 = vpack.c.b16 %v3424, %v3416
        %v4425 = vpack.c.b16 %v3425, %v3417
        %v4426 = vpack.c.b16 %v3426, %v3418
        %v4427 = vpack.c.b16 %v3427, %v3419
        %v4428 = vpack.c.b16 %v3428, %v3420
        %v4429 = vpack.c.b16 %v3429, %v3421
        %v4430 = vpack.c.b16 %v3438, %v3430
        %v4431 = vpack.c.b16 %v3439, %v3431
        %v4432 = vpack.c.b16 %v3440, %v3432
        %v4433 = vpack.c.b16 %v3441, %v3433
        %v4434 = vpack.c.b16 %v3442, %v3434
        %v4435 = vpack.c.b16 %v3443, %v3435
        %v4436 = vpack.c.b16 %v3444, %v3436
        %v4437 = vpack.c.b16 %v3445, %v3437
        %v4438 = vpack.c.b16 %v3454, %v3446
        %v4439 = vpack.c.b16 %v3455, %v3447
        %v4440 = vpack.c.b16 %v3456, %v3448
        %v4441 = vpack.c.b16 %v3457, %v3449
        %v4442 = vpack.c.b16 %v3458, %v3450
        %v4443 = vpack.c.b16 %v3459, %v3451
        %v4444 = vpack.c.b16 %v3460, %v3452
        %v4445 = vpack.c.b16 %v3461, %v3453
        %v4446 = vpack.c.b16 %v3470, %v3462
        %v4447 = vpack.c.b16 %v3471, %v3463
        %v4448 = vpack.c.b16 %v3472, %v3464
        %v4449 = vpack.c.b16 %v3473, %v3465
        %v4450 = vpack.c.b16 %v3474, %v3466
        %v4451 = vpack.c.b16 %v3475, %v3467
        %v4452 = vpack.c.b16 %v3476, %v3468
        %v4453 = vpack.c.b16 %v3477, %v3469
        %v4454 = vpack.c.b16 %v3486, %v3478
        %v4455 = vpack.c.b16 %v3487, %v3479
        %v4456 = vpack.c.b16 %v3488, %v3480
        %v4457 = vpack.c.b16 %v3489, %v3481
        %v4458 = vpack.c.b16 %v3490, %v3482
        %v4459 = vpack.c.b16 %v3491, %v3483
        %v4460 = vpack.c.b16 %v3492, %v3484
        %v4461 = vpack.c.b16 %v3493, %v3485
        %v4462 = vpack.c.b16 %v3502, %v3494
        %v4463 = vpack.c.b16 %v3503, %v3495
        %v4464 = vpack.c.b16 %v3504, %v3496
        %v4465 = vpack.c.b16 %v3505, %v3497
        %v4466 = vpack.c.b16 %v3506, %v3498
        %v4467 = vpack.c.b16 %v3507, %v3499
        %v4468 = vpack.c.b16 %v3508, %v3500
        %v4469 = vpack.c.b16 %v3509, %v3501
        %v4470 = vpack.c.b16 %v3518, %v3510
        %v4471 = vpack.c.b16 %v3519, %v3511
        %v4472 = vpack.c.b16 %v3520, %v3512
        %v4473 = vpack.c.b16 %v3521, %v3513
        %v4474 = vpack.c.b16 %v3522, %v3514
        %v4475 = vpack.c.b16 %v3523, %v3515
        %v4476 = vpack.c.b16 %v3524, %v3516
        %v4477 = vpack.c.b16 %v3525, %v3517
        %v4478 = vpack.c.b16 %v3534, %v3526
        %v4479 = vpack.c.b16 %v3535, %v3527
        %v4480 = vpack.c.b16 %v3536, %v3528
        %v4481 = vpack.c.b16 %v3537, %v3529
        %v4482 = vpack.c.b16 %v3538, %v3530
        %v4483 = vpack.c.b16 %v3539, %v3531
        %v4484 = vpack.c.b16 %v3540, %v3532
        %v4485 = vpack.c.b16 %v3541, %v3533
        %v4486 = vpack.c.b16 %v3550, %v3542
        %v4487 = vpack.c.b16 %v3551, %v3543
        %v4488 = vpack.c.b16 %v3552, %v3544
        %v4489 = vpack.c.b16 %v3553, %v3545
        %v4490 = vpack.c.b16 %v3554, %v3546
        %v4491 = vpack.c.b16 %v3555, %v3547
        %v4492 = vpack.c.b16 %v3556, %v3548
        %v4493 = vpack.c.b16 %v3557, %v3549
        %v4494 = vpack.c.b16 %v3566, %v3558
        %v4495 = vpack.c.b16 %v3567, %v3559
        %v4496 = vpack.c.b16 %v3568, %v3560
        %v4497 = vpack.c.b16 %v3569, %v3561
        %v4498 = vpack.c.b16 %v3570, %v3562
        %v4499 = vpack.c.b16 %v3571, %v3563
        %v4500 = vpack.c.b16 %v3572, %v3564
        %v4501 = vpack.c.b16 %v3573, %v3565
        %v4502 = vpack.c.b16 %v3582, %v3574
        %v4503 = vpack.c.b16 %v3583, %v3575
        %v4504 = vpack.c.b16 %v3584, %v3576
        %v4505 = vpack.c.b16 %v3585, %v3577
        %v4506 = vpack.c.b16 %v3586, %v3578
        %v4507 = vpack.c.b16 %v3587, %v3579
        %v4508 = vpack.c.b16 %v3588, %v3580
        %v4509 = vpack.c.b16 %v3589, %v3581
        %v4510 = vpack.c.b16 %v3598, %v3590
        %v4511 = vpack.c.b16 %v3599, %v3591
        %v4512 = vpack.c.b16 %v3600, %v3592
        %v4513 = vpack.c.b16 %v3601, %v3593
        %v4514 = vpack.c.b16 %v3602, %v3594
        %v4515 = vpack.c.b16 %v3603, %v3595
        %v4516 = vpack.c.b16 %v3604, %v3596
        %v4517 = vpack.c.b16 %v3605, %v3597
        %v4518 = vpack.c.b16 %v3614, %v3606
        %v4519 = vpack.c.b16 %v3615, %v3607
        %v4520 = vpack.c.b16 %v3616, %v3608
        %v4521 = vpack.c.b16 %v3617, %v3609
        %v4522 = vpack.c.b16 %v3618, %v3610
        %v4523 = vpack.c.b16 %v3619, %v3611
        %v4524 = vpack.c.b16 %v3620, %v3612
        %v4525 = vpack.c.b16 %v3621, %v3613
        %v4526 = vpack.c.b16 %v3630, %v3622
        %v4527 = vpack.c.b16 %v3631, %v3623
        %v4528 = vpack.c.b16 %v3632, %v3624
        %v4529 = vpack.c.b16 %v3633, %v3625
        %v4530 = vpack.c.b16 %v3634, %v3626
        %v4531 = vpack.c.b16 %v3635, %v3627
        %v4532 = vpack.c.b16 %v3636, %v3628
        %v4533 = vpack.c.b16 %v3637, %v3629
        %v4534 = vpack.c.b16 %v3646, %v3638
        %v4535 = vpack.c.b16 %v3647, %v3639
        %v4536 = vpack.c.b16 %v3648, %v3640
        %v4537 = vpack.c.b16 %v3649, %v3641
        %v4538 = vpack.c.b16 %v3650, %v3642
        %v4539 = vpack.c.b16 %v3651, %v3643
        %v4540 = vpack.c.b16 %v3652, %v3644
        %v4541 = vpack.c.b16 %v3653, %v3645
        %v4542 = vpack.c.b16 %v3662, %v3654
        %v4543 = vpack.c.b16 %v3663, %v3655
        %v4544 = vpack.c.b16 %v3664, %v3656
        %v4545 = vpack.c.b16 %v3665, %v3657
        %v4546 = vpack.c.b16 %v3666, %v3658
        %v4547 = vpack.c.b16 %v3667, %v3659
        %v4548 = vpack.c.b16 %v3668, %v3660
        %v4549 = vpack.c.b16 %v3669, %v3661
        %v4550 = vpack.c.b16 %v3678, %v3670
        %v4551 = vpack.c.b16 %v3679, %v3671
        %v4552 = vpack.c.b16 %v3680, %v3672
        %v4553 = vpack.c.b16 %v3681, %v3673
        %v4554 = vpack.c.b16 %v3682, %v3674
        %v4555 = vpack.c.b16 %v3683, %v3675
        %v4556 = vpack.c.b16 %v3684, %v3676
        %v4557 = vpack.c.b16 %v3685, %v3677
        %v4558 = vpack.c.b16 %v3694, %v3686
        %v4559 = vpack.c.b16 %v3695, %v3687
        %v4560 = vpack.c.b16 %v3696, %v3688
        %v4561 = vpack.c.b16 %v3697, %v3689
        %v4562 = vpack.c.b16 %v3698, %v3690
        %v4563 = vpack.c.b16 %v3699, %v3691
        %v4564 = vpack.c.b16 %v3700, %v3692
        %v4565 = vpack.c.b16 %v3701, %v3693
        %v4566 = vpack.c.b16 %v3710, %v3702
        %v4567 = vpack.c.b16 %v3711, %v3703
        %v4568 = vpack.c.b16 %v3712, %v3704
        %v4569 = vpack.c.b16 %v3713, %v3705
        %v4570 = vpack.c.b16 %v3714, %v3706
        %v4571 = vpack.c.b16 %v3715, %v3707
        %v4572 = vpack.c.b16 %v3716, %v3708
        %v4573 = vpack.c.b16 %v3717, %v3709
        %v4574 = vpack.c.b16 %v3726, %v3718
        %v4575 = vpack.c.b16 %v3727, %v3719
        %v4576 = vpack.c.b16 %v3728, %v3720
        %v4577 = vpack.c.b16 %v3729, %v3721
        %v4578 = vpack.c.b16 %v3730, %v3722
        %v4579 = vpack.c.b16 %v3731, %v3723
        %v4580 = vpack.c.b16 %v3732, %v3724
        %v4581 = vpack.c.b16 %v3733, %v3725
        %v4582 = vpack.c.b16 %v3742, %v3734
        %v4583 = vpack.c.b16 %v3743, %v3735
        %v4584 = vpack.c.b16 %v3744, %v3736
        %v4585 = vpack.c.b16 %v3745, %v3737
        %v4586 = vpack.c.b16 %v3746, %v3738
        %v4587 = vpack.c.b16 %v3747, %v3739
        %v4588 = vpack.c.b16 %v3748, %v3740
        %v4589 = vpack.c.b16 %v3749, %v3741
        %v4590 = vpack.c.b16 %v3758, %v3750
        %v4591 = vpack.c.b16 %v3759, %v3751
        %v4592 = vpack.c.b16 %v3760, %v3752
        %v4593 = vpack.c.b16 %v3761, %v3753
        %v4594 = vpack.c.b16 %v3762, %v3754
        %v4595 = vpack.c.b16 %v3763, %v3755
        %v4596 = vpack.c.b16 %v3764, %v3756
        %v4597 = vpack.c.b16 %v3765, %v3757
        %v4598 = vpack.c.b16 %v3774, %v3766
        %v4599 = vpack.c.b16 %v3775, %v3767
        %v4600 = vpack.c.b16 %v3776, %v3768
        %v4601 = vpack.c.b16 %v3777, %v3769
        %v4602 = vpack.c.b16 %v3778, %v3770
        %v4603 = vpack.c.b16 %v3779, %v3771
        %v4604 = vpack.c.b16 %v3780, %v3772
        %v4605 = vpack.c.b16 %v3781, %v3773
        %v4606 = vpack.c.b16 %v3790, %v3782
        %v4607 = vpack.c.b16 %v3791, %v3783
        %v4608 = vpack.c.b16 %v3792, %v3784
        %v4609 = vpack.c.b16 %v3793, %v3785
        %v4610 = vpack.c.b16 %v3794, %v3786
        %v4611 = vpack.c.b16 %v3795, %v3787
        %v4612 = vpack.c.b16 %v3796, %v3788
        %v4613 = vpack.c.b16 %v3797, %v3789
        %v4614 = vpack.c.b16 %v3806, %v3798
        %v4615 = vpack.c.b16 %v3807, %v3799
        %v4616 = vpack.c.b16 %v3808, %v3800
        %v4617 = vpack.c.b16 %v3809, %v3801
        %v4618 = vpack.c.b16 %v3810, %v3802
        %v4619 = vpack.c.b16 %v3811, %v3803
        %v4620 = vpack.c.b16 %v3812, %v3804
        %v4621 = vpack.c.b16 %v3813, %v3805
        %v4622 = vpack.c.b16 %v3822, %v3814
        %v4623 = vpack.c.b16 %v3823, %v3815
        %v4624 = vpack.c.b16 %v3824, %v3816
        %v4625 = vpack.c.b16 %v3825, %v3817
        %v4626 = vpack.c.b16 %v3826, %v3818
        %v4627 = vpack.c.b16 %v3827, %v3819
        %v4628 = vpack.c.b16 %v3828, %v3820
        %v4629 = vpack.c.b16 %v3829, %v3821
        %v4630 = vpack.c.b16 %v3838, %v3830
        %v4631 = vpack.c.b16 %v3839, %v3831
        %v4632 = vpack.c.b16 %v3840, %v3832
        %v4633 = vpack.c.b16 %v3841, %v3833
        %v4634 = vpack.c.b16 %v3842, %v3834
        %v4635 = vpack.c.b16 %v3843, %v3835
        %v4636 = vpack.c.b16 %v3844, %v3836
        %v4637 = vpack.c.b16 %v3845, %v3837
        %v4638 = vpack.c.b16 %v3854, %v3846
        %v4639 = vpack.c.b16 %v3855, %v3847
        %v4640 = vpack.c.b16 %v3856, %v3848
        %v4641 = vpack.c.b16 %v3857, %v3849
        %v4642 = vpack.c.b16 %v3858, %v3850
        %v4643 = vpack.c.b16 %v3859, %v3851
        %v4644 = vpack.c.b16 %v3860, %v3852
        %v4645 = vpack.c.b16 %v3861, %v3853
        %v4646 = vpack.c.b16 %v3870, %v3862
        %v4647 = vpack.c.b16 %v3871, %v3863
        %v4648 = vpack.c.b16 %v3872, %v3864
        %v4649 = vpack.c.b16 %v3873, %v3865
        %v4650 = vpack.c.b16 %v3874, %v3866
        %v4651 = vpack.c.b16 %v3875, %v3867
        %v4652 = vpack.c.b16 %v3876, %v3868
        %v4653 = vpack.c.b16 %v3877, %v3869
        %v4654 = vpack.c.b16 %v3886, %v3878
        %v4655 = vpack.c.b16 %v3887, %v3879
        %v4656 = vpack.c.b16 %v3888, %v3880
        %v4657 = vpack.c.b16 %v3889, %v3881
        %v4658 = vpack.c.b16 %v3890, %v3882
        %v4659 = vpack.c.b16 %v3891, %v3883
        %v4660 = vpack.c.b16 %v3892, %v3884
        %v4661 = vpack.c.b16 %v3893, %v3885
        %v4662 = vpack.c.b16 %v3902, %v3894
        %v4663 = vpack.c.b16 %v3903, %v3895
        %v4664 = vpack.c.b16 %v3904, %v3896
        %v4665 = vpack.c.b16 %v3905, %v3897
        %v4666 = vpack.c.b16 %v3906, %v3898
        %v4667 = vpack.c.b16 %v3907, %v3899
        %v4668 = vpack.c.b16 %v3908, %v3900
        %v4669 = vpack.c.b16 %v3909, %v3901
        %v4670 = vpack.c.b16 %v3918, %v3910
        %v4671 = vpack.c.b16 %v3919, %v3911
        %v4672 = vpack.c.b16 %v3920, %v3912
        %v4673 = vpack.c.b16 %v3921, %v3913
        %v4674 = vpack.c.b16 %v3922, %v3914
        %v4675 = vpack.c.b16 %v3923, %v3915
        %v4676 = vpack.c.b16 %v3924, %v3916
        %v4677 = vpack.c.b16 %v3925, %v3917
        %v4678 = vpack.c.b16 %v3934, %v3926
        %v4679 = vpack.c.b16 %v3935, %v3927
        %v4680 = vpack.c.b16 %v3936, %v3928
        %v4681 = vpack.c.b16 %v3937, %v3929
        %v4682 = vpack.c.b16 %v3938, %v3930
        %v4683 = vpack.c.b16 %v3939, %v3931
        %v4684 = vpack.c.b16 %v3940, %v3932
        %v4685 = vpack.c.b16 %v3941, %v3933
        %v4686 = vpack.c.b16 %v3950, %v3942
        %v4687 = vpack.c.b16 %v3951, %v3943
        %v4688 = vpack.c.b16 %v3952, %v3944
        %v4689 = vpack.c.b16 %v3953, %v3945
        %v4690 = vpack.c.b16 %v3954, %v3946
        %v4691 = vpack.c.b16 %v3955, %v3947
        %v4692 = vpack.c.b16 %v3956, %v3948
        %v4693 = vpack.c.b16 %v3957, %v3949
        %v4694 = vpack.c.b16 %v3966, %v3958
        %v4695 = vpack.c.b16 %v3967, %v3959
        %v4696 = vpack.c.b16 %v3968, %v3960
        %v4697 = vpack.c.b16 %v3969, %v3961
        %v4698 = vpack.c.b16 %v3970, %v3962
        %v4699 = vpack.c.b16 %v3971, %v3963
        %v4700 = vpack.c.b16 %v3972, %v3964
        %v4701 = vpack.c.b16 %v3973, %v3965
        %v4702 = vpack.c.b16 %v3982, %v3974
        %v4703 = vpack.c.b16 %v3983, %v3975
        %v4704 = vpack.c.b16 %v3984, %v3976
        %v4705 = vpack.c.b16 %v3985, %v3977
        %v4706 = vpack.c.b16 %v3986, %v3978
        %v4707 = vpack.c.b16 %v3987, %v3979
        %v4708 = vpack.c.b16 %v3988, %v3980
        %v4709 = vpack.c.b16 %v3989, %v3981
        %v4710 = vpack.c.b16 %v3998, %v3990
        %v4711 = vpack.c.b16 %v3999, %v3991
        %v4712 = vpack.c.b16 %v4000, %v3992
        %v4713 = vpack.c.b16 %v4001, %v3993
        %v4714 = vpack.c.b16 %v4002, %v3994
        %v4715 = vpack.c.b16 %v4003, %v3995
        %v4716 = vpack.c.b16 %v4004, %v3996
        %v4717 = vpack.c.b16 %v4005, %v3997
        %v4718 = vpack.c.b16 %v4014, %v4006
        %v4719 = vpack.c.b16 %v4015, %v4007
        %v4720 = vpack.c.b16 %v4016, %v4008
        %v4721 = vpack.c.b16 %v4017, %v4009
        %v4722 = vpack.c.b16 %v4018, %v4010
        %v4723 = vpack.c.b16 %v4019, %v4011
        %v4724 = vpack.c.b16 %v4020, %v4012
        %v4725 = vpack.c.b16 %v4021, %v4013
        %v4726 = vpack.c.b16 %v4030, %v4022
        %v4727 = vpack.c.b16 %v4031, %v4023
        %v4728 = vpack.c.b16 %v4032, %v4024
        %v4729 = vpack.c.b16 %v4033, %v4025
        %v4730 = vpack.c.b16 %v4034, %v4026
        %v4731 = vpack.c.b16 %v4035, %v4027
        %v4732 = vpack.c.b16 %v4036, %v4028
        %v4733 = vpack.c.b16 %v4037, %v4029
        %v4734 = vpack.c.b16 %v4046, %v4038
        %v4735 = vpack.c.b16 %v4047, %v4039
        %v4736 = vpack.c.b16 %v4048, %v4040
        %v4737 = vpack.c.b16 %v4049, %v4041
        %v4738 = vpack.c.b16 %v4050, %v4042
        %v4739 = vpack.c.b16 %v4051, %v4043
        %v4740 = vpack.c.b16 %v4052, %v4044
        %v4741 = vpack.c.b16 %v4053, %v4045
        %v4742 = vpack.c.b16 %v4062, %v4054
        %v4743 = vpack.c.b16 %v4063, %v4055
        %v4744 = vpack.c.b16 %v4064, %v4056
        %v4745 = vpack.c.b16 %v4065, %v4057
        %v4746 = vpack.c.b16 %v4066, %v4058
        %v4747 = vpack.c.b16 %v4067, %v4059
        %v4748 = vpack.c.b16 %v4068, %v4060
        %v4749 = vpack.c.b16 %v4069, %v4061
        %v4750 = vpack.c.b16 %v4078, %v4070
        %v4751 = vpack.c.b16 %v4079, %v4071
        %v4752 = vpack.c.b16 %v4080, %v4072
        %v4753 = vpack.c.b16 %v4081, %v4073
        %v4754 = vpack.c.b16 %v4082, %v4074
        %v4755 = vpack.c.b16 %v4083, %v4075
        %v4756 = vpack.c.b16 %v4084, %v4076
        %v4757 = vpack.c.b16 %v4085, %v4077
        %v4758 = vpack.c.b16 %v4094, %v4086
        %v4759 = vpack.c.b16 %v4095, %v4087
        %v4760 = vpack.c.b16 %v4096, %v4088
        %v4761 = vpack.c.b16 %v4097, %v4089
        %v4762 = vpack.c.b16 %v4098, %v4090
        %v4763 = vpack.c.b16 %v4099, %v4091
        %v4764 = vpack.c.b16 %v4100, %v4092
        %v4765 = vpack.c.b16 %v4101, %v4093
        %v4766 = vpack.c.b16 %v4110, %v4102
        %v4767 = vpack.c.b16 %v4111, %v4103
        %v4768 = vpack.c.b16 %v4112, %v4104
        %v4769 = vpack.c.b16 %v4113, %v4105
        %v4770 = vpack.c.b16 %v4114, %v4106
        %v4771 = vpack.c.b16 %v4115, %v4107
        %v4772 = vpack.c.b16 %v4116, %v4108
        %v4773 = vpack.c.b16 %v4117, %v4109
        %v4774 = vpack.c.b16 %v4126, %v4118
        %v4775 = vpack.c.b16 %v4127, %v4119
        %v4776 = vpack.c.b16 %v4128, %v4120
        %v4777 = vpack.c.b16 %v4129, %v4121
        %v4778 = vpack.c.b16 %v4130, %v4122
        %v4779 = vpack.c.b16 %v4131, %v4123
        %v4780 = vpack.c.b16 %v4132, %v4124
        %v4781 = vpack.c.b16 %v4133, %v4125
        %v4782 = vpack.c.b16 %v4142, %v4134
        %v4783 = vpack.c.b16 %v4143, %v4135
        %v4784 = vpack.c.b16 %v4144, %v4136
        %v4785 = vpack.c.b16 %v4145, %v4137
        %v4786 = vpack.c.b16 %v4146, %v4138
        %v4787 = vpack.c.b16 %v4147, %v4139
        %v4788 = vpack.c.b16 %v4148, %v4140
        %v4789 = vpack.c.b16 %v4149, %v4141
        %v4790 = vpack.c.b16 %v4158, %v4150
        %v4791 = vpack.c.b16 %v4159, %v4151
        %v4792 = vpack.c.b16 %v4160, %v4152
        %v4793 = vpack.c.b16 %v4161, %v4153
        %v4794 = vpack.c.b16 %v4162, %v4154
        %v4795 = vpack.c.b16 %v4163, %v4155
        %v4796 = vpack.c.b16 %v4164, %v4156
        %v4797 = vpack.c.b16 %v4165, %v4157
        %v4798 = vpack.c.b16 %v4174, %v4166
        %v4799 = vpack.c.b16 %v4175, %v4167
        %v4800 = vpack.c.b16 %v4176, %v4168
        %v4801 = vpack.c.b16 %v4177, %v4169
        %v4802 = vpack.c.b16 %v4178, %v4170
        %v4803 = vpack.c.b16 %v4179, %v4171
        %v4804 = vpack.c.b16 %v4180, %v4172
        %v4805 = vpack.c.b16 %v4181, %v4173
        %v4806 = vpack.c.b16 %v4190, %v4182
        %v4807 = vpack.c.b16 %v4191, %v4183
        %v4808 = vpack.c.b16 %v4192, %v4184
        %v4809 = vpack.c.b16 %v4193, %v4185
        %v4810 = vpack.c.b16 %v4194, %v4186
        %v4811 = vpack.c.b16 %v4195, %v4187
        %v4812 = vpack.c.b16 %v4196, %v4188
        %v4813 = vpack.c.b16 %v4197, %v4189
        %v4814 = vpack.c.b16 %v4206, %v4198
        %v4815 = vpack.c.b16 %v4207, %v4199
        %v4816 = vpack.c.b16 %v4208, %v4200
        %v4817 = vpack.c.b16 %v4209, %v4201
        %v4818 = vpack.c.b16 %v4210, %v4202
        %v4819 = vpack.c.b16 %v4211, %v4203
        %v4820 = vpack.c.b16 %v4212, %v4204
        %v4821 = vpack.c.b16 %v4213, %v4205
        %v4822 = vpack.c.b16 %v4222, %v4214
        %v4823 = vpack.c.b16 %v4223, %v4215
        %v4824 = vpack.c.b16 %v4224, %v4216
        %v4825 = vpack.c.b16 %v4225, %v4217
        %v4826 = vpack.c.b16 %v4226, %v4218
        %v4827 = vpack.c.b16 %v4227, %v4219
        %v4828 = vpack.c.b16 %v4228, %v4220
        %v4829 = vpack.c.b16 %v4229, %v4221
        %v4830 = vpack.c.b16 %v4238, %v4230
        %v4831 = vpack.c.b16 %v4239, %v4231
        %v4832 = vpack.c.b16 %v4240, %v4232
        %v4833 = vpack.c.b16 %v4241, %v4233
        %v4834 = vpack.c.b16 %v4242, %v4234
        %v4835 = vpack.c.b16 %v4243, %v4235
        %v4836 = vpack.c.b16 %v4244, %v4236
        %v4837 = vpack.c.b16 %v4245, %v4237
        %v4838 = vpack.c.b16 %v4254, %v4246
        %v4839 = vpack.c.b16 %v4255, %v4247
        %v4840 = vpack.c.b16 %v4256, %v4248
        %v4841 = vpack.c.b16 %v4257, %v4249
        %v4842 = vpack.c.b16 %v4258, %v4250
        %v4843 = vpack.c.b16 %v4259, %v4251
        %v4844 = vpack.c.b16 %v4260, %v4252
        %v4845 = vpack.c.b16 %v4261, %v4253
        %v4846 = vpack.c.b16 %v4270, %v4262
        %v4847 = vpack.c.b16 %v4271, %v4263
        %v4848 = vpack.c.b16 %v4272, %v4264
        %v4849 = vpack.c.b16 %v4273, %v4265
        %v4850 = vpack.c.b16 %v4274, %v4266
        %v4851 = vpack.c.b16 %v4275, %v4267
        %v4852 = vpack.c.b16 %v4276, %v4268
        %v4853 = vpack.c.b16 %v4277, %v4269
        %v4854 = vpack.c.b16 %v4286, %v4278
        %v4855 = vpack.c.b16 %v4287, %v4279
        %v4856 = vpack.c.b16 %v4288, %v4280
        %v4857 = vpack.c.b16 %v4289, %v4281
        %v4858 = vpack.c.b16 %v4290, %v4282
        %v4859 = vpack.c.b16 %v4291, %v4283
        %v4860 = vpack.c.b16 %v4292, %v4284
        %v4861 = vpack.c.b16 %v4293, %v4285
        %v4862 = vpack.c.b16 %v4302, %v4294
        %v4863 = vpack.c.b16 %v4303, %v4295
        %v4864 = vpack.c.b16 %v4304, %v4296
        %v4865 = vpack.c.b16 %v4305, %v4297
        %v4866 = vpack.c.b16 %v4306, %v4298
        %v4867 = vpack.c.b16 %v4307, %v4299
        %v4868 = vpack.c.b16 %v4308, %v4300
        %v4869 = vpack.c.b16 %v4309, %v4301
        %v4870 = vpack.c.b16 %v4318, %v4310
        %v4871 = vpack.c.b16 %v4319, %v4311
        %v4872 = vpack.c.b16 %v4320, %v4312
        %v4873 = vpack.c.b16 %v4321, %v4313
        %v4874 = vpack.c.b16 %v4322, %v4314
        %v4875 = vpack.c.b16 %v4323, %v4315
        %v4876 = vpack.c.b16 %v4324, %v4316
        %v4877 = vpack.c.b16 %v4325, %v4317
        %v4878 = vpack.c.b16 %v4334, %v4326
        %v4879 = vpack.c.b16 %v4335, %v4327
        %v4880 = vpack.c.b16 %v4336, %v4328
        %v4881 = vpack.c.b16 %v4337, %v4329
        %v4882 = vpack.c.b16 %v4338, %v4330
        %v4883 = vpack.c.b16 %v4339, %v4331
        %v4884 = vpack.c.b16 %v4340, %v4332
        %v4885 = vpack.c.b16 %v4341, %v4333
        %v4886 = vpack.c.b16 %v4350, %v4342
        %v4887 = vpack.c.b16 %v4351, %v4343
        %v4888 = vpack.c.b16 %v4352, %v4344
        %v4889 = vpack.c.b16 %v4353, %v4345
        %v4890 = vpack.c.b16 %v4354, %v4346
        %v4891 = vpack.c.b16 %v4355, %v4347
        %v4892 = vpack.c.b16 %v4356, %v4348
        %v4893 = vpack.c.b16 %v4357, %v4349
        %v4894 = vpack.c.b16 %v4366, %v4358
        %v4895 = vpack.c.b16 %v4367, %v4359
        %v4896 = vpack.c.b16 %v4368, %v4360
        %v4897 = vpack.c.b16 %v4369, %v4361
        %v4898 = vpack.c.b16 %v4370, %v4362
        %v4899 = vpack.c.b16 %v4371, %v4363
        %v4900 = vpack.c.b16 %v4372, %v4364
        %v4901 = vpack.c.b16 %v4373, %v4365
        %v4902 = vpack.c.b16 %v4382, %v4374
        %v4903 = vpack.c.b16 %v4383, %v4375
        %v4904 = vpack.c.b16 %v4384, %v4376
        %v4905 = vpack.c.b16 %v4385, %v4377
        %v4906 = vpack.c.b16 %v4386, %v4378
        %v4907 = vpack.c.b16 %v4387, %v4379
        %v4908 = vpack.c.b16 %v4388, %v4380
        %v4909 = vpack.c.b16 %v4389, %v4381
        %v4910 = vpack.c.b16 %v4398, %v4390
        %v4911 = vpack.c.b16 %v4399, %v4391
        %v4912 = vpack.c.b16 %v4400, %v4392
        %v4913 = vpack.c.b16 %v4401, %v4393
        %v4914 = vpack.c.b16 %v4402, %v4394
        %v4915 = vpack.c.b16 %v4403, %v4395
        %v4916 = vpack.c.b16 %v4404, %v4396
        %v4917 = vpack.c.b16 %v4405, %v4397
        %5430 = vmatpush.bf16.msra.mxu0 %v4462
        %5431 = vmatpush.bf16.msra.mxu0 %v4454
        %5432 = vmatpush.bf16.msra.mxu0 %v4446
        %5433 = vmatpush.bf16.msra.mxu0 %v4438
        %5434 = vmatpush.bf16.msra.mxu0 %v4430
        %5435 = vmatpush.bf16.msra.mxu0 %v4422
        %5436 = vmatpush.bf16.msra.mxu0 %v4414
        %5437 = vmatpush.bf16.msra.mxu0 %v4406
        %5438 = vmatmul.bf16.gmra.mxu0 %v2330
        %v5439 = vpop.f32.mrf.mxu0
        %v5440 = vadd.f32 %v2854, %v5439
        %v5441 = vpop.f32.mrf.mxu0
        %5442 = vdwg.mxu0
        %5443 = vmatpush.bf16.msra.mxu0 %v4526
        %5444 = vmatpush.bf16.msra.mxu0 %v4518
        %5445 = vmatpush.bf16.msra.mxu0 %v4510
        %5446 = vmatpush.bf16.msra.mxu0 %v4502
        %5447 = vmatpush.bf16.msra.mxu0 %v4494
        %5448 = vmatpush.bf16.msra.mxu0 %v4486
        %5449 = vmatpush.bf16.msra.mxu0 %v4478
        %5450 = vmatpush.bf16.msra.mxu0 %v4470
        %5451 = vmatmul.bf16.gmra.mxu0 %v2331
        %v5452 = vpop.f32.mrf.mxu0
        %v5453 = vadd.f32 %v5440, %v5452
        %v5454 = vpop.f32.mrf.mxu0
        %5455 = vdwg.mxu0
        %5456 = vmatpush.bf16.msra.mxu0 %v4590
        %5457 = vmatpush.bf16.msra.mxu0 %v4582
        %5458 = vmatpush.bf16.msra.mxu0 %v4574
        %5459 = vmatpush.bf16.msra.mxu0 %v4566
        %5460 = vmatpush.bf16.msra.mxu0 %v4558
        %5461 = vmatpush.bf16.msra.mxu0 %v4550
        %5462 = vmatpush.bf16.msra.mxu0 %v4542
        %5463 = vmatpush.bf16.msra.mxu0 %v4534
        %5464 = vmatmul.bf16.gmra.mxu0 %v2332
        %v5465 = vpop.f32.mrf.mxu0
        %v5466 = vadd.f32 %v5453, %v5465
        %v5467 = vpop.f32.mrf.mxu0
        %5468 = vdwg.mxu0
        %5469 = vmatpush.bf16.msra.mxu0 %v4654
        %5470 = vmatpush.bf16.msra.mxu0 %v4646
        %5471 = vmatpush.bf16.msra.mxu0 %v4638
        %5472 = vmatpush.bf16.msra.mxu0 %v4630
        %5473 = vmatpush.bf16.msra.mxu0 %v4622
        %5474 = vmatpush.bf16.msra.mxu0 %v4614
        %5475 = vmatpush.bf16.msra.mxu0 %v4606
        %5476 = vmatpush.bf16.msra.mxu0 %v4598
        %5477 = vmatmul.bf16.gmra.mxu0 %v2333
        %v5478 = vpop.f32.mrf.mxu0
        %v5479 = vadd.f32 %v5466, %v5478
        %v5480 = vpop.f32.mrf.mxu0
        %5481 = vdwg.mxu0
        %5482 = vmatpush.bf16.msra.mxu0 %v4718
        %5483 = vmatpush.bf16.msra.mxu0 %v4710
        %5484 = vmatpush.bf16.msra.mxu0 %v4702
        %5485 = vmatpush.bf16.msra.mxu0 %v4694
        %5486 = vmatpush.bf16.msra.mxu0 %v4686
        %5487 = vmatpush.bf16.msra.mxu0 %v4678
        %5488 = vmatpush.bf16.msra.mxu0 %v4670
        %5489 = vmatpush.bf16.msra.mxu0 %v4662
        %5490 = vmatmul.bf16.gmra.mxu0 %v2334
        %v5491 = vpop.f32.mrf.mxu0
        %v5492 = vadd.f32 %v5479, %v5491
        %v5493 = vpop.f32.mrf.mxu0
        %5494 = vdwg.mxu0
        %5495 = vmatpush.bf16.msra.mxu0 %v4782
        %5496 = vmatpush.bf16.msra.mxu0 %v4774
        %5497 = vmatpush.bf16.msra.mxu0 %v4766
        %5498 = vmatpush.bf16.msra.mxu0 %v4758
        %5499 = vmatpush.bf16.msra.mxu0 %v4750
        %5500 = vmatpush.bf16.msra.mxu0 %v4742
        %5501 = vmatpush.bf16.msra.mxu0 %v4734
        %5502 = vmatpush.bf16.msra.mxu0 %v4726
        %5503 = vmatmul.bf16.gmra.mxu0 %v2335
        %v5504 = vpop.f32.mrf.mxu0
        %v5505 = vadd.f32 %v5492, %v5504
        %v5506 = vpop.f32.mrf.mxu0
        %5507 = vdwg.mxu0
        %5508 = vmatpush.bf16.msra.mxu0 %v4846
        %5509 = vmatpush.bf16.msra.mxu0 %v4838
        %5510 = vmatpush.bf16.msra.mxu0 %v4830
        %5511 = vmatpush.bf16.msra.mxu0 %v4822
        %5512 = vmatpush.bf16.msra.mxu0 %v4814
        %5513 = vmatpush.bf16.msra.mxu0 %v4806
        %5514 = vmatpush.bf16.msra.mxu0 %v4798
        %5515 = vmatpush.bf16.msra.mxu0 %v4790
        %5516 = vmatmul.bf16.gmra.mxu0 %v2336
        %v5517 = vpop.f32.mrf.mxu0
        %v5518 = vadd.f32 %v5505, %v5517
        %v5519 = vpop.f32.mrf.mxu0
        %5520 = vdwg.mxu0
        %5521 = vmatpush.bf16.msra.mxu0 %v4910
        %5522 = vmatpush.bf16.msra.mxu0 %v4902
        %5523 = vmatpush.bf16.msra.mxu0 %v4894
        %5524 = vmatpush.bf16.msra.mxu0 %v4886
        %5525 = vmatpush.bf16.msra.mxu0 %v4878
        %5526 = vmatpush.bf16.msra.mxu0 %v4870
        %5527 = vmatpush.bf16.msra.mxu0 %v4862
        %5528 = vmatpush.bf16.msra.mxu0 %v4854
        %5529 = vmatmul.bf16.gmra.mxu0 %v2337
        %v5530 = vpop.f32.mrf.mxu0
        %v5531 = vadd.f32 %v5518, %v5530
        %v5532 = vpop.f32.mrf.mxu0
        %5533 = vdwg.mxu0
        %5534 = vmatpush.bf16.msra.mxu0 %v4463
        %5535 = vmatpush.bf16.msra.mxu0 %v4455
        %5536 = vmatpush.bf16.msra.mxu0 %v4447
        %5537 = vmatpush.bf16.msra.mxu0 %v4439
        %5538 = vmatpush.bf16.msra.mxu0 %v4431
        %5539 = vmatpush.bf16.msra.mxu0 %v4423
        %5540 = vmatpush.bf16.msra.mxu0 %v4415
        %5541 = vmatpush.bf16.msra.mxu0 %v4407
        %5542 = vmatmul.bf16.gmra.mxu0 %v2330
        %v5543 = vpop.f32.mrf.mxu0
        %v5544 = vadd.f32 %v2855, %v5543
        %v5545 = vpop.f32.mrf.mxu0
        %5546 = vdwg.mxu0
        %5547 = vmatpush.bf16.msra.mxu0 %v4527
        %5548 = vmatpush.bf16.msra.mxu0 %v4519
        %5549 = vmatpush.bf16.msra.mxu0 %v4511
        %5550 = vmatpush.bf16.msra.mxu0 %v4503
        %5551 = vmatpush.bf16.msra.mxu0 %v4495
        %5552 = vmatpush.bf16.msra.mxu0 %v4487
        %5553 = vmatpush.bf16.msra.mxu0 %v4479
        %5554 = vmatpush.bf16.msra.mxu0 %v4471
        %5555 = vmatmul.bf16.gmra.mxu0 %v2331
        %v5556 = vpop.f32.mrf.mxu0
        %v5557 = vadd.f32 %v5544, %v5556
        %v5558 = vpop.f32.mrf.mxu0
        %5559 = vdwg.mxu0
        %5560 = vmatpush.bf16.msra.mxu0 %v4591
        %5561 = vmatpush.bf16.msra.mxu0 %v4583
        %5562 = vmatpush.bf16.msra.mxu0 %v4575
        %5563 = vmatpush.bf16.msra.mxu0 %v4567
        %5564 = vmatpush.bf16.msra.mxu0 %v4559
        %5565 = vmatpush.bf16.msra.mxu0 %v4551
        %5566 = vmatpush.bf16.msra.mxu0 %v4543
        %5567 = vmatpush.bf16.msra.mxu0 %v4535
        %5568 = vmatmul.bf16.gmra.mxu0 %v2332
        %v5569 = vpop.f32.mrf.mxu0
        %v5570 = vadd.f32 %v5557, %v5569
        %v5571 = vpop.f32.mrf.mxu0
        %5572 = vdwg.mxu0
        %5573 = vmatpush.bf16.msra.mxu0 %v4655
        %5574 = vmatpush.bf16.msra.mxu0 %v4647
        %5575 = vmatpush.bf16.msra.mxu0 %v4639
        %5576 = vmatpush.bf16.msra.mxu0 %v4631
        %5577 = vmatpush.bf16.msra.mxu0 %v4623
        %5578 = vmatpush.bf16.msra.mxu0 %v4615
        %5579 = vmatpush.bf16.msra.mxu0 %v4607
        %5580 = vmatpush.bf16.msra.mxu0 %v4599
        %5581 = vmatmul.bf16.gmra.mxu0 %v2333
        %v5582 = vpop.f32.mrf.mxu0
        %v5583 = vadd.f32 %v5570, %v5582
        %v5584 = vpop.f32.mrf.mxu0
        %5585 = vdwg.mxu0
        %5586 = vmatpush.bf16.msra.mxu0 %v4719
        %5587 = vmatpush.bf16.msra.mxu0 %v4711
        %5588 = vmatpush.bf16.msra.mxu0 %v4703
        %5589 = vmatpush.bf16.msra.mxu0 %v4695
        %5590 = vmatpush.bf16.msra.mxu0 %v4687
        %5591 = vmatpush.bf16.msra.mxu0 %v4679
        %5592 = vmatpush.bf16.msra.mxu0 %v4671
        %5593 = vmatpush.bf16.msra.mxu0 %v4663
        %5594 = vmatmul.bf16.gmra.mxu0 %v2334
        %v5595 = vpop.f32.mrf.mxu0
        %v5596 = vadd.f32 %v5583, %v5595
        %v5597 = vpop.f32.mrf.mxu0
        %5598 = vdwg.mxu0
        %5599 = vmatpush.bf16.msra.mxu0 %v4783
        %5600 = vmatpush.bf16.msra.mxu0 %v4775
        %5601 = vmatpush.bf16.msra.mxu0 %v4767
        %5602 = vmatpush.bf16.msra.mxu0 %v4759
        %5603 = vmatpush.bf16.msra.mxu0 %v4751
        %5604 = vmatpush.bf16.msra.mxu0 %v4743
        %5605 = vmatpush.bf16.msra.mxu0 %v4735
        %5606 = vmatpush.bf16.msra.mxu0 %v4727
        %5607 = vmatmul.bf16.gmra.mxu0 %v2335
        %v5608 = vpop.f32.mrf.mxu0
        %v5609 = vadd.f32 %v5596, %v5608
        %v5610 = vpop.f32.mrf.mxu0
        %5611 = vdwg.mxu0
        %5612 = vmatpush.bf16.msra.mxu0 %v4847
        %5613 = vmatpush.bf16.msra.mxu0 %v4839
        %5614 = vmatpush.bf16.msra.mxu0 %v4831
        %5615 = vmatpush.bf16.msra.mxu0 %v4823
        %5616 = vmatpush.bf16.msra.mxu0 %v4815
        %5617 = vmatpush.bf16.msra.mxu0 %v4807
        %5618 = vmatpush.bf16.msra.mxu0 %v4799
        %5619 = vmatpush.bf16.msra.mxu0 %v4791
        %5620 = vmatmul.bf16.gmra.mxu0 %v2336
        %v5621 = vpop.f32.mrf.mxu0
        %v5622 = vadd.f32 %v5609, %v5621
        %v5623 = vpop.f32.mrf.mxu0
        %5624 = vdwg.mxu0
        %5625 = vmatpush.bf16.msra.mxu0 %v4911
        %5626 = vmatpush.bf16.msra.mxu0 %v4903
        %5627 = vmatpush.bf16.msra.mxu0 %v4895
        %5628 = vmatpush.bf16.msra.mxu0 %v4887
        %5629 = vmatpush.bf16.msra.mxu0 %v4879
        %5630 = vmatpush.bf16.msra.mxu0 %v4871
        %5631 = vmatpush.bf16.msra.mxu0 %v4863
        %5632 = vmatpush.bf16.msra.mxu0 %v4855
        %5633 = vmatmul.bf16.gmra.mxu0 %v2337
        %v5634 = vpop.f32.mrf.mxu0
        %v5635 = vadd.f32 %v5622, %v5634
        %v5636 = vpop.f32.mrf.mxu0
        %5637 = vdwg.mxu0
        %5638 = vmatpush.bf16.msra.mxu0 %v4464
        %5639 = vmatpush.bf16.msra.mxu0 %v4456
        %5640 = vmatpush.bf16.msra.mxu0 %v4448
        %5641 = vmatpush.bf16.msra.mxu0 %v4440
        %5642 = vmatpush.bf16.msra.mxu0 %v4432
        %5643 = vmatpush.bf16.msra.mxu0 %v4424
        %5644 = vmatpush.bf16.msra.mxu0 %v4416
        %5645 = vmatpush.bf16.msra.mxu0 %v4408
        %5646 = vmatmul.bf16.gmra.mxu0 %v2330
        %v5647 = vpop.f32.mrf.mxu0
        %v5648 = vadd.f32 %v2856, %v5647
        %v5649 = vpop.f32.mrf.mxu0
        %5650 = vdwg.mxu0
        %5651 = vmatpush.bf16.msra.mxu0 %v4528
        %5652 = vmatpush.bf16.msra.mxu0 %v4520
        %5653 = vmatpush.bf16.msra.mxu0 %v4512
        %5654 = vmatpush.bf16.msra.mxu0 %v4504
        %5655 = vmatpush.bf16.msra.mxu0 %v4496
        %5656 = vmatpush.bf16.msra.mxu0 %v4488
        %5657 = vmatpush.bf16.msra.mxu0 %v4480
        %5658 = vmatpush.bf16.msra.mxu0 %v4472
        %5659 = vmatmul.bf16.gmra.mxu0 %v2331
        %v5660 = vpop.f32.mrf.mxu0
        %v5661 = vadd.f32 %v5648, %v5660
        %v5662 = vpop.f32.mrf.mxu0
        %5663 = vdwg.mxu0
        %5664 = vmatpush.bf16.msra.mxu0 %v4592
        %5665 = vmatpush.bf16.msra.mxu0 %v4584
        %5666 = vmatpush.bf16.msra.mxu0 %v4576
        %5667 = vmatpush.bf16.msra.mxu0 %v4568
        %5668 = vmatpush.bf16.msra.mxu0 %v4560
        %5669 = vmatpush.bf16.msra.mxu0 %v4552
        %5670 = vmatpush.bf16.msra.mxu0 %v4544
        %5671 = vmatpush.bf16.msra.mxu0 %v4536
        %5672 = vmatmul.bf16.gmra.mxu0 %v2332
        %v5673 = vpop.f32.mrf.mxu0
        %v5674 = vadd.f32 %v5661, %v5673
        %v5675 = vpop.f32.mrf.mxu0
        %5676 = vdwg.mxu0
        %5677 = vmatpush.bf16.msra.mxu0 %v4656
        %5678 = vmatpush.bf16.msra.mxu0 %v4648
        %5679 = vmatpush.bf16.msra.mxu0 %v4640
        %5680 = vmatpush.bf16.msra.mxu0 %v4632
        %5681 = vmatpush.bf16.msra.mxu0 %v4624
        %5682 = vmatpush.bf16.msra.mxu0 %v4616
        %5683 = vmatpush.bf16.msra.mxu0 %v4608
        %5684 = vmatpush.bf16.msra.mxu0 %v4600
        %5685 = vmatmul.bf16.gmra.mxu0 %v2333
        %v5686 = vpop.f32.mrf.mxu0
        %v5687 = vadd.f32 %v5674, %v5686
        %v5688 = vpop.f32.mrf.mxu0
        %5689 = vdwg.mxu0
        %5690 = vmatpush.bf16.msra.mxu0 %v4720
        %5691 = vmatpush.bf16.msra.mxu0 %v4712
        %5692 = vmatpush.bf16.msra.mxu0 %v4704
        %5693 = vmatpush.bf16.msra.mxu0 %v4696
        %5694 = vmatpush.bf16.msra.mxu0 %v4688
        %5695 = vmatpush.bf16.msra.mxu0 %v4680
        %5696 = vmatpush.bf16.msra.mxu0 %v4672
        %5697 = vmatpush.bf16.msra.mxu0 %v4664
        %5698 = vmatmul.bf16.gmra.mxu0 %v2334
        %v5699 = vpop.f32.mrf.mxu0
        %v5700 = vadd.f32 %v5687, %v5699
        %v5701 = vpop.f32.mrf.mxu0
        %5702 = vdwg.mxu0
        %5703 = vmatpush.bf16.msra.mxu0 %v4784
        %5704 = vmatpush.bf16.msra.mxu0 %v4776
        %5705 = vmatpush.bf16.msra.mxu0 %v4768
        %5706 = vmatpush.bf16.msra.mxu0 %v4760
        %5707 = vmatpush.bf16.msra.mxu0 %v4752
        %5708 = vmatpush.bf16.msra.mxu0 %v4744
        %5709 = vmatpush.bf16.msra.mxu0 %v4736
        %5710 = vmatpush.bf16.msra.mxu0 %v4728
        %5711 = vmatmul.bf16.gmra.mxu0 %v2335
        %v5712 = vpop.f32.mrf.mxu0
        %v5713 = vadd.f32 %v5700, %v5712
        %v5714 = vpop.f32.mrf.mxu0
        %5715 = vdwg.mxu0
        %5716 = vmatpush.bf16.msra.mxu0 %v4848
        %5717 = vmatpush.bf16.msra.mxu0 %v4840
        %5718 = vmatpush.bf16.msra.mxu0 %v4832
        %5719 = vmatpush.bf16.msra.mxu0 %v4824
        %5720 = vmatpush.bf16.msra.mxu0 %v4816
        %5721 = vmatpush.bf16.msra.mxu0 %v4808
        %5722 = vmatpush.bf16.msra.mxu0 %v4800
        %5723 = vmatpush.bf16.msra.mxu0 %v4792
        %5724 = vmatmul.bf16.gmra.mxu0 %v2336
        %v5725 = vpop.f32.mrf.mxu0
        %v5726 = vadd.f32 %v5713, %v5725
        %v5727 = vpop.f32.mrf.mxu0
        %5728 = vdwg.mxu0
        %5729 = vmatpush.bf16.msra.mxu0 %v4912
        %5730 = vmatpush.bf16.msra.mxu0 %v4904
        %5731 = vmatpush.bf16.msra.mxu0 %v4896
        %5732 = vmatpush.bf16.msra.mxu0 %v4888
        %5733 = vmatpush.bf16.msra.mxu0 %v4880
        %5734 = vmatpush.bf16.msra.mxu0 %v4872
        %5735 = vmatpush.bf16.msra.mxu0 %v4864
        %5736 = vmatpush.bf16.msra.mxu0 %v4856
        %5737 = vmatmul.bf16.gmra.mxu0 %v2337
        %v5738 = vpop.f32.mrf.mxu0
        %v5739 = vadd.f32 %v5726, %v5738
        %v5740 = vpop.f32.mrf.mxu0
        %5741 = vdwg.mxu0
        %5742 = vmatpush.bf16.msra.mxu0 %v4465
        %5743 = vmatpush.bf16.msra.mxu0 %v4457
        %5744 = vmatpush.bf16.msra.mxu0 %v4449
        %5745 = vmatpush.bf16.msra.mxu0 %v4441
        %5746 = vmatpush.bf16.msra.mxu0 %v4433
        %5747 = vmatpush.bf16.msra.mxu0 %v4425
        %5748 = vmatpush.bf16.msra.mxu0 %v4417
        %5749 = vmatpush.bf16.msra.mxu0 %v4409
        %5750 = vmatmul.bf16.gmra.mxu0 %v2330
        %v5751 = vpop.f32.mrf.mxu0
        %v5752 = vadd.f32 %v2857, %v5751
        %v5753 = vpop.f32.mrf.mxu0
        %5754 = vdwg.mxu0
        %5755 = vmatpush.bf16.msra.mxu0 %v4529
        %5756 = vmatpush.bf16.msra.mxu0 %v4521
        %5757 = vmatpush.bf16.msra.mxu0 %v4513
        %5758 = vmatpush.bf16.msra.mxu0 %v4505
        %5759 = vmatpush.bf16.msra.mxu0 %v4497
        %5760 = vmatpush.bf16.msra.mxu0 %v4489
        %5761 = vmatpush.bf16.msra.mxu0 %v4481
        %5762 = vmatpush.bf16.msra.mxu0 %v4473
        %5763 = vmatmul.bf16.gmra.mxu0 %v2331
        %v5764 = vpop.f32.mrf.mxu0
        %v5765 = vadd.f32 %v5752, %v5764
        %v5766 = vpop.f32.mrf.mxu0
        %5767 = vdwg.mxu0
        %5768 = vmatpush.bf16.msra.mxu0 %v4593
        %5769 = vmatpush.bf16.msra.mxu0 %v4585
        %5770 = vmatpush.bf16.msra.mxu0 %v4577
        %5771 = vmatpush.bf16.msra.mxu0 %v4569
        %5772 = vmatpush.bf16.msra.mxu0 %v4561
        %5773 = vmatpush.bf16.msra.mxu0 %v4553
        %5774 = vmatpush.bf16.msra.mxu0 %v4545
        %5775 = vmatpush.bf16.msra.mxu0 %v4537
        %5776 = vmatmul.bf16.gmra.mxu0 %v2332
        %v5777 = vpop.f32.mrf.mxu0
        %v5778 = vadd.f32 %v5765, %v5777
        %v5779 = vpop.f32.mrf.mxu0
        %5780 = vdwg.mxu0
        %5781 = vmatpush.bf16.msra.mxu0 %v4657
        %5782 = vmatpush.bf16.msra.mxu0 %v4649
        %5783 = vmatpush.bf16.msra.mxu0 %v4641
        %5784 = vmatpush.bf16.msra.mxu0 %v4633
        %5785 = vmatpush.bf16.msra.mxu0 %v4625
        %5786 = vmatpush.bf16.msra.mxu0 %v4617
        %5787 = vmatpush.bf16.msra.mxu0 %v4609
        %5788 = vmatpush.bf16.msra.mxu0 %v4601
        %5789 = vmatmul.bf16.gmra.mxu0 %v2333
        %v5790 = vpop.f32.mrf.mxu0
        %v5791 = vadd.f32 %v5778, %v5790
        %v5792 = vpop.f32.mrf.mxu0
        %5793 = vdwg.mxu0
        %5794 = vmatpush.bf16.msra.mxu0 %v4721
        %5795 = vmatpush.bf16.msra.mxu0 %v4713
        %5796 = vmatpush.bf16.msra.mxu0 %v4705
        %5797 = vmatpush.bf16.msra.mxu0 %v4697
        %5798 = vmatpush.bf16.msra.mxu0 %v4689
        %5799 = vmatpush.bf16.msra.mxu0 %v4681
        %5800 = vmatpush.bf16.msra.mxu0 %v4673
        %5801 = vmatpush.bf16.msra.mxu0 %v4665
        %5802 = vmatmul.bf16.gmra.mxu0 %v2334
        %v5803 = vpop.f32.mrf.mxu0
        %v5804 = vadd.f32 %v5791, %v5803
        %v5805 = vpop.f32.mrf.mxu0
        %5806 = vdwg.mxu0
        %5807 = vmatpush.bf16.msra.mxu0 %v4785
        %5808 = vmatpush.bf16.msra.mxu0 %v4777
        %5809 = vmatpush.bf16.msra.mxu0 %v4769
        %5810 = vmatpush.bf16.msra.mxu0 %v4761
        %5811 = vmatpush.bf16.msra.mxu0 %v4753
        %5812 = vmatpush.bf16.msra.mxu0 %v4745
        %5813 = vmatpush.bf16.msra.mxu0 %v4737
        %5814 = vmatpush.bf16.msra.mxu0 %v4729
        %5815 = vmatmul.bf16.gmra.mxu0 %v2335
        %v5816 = vpop.f32.mrf.mxu0
        %v5817 = vadd.f32 %v5804, %v5816
        %v5818 = vpop.f32.mrf.mxu0
        %5819 = vdwg.mxu0
        %5820 = vmatpush.bf16.msra.mxu0 %v4849
        %5821 = vmatpush.bf16.msra.mxu0 %v4841
        %5822 = vmatpush.bf16.msra.mxu0 %v4833
        %5823 = vmatpush.bf16.msra.mxu0 %v4825
        %5824 = vmatpush.bf16.msra.mxu0 %v4817
        %5825 = vmatpush.bf16.msra.mxu0 %v4809
        %5826 = vmatpush.bf16.msra.mxu0 %v4801
        %5827 = vmatpush.bf16.msra.mxu0 %v4793
        %5828 = vmatmul.bf16.gmra.mxu0 %v2336
        %v5829 = vpop.f32.mrf.mxu0
        %v5830 = vadd.f32 %v5817, %v5829
        %v5831 = vpop.f32.mrf.mxu0
        %5832 = vdwg.mxu0
        %5833 = vmatpush.bf16.msra.mxu0 %v4913
        %5834 = vmatpush.bf16.msra.mxu0 %v4905
        %5835 = vmatpush.bf16.msra.mxu0 %v4897
        %5836 = vmatpush.bf16.msra.mxu0 %v4889
        %5837 = vmatpush.bf16.msra.mxu0 %v4881
        %5838 = vmatpush.bf16.msra.mxu0 %v4873
        %5839 = vmatpush.bf16.msra.mxu0 %v4865
        %5840 = vmatpush.bf16.msra.mxu0 %v4857
        %5841 = vmatmul.bf16.gmra.mxu0 %v2337
        %v5842 = vpop.f32.mrf.mxu0
        %v5843 = vadd.f32 %v5830, %v5842
        %v5844 = vpop.f32.mrf.mxu0
        %5845 = vdwg.mxu0
        %5846 = vmatpush.bf16.msra.mxu0 %v4466
        %5847 = vmatpush.bf16.msra.mxu0 %v4458
        %5848 = vmatpush.bf16.msra.mxu0 %v4450
        %5849 = vmatpush.bf16.msra.mxu0 %v4442
        %5850 = vmatpush.bf16.msra.mxu0 %v4434
        %5851 = vmatpush.bf16.msra.mxu0 %v4426
        %5852 = vmatpush.bf16.msra.mxu0 %v4418
        %5853 = vmatpush.bf16.msra.mxu0 %v4410
        %5854 = vmatmul.bf16.gmra.mxu0 %v2330
        %v5855 = vpop.f32.mrf.mxu0
        %v5856 = vadd.f32 %v2858, %v5855
        %v5857 = vpop.f32.mrf.mxu0
        %5858 = vdwg.mxu0
        %5859 = vmatpush.bf16.msra.mxu0 %v4530
        %5860 = vmatpush.bf16.msra.mxu0 %v4522
        %5861 = vmatpush.bf16.msra.mxu0 %v4514
        %5862 = vmatpush.bf16.msra.mxu0 %v4506
        %5863 = vmatpush.bf16.msra.mxu0 %v4498
        %5864 = vmatpush.bf16.msra.mxu0 %v4490
        %5865 = vmatpush.bf16.msra.mxu0 %v4482
        %5866 = vmatpush.bf16.msra.mxu0 %v4474
        %5867 = vmatmul.bf16.gmra.mxu0 %v2331
        %v5868 = vpop.f32.mrf.mxu0
        %v5869 = vadd.f32 %v5856, %v5868
        %v5870 = vpop.f32.mrf.mxu0
        %5871 = vdwg.mxu0
        %5872 = vmatpush.bf16.msra.mxu0 %v4594
        %5873 = vmatpush.bf16.msra.mxu0 %v4586
        %5874 = vmatpush.bf16.msra.mxu0 %v4578
        %5875 = vmatpush.bf16.msra.mxu0 %v4570
        %5876 = vmatpush.bf16.msra.mxu0 %v4562
        %5877 = vmatpush.bf16.msra.mxu0 %v4554
        %5878 = vmatpush.bf16.msra.mxu0 %v4546
        %5879 = vmatpush.bf16.msra.mxu0 %v4538
        %5880 = vmatmul.bf16.gmra.mxu0 %v2332
        %v5881 = vpop.f32.mrf.mxu0
        %v5882 = vadd.f32 %v5869, %v5881
        %v5883 = vpop.f32.mrf.mxu0
        %5884 = vdwg.mxu0
        %5885 = vmatpush.bf16.msra.mxu0 %v4658
        %5886 = vmatpush.bf16.msra.mxu0 %v4650
        %5887 = vmatpush.bf16.msra.mxu0 %v4642
        %5888 = vmatpush.bf16.msra.mxu0 %v4634
        %5889 = vmatpush.bf16.msra.mxu0 %v4626
        %5890 = vmatpush.bf16.msra.mxu0 %v4618
        %5891 = vmatpush.bf16.msra.mxu0 %v4610
        %5892 = vmatpush.bf16.msra.mxu0 %v4602
        %5893 = vmatmul.bf16.gmra.mxu0 %v2333
        %v5894 = vpop.f32.mrf.mxu0
        %v5895 = vadd.f32 %v5882, %v5894
        %v5896 = vpop.f32.mrf.mxu0
        %5897 = vdwg.mxu0
        %5898 = vmatpush.bf16.msra.mxu0 %v4722
        %5899 = vmatpush.bf16.msra.mxu0 %v4714
        %5900 = vmatpush.bf16.msra.mxu0 %v4706
        %5901 = vmatpush.bf16.msra.mxu0 %v4698
        %5902 = vmatpush.bf16.msra.mxu0 %v4690
        %5903 = vmatpush.bf16.msra.mxu0 %v4682
        %5904 = vmatpush.bf16.msra.mxu0 %v4674
        %5905 = vmatpush.bf16.msra.mxu0 %v4666
        %5906 = vmatmul.bf16.gmra.mxu0 %v2334
        %v5907 = vpop.f32.mrf.mxu0
        %v5908 = vadd.f32 %v5895, %v5907
        %v5909 = vpop.f32.mrf.mxu0
        %5910 = vdwg.mxu0
        %5911 = vmatpush.bf16.msra.mxu0 %v4786
        %5912 = vmatpush.bf16.msra.mxu0 %v4778
        %5913 = vmatpush.bf16.msra.mxu0 %v4770
        %5914 = vmatpush.bf16.msra.mxu0 %v4762
        %5915 = vmatpush.bf16.msra.mxu0 %v4754
        %5916 = vmatpush.bf16.msra.mxu0 %v4746
        %5917 = vmatpush.bf16.msra.mxu0 %v4738
        %5918 = vmatpush.bf16.msra.mxu0 %v4730
        %5919 = vmatmul.bf16.gmra.mxu0 %v2335
        %v5920 = vpop.f32.mrf.mxu0
        %v5921 = vadd.f32 %v5908, %v5920
        %v5922 = vpop.f32.mrf.mxu0
        %5923 = vdwg.mxu0
        %5924 = vmatpush.bf16.msra.mxu0 %v4850
        %5925 = vmatpush.bf16.msra.mxu0 %v4842
        %5926 = vmatpush.bf16.msra.mxu0 %v4834
        %5927 = vmatpush.bf16.msra.mxu0 %v4826
        %5928 = vmatpush.bf16.msra.mxu0 %v4818
        %5929 = vmatpush.bf16.msra.mxu0 %v4810
        %5930 = vmatpush.bf16.msra.mxu0 %v4802
        %5931 = vmatpush.bf16.msra.mxu0 %v4794
        %5932 = vmatmul.bf16.gmra.mxu0 %v2336
        %v5933 = vpop.f32.mrf.mxu0
        %v5934 = vadd.f32 %v5921, %v5933
        %v5935 = vpop.f32.mrf.mxu0
        %5936 = vdwg.mxu0
        %5937 = vmatpush.bf16.msra.mxu0 %v4914
        %5938 = vmatpush.bf16.msra.mxu0 %v4906
        %5939 = vmatpush.bf16.msra.mxu0 %v4898
        %5940 = vmatpush.bf16.msra.mxu0 %v4890
        %5941 = vmatpush.bf16.msra.mxu0 %v4882
        %5942 = vmatpush.bf16.msra.mxu0 %v4874
        %5943 = vmatpush.bf16.msra.mxu0 %v4866
        %5944 = vmatpush.bf16.msra.mxu0 %v4858
        %5945 = vmatmul.bf16.gmra.mxu0 %v2337
        %v5946 = vpop.f32.mrf.mxu0
        %v5947 = vadd.f32 %v5934, %v5946
        %v5948 = vpop.f32.mrf.mxu0
        %5949 = vdwg.mxu0
        %5950 = vmatpush.bf16.msra.mxu0 %v4467
        %5951 = vmatpush.bf16.msra.mxu0 %v4459
        %5952 = vmatpush.bf16.msra.mxu0 %v4451
        %5953 = vmatpush.bf16.msra.mxu0 %v4443
        %5954 = vmatpush.bf16.msra.mxu0 %v4435
        %5955 = vmatpush.bf16.msra.mxu0 %v4427
        %5956 = vmatpush.bf16.msra.mxu0 %v4419
        %5957 = vmatpush.bf16.msra.mxu0 %v4411
        %5958 = vmatmul.bf16.gmra.mxu0 %v2330
        %v5959 = vpop.f32.mrf.mxu0
        %v5960 = vadd.f32 %v2859, %v5959
        %v5961 = vpop.f32.mrf.mxu0
        %5962 = vdwg.mxu0
        %5963 = vmatpush.bf16.msra.mxu0 %v4531
        %5964 = vmatpush.bf16.msra.mxu0 %v4523
        %5965 = vmatpush.bf16.msra.mxu0 %v4515
        %5966 = vmatpush.bf16.msra.mxu0 %v4507
        %5967 = vmatpush.bf16.msra.mxu0 %v4499
        %5968 = vmatpush.bf16.msra.mxu0 %v4491
        %5969 = vmatpush.bf16.msra.mxu0 %v4483
        %5970 = vmatpush.bf16.msra.mxu0 %v4475
        %5971 = vmatmul.bf16.gmra.mxu0 %v2331
        %v5972 = vpop.f32.mrf.mxu0
        %v5973 = vadd.f32 %v5960, %v5972
        %v5974 = vpop.f32.mrf.mxu0
        %5975 = vdwg.mxu0
        %5976 = vmatpush.bf16.msra.mxu0 %v4595
        %5977 = vmatpush.bf16.msra.mxu0 %v4587
        %5978 = vmatpush.bf16.msra.mxu0 %v4579
        %5979 = vmatpush.bf16.msra.mxu0 %v4571
        %5980 = vmatpush.bf16.msra.mxu0 %v4563
        %5981 = vmatpush.bf16.msra.mxu0 %v4555
        %5982 = vmatpush.bf16.msra.mxu0 %v4547
        %5983 = vmatpush.bf16.msra.mxu0 %v4539
        %5984 = vmatmul.bf16.gmra.mxu0 %v2332
        %v5985 = vpop.f32.mrf.mxu0
        %v5986 = vadd.f32 %v5973, %v5985
        %v5987 = vpop.f32.mrf.mxu0
        %5988 = vdwg.mxu0
        %5989 = vmatpush.bf16.msra.mxu0 %v4659
        %5990 = vmatpush.bf16.msra.mxu0 %v4651
        %5991 = vmatpush.bf16.msra.mxu0 %v4643
        %5992 = vmatpush.bf16.msra.mxu0 %v4635
        %5993 = vmatpush.bf16.msra.mxu0 %v4627
        %5994 = vmatpush.bf16.msra.mxu0 %v4619
        %5995 = vmatpush.bf16.msra.mxu0 %v4611
        %5996 = vmatpush.bf16.msra.mxu0 %v4603
        %5997 = vmatmul.bf16.gmra.mxu0 %v2333
        %v5998 = vpop.f32.mrf.mxu0
        %v5999 = vadd.f32 %v5986, %v5998
        %v6000 = vpop.f32.mrf.mxu0
        %6001 = vdwg.mxu0
        %6002 = vmatpush.bf16.msra.mxu0 %v4723
        %6003 = vmatpush.bf16.msra.mxu0 %v4715
        %6004 = vmatpush.bf16.msra.mxu0 %v4707
        %6005 = vmatpush.bf16.msra.mxu0 %v4699
        %6006 = vmatpush.bf16.msra.mxu0 %v4691
        %6007 = vmatpush.bf16.msra.mxu0 %v4683
        %6008 = vmatpush.bf16.msra.mxu0 %v4675
        %6009 = vmatpush.bf16.msra.mxu0 %v4667
        %6010 = vmatmul.bf16.gmra.mxu0 %v2334
        %v6011 = vpop.f32.mrf.mxu0
        %v6012 = vadd.f32 %v5999, %v6011
        %v6013 = vpop.f32.mrf.mxu0
        %6014 = vdwg.mxu0
        %6015 = vmatpush.bf16.msra.mxu0 %v4787
        %6016 = vmatpush.bf16.msra.mxu0 %v4779
        %6017 = vmatpush.bf16.msra.mxu0 %v4771
        %6018 = vmatpush.bf16.msra.mxu0 %v4763
        %6019 = vmatpush.bf16.msra.mxu0 %v4755
        %6020 = vmatpush.bf16.msra.mxu0 %v4747
        %6021 = vmatpush.bf16.msra.mxu0 %v4739
        %6022 = vmatpush.bf16.msra.mxu0 %v4731
        %6023 = vmatmul.bf16.gmra.mxu0 %v2335
        %v6024 = vpop.f32.mrf.mxu0
        %v6025 = vadd.f32 %v6012, %v6024
        %v6026 = vpop.f32.mrf.mxu0
        %6027 = vdwg.mxu0
        %6028 = vmatpush.bf16.msra.mxu0 %v4851
        %6029 = vmatpush.bf16.msra.mxu0 %v4843
        %6030 = vmatpush.bf16.msra.mxu0 %v4835
        %6031 = vmatpush.bf16.msra.mxu0 %v4827
        %6032 = vmatpush.bf16.msra.mxu0 %v4819
        %6033 = vmatpush.bf16.msra.mxu0 %v4811
        %6034 = vmatpush.bf16.msra.mxu0 %v4803
        %6035 = vmatpush.bf16.msra.mxu0 %v4795
        %6036 = vmatmul.bf16.gmra.mxu0 %v2336
        %v6037 = vpop.f32.mrf.mxu0
        %v6038 = vadd.f32 %v6025, %v6037
        %v6039 = vpop.f32.mrf.mxu0
        %6040 = vdwg.mxu0
        %6041 = vmatpush.bf16.msra.mxu0 %v4915
        %6042 = vmatpush.bf16.msra.mxu0 %v4907
        %6043 = vmatpush.bf16.msra.mxu0 %v4899
        %6044 = vmatpush.bf16.msra.mxu0 %v4891
        %6045 = vmatpush.bf16.msra.mxu0 %v4883
        %6046 = vmatpush.bf16.msra.mxu0 %v4875
        %6047 = vmatpush.bf16.msra.mxu0 %v4867
        %6048 = vmatpush.bf16.msra.mxu0 %v4859
        %6049 = vmatmul.bf16.gmra.mxu0 %v2337
        %v6050 = vpop.f32.mrf.mxu0
        %v6051 = vadd.f32 %v6038, %v6050
        %v6052 = vpop.f32.mrf.mxu0
        %6053 = vdwg.mxu0
        %6054 = vmatpush.bf16.msra.mxu0 %v4468
        %6055 = vmatpush.bf16.msra.mxu0 %v4460
        %6056 = vmatpush.bf16.msra.mxu0 %v4452
        %6057 = vmatpush.bf16.msra.mxu0 %v4444
        %6058 = vmatpush.bf16.msra.mxu0 %v4436
        %6059 = vmatpush.bf16.msra.mxu0 %v4428
        %6060 = vmatpush.bf16.msra.mxu0 %v4420
        %6061 = vmatpush.bf16.msra.mxu0 %v4412
        %6062 = vmatmul.bf16.gmra.mxu0 %v2330
        %v6063 = vpop.f32.mrf.mxu0
        %v6064 = vadd.f32 %v2860, %v6063
        %v6065 = vpop.f32.mrf.mxu0
        %6066 = vdwg.mxu0
        %6067 = vmatpush.bf16.msra.mxu0 %v4532
        %6068 = vmatpush.bf16.msra.mxu0 %v4524
        %6069 = vmatpush.bf16.msra.mxu0 %v4516
        %6070 = vmatpush.bf16.msra.mxu0 %v4508
        %6071 = vmatpush.bf16.msra.mxu0 %v4500
        %6072 = vmatpush.bf16.msra.mxu0 %v4492
        %6073 = vmatpush.bf16.msra.mxu0 %v4484
        %6074 = vmatpush.bf16.msra.mxu0 %v4476
        %6075 = vmatmul.bf16.gmra.mxu0 %v2331
        %v6076 = vpop.f32.mrf.mxu0
        %v6077 = vadd.f32 %v6064, %v6076
        %v6078 = vpop.f32.mrf.mxu0
        %6079 = vdwg.mxu0
        %6080 = vmatpush.bf16.msra.mxu0 %v4596
        %6081 = vmatpush.bf16.msra.mxu0 %v4588
        %6082 = vmatpush.bf16.msra.mxu0 %v4580
        %6083 = vmatpush.bf16.msra.mxu0 %v4572
        %6084 = vmatpush.bf16.msra.mxu0 %v4564
        %6085 = vmatpush.bf16.msra.mxu0 %v4556
        %6086 = vmatpush.bf16.msra.mxu0 %v4548
        %6087 = vmatpush.bf16.msra.mxu0 %v4540
        %6088 = vmatmul.bf16.gmra.mxu0 %v2332
        %v6089 = vpop.f32.mrf.mxu0
        %v6090 = vadd.f32 %v6077, %v6089
        %v6091 = vpop.f32.mrf.mxu0
        %6092 = vdwg.mxu0
        %6093 = vmatpush.bf16.msra.mxu0 %v4660
        %6094 = vmatpush.bf16.msra.mxu0 %v4652
        %6095 = vmatpush.bf16.msra.mxu0 %v4644
        %6096 = vmatpush.bf16.msra.mxu0 %v4636
        %6097 = vmatpush.bf16.msra.mxu0 %v4628
        %6098 = vmatpush.bf16.msra.mxu0 %v4620
        %6099 = vmatpush.bf16.msra.mxu0 %v4612
        %6100 = vmatpush.bf16.msra.mxu0 %v4604
        %6101 = vmatmul.bf16.gmra.mxu0 %v2333
        %v6102 = vpop.f32.mrf.mxu0
        %v6103 = vadd.f32 %v6090, %v6102
        %v6104 = vpop.f32.mrf.mxu0
        %6105 = vdwg.mxu0
        %6106 = vmatpush.bf16.msra.mxu0 %v4724
        %6107 = vmatpush.bf16.msra.mxu0 %v4716
        %6108 = vmatpush.bf16.msra.mxu0 %v4708
        %6109 = vmatpush.bf16.msra.mxu0 %v4700
        %6110 = vmatpush.bf16.msra.mxu0 %v4692
        %6111 = vmatpush.bf16.msra.mxu0 %v4684
        %6112 = vmatpush.bf16.msra.mxu0 %v4676
        %6113 = vmatpush.bf16.msra.mxu0 %v4668
        %6114 = vmatmul.bf16.gmra.mxu0 %v2334
        %v6115 = vpop.f32.mrf.mxu0
        %v6116 = vadd.f32 %v6103, %v6115
        %v6117 = vpop.f32.mrf.mxu0
        %6118 = vdwg.mxu0
        %6119 = vmatpush.bf16.msra.mxu0 %v4788
        %6120 = vmatpush.bf16.msra.mxu0 %v4780
        %6121 = vmatpush.bf16.msra.mxu0 %v4772
        %6122 = vmatpush.bf16.msra.mxu0 %v4764
        %6123 = vmatpush.bf16.msra.mxu0 %v4756
        %6124 = vmatpush.bf16.msra.mxu0 %v4748
        %6125 = vmatpush.bf16.msra.mxu0 %v4740
        %6126 = vmatpush.bf16.msra.mxu0 %v4732
        %6127 = vmatmul.bf16.gmra.mxu0 %v2335
        %v6128 = vpop.f32.mrf.mxu0
        %v6129 = vadd.f32 %v6116, %v6128
        %v6130 = vpop.f32.mrf.mxu0
        %6131 = vdwg.mxu0
        %6132 = vmatpush.bf16.msra.mxu0 %v4852
        %6133 = vmatpush.bf16.msra.mxu0 %v4844
        %6134 = vmatpush.bf16.msra.mxu0 %v4836
        %6135 = vmatpush.bf16.msra.mxu0 %v4828
        %6136 = vmatpush.bf16.msra.mxu0 %v4820
        %6137 = vmatpush.bf16.msra.mxu0 %v4812
        %6138 = vmatpush.bf16.msra.mxu0 %v4804
        %6139 = vmatpush.bf16.msra.mxu0 %v4796
        %6140 = vmatmul.bf16.gmra.mxu0 %v2336
        %v6141 = vpop.f32.mrf.mxu0
        %v6142 = vadd.f32 %v6129, %v6141
        %v6143 = vpop.f32.mrf.mxu0
        %6144 = vdwg.mxu0
        %6145 = vmatpush.bf16.msra.mxu0 %v4916
        %6146 = vmatpush.bf16.msra.mxu0 %v4908
        %6147 = vmatpush.bf16.msra.mxu0 %v4900
        %6148 = vmatpush.bf16.msra.mxu0 %v4892
        %6149 = vmatpush.bf16.msra.mxu0 %v4884
        %6150 = vmatpush.bf16.msra.mxu0 %v4876
        %6151 = vmatpush.bf16.msra.mxu0 %v4868
        %6152 = vmatpush.bf16.msra.mxu0 %v4860
        %6153 = vmatmul.bf16.gmra.mxu0 %v2337
        %v6154 = vpop.f32.mrf.mxu0
        %v6155 = vadd.f32 %v6142, %v6154
        %v6156 = vpop.f32.mrf.mxu0
        %6157 = vdwg.mxu0
        %6158 = vmatpush.bf16.msra.mxu0 %v4469
        %6159 = vmatpush.bf16.msra.mxu0 %v4461
        %6160 = vmatpush.bf16.msra.mxu0 %v4453
        %6161 = vmatpush.bf16.msra.mxu0 %v4445
        %6162 = vmatpush.bf16.msra.mxu0 %v4437
        %6163 = vmatpush.bf16.msra.mxu0 %v4429
        %6164 = vmatpush.bf16.msra.mxu0 %v4421
        %6165 = vmatpush.bf16.msra.mxu0 %v4413
        %6166 = vmatmul.bf16.gmra.mxu0 %v2330
        %v6167 = vpop.f32.mrf.mxu0
        %v6168 = vadd.f32 %v2861, %v6167
        %v6169 = vpop.f32.mrf.mxu0
        %6170 = vdwg.mxu0
        %6171 = vmatpush.bf16.msra.mxu0 %v4533
        %6172 = vmatpush.bf16.msra.mxu0 %v4525
        %6173 = vmatpush.bf16.msra.mxu0 %v4517
        %6174 = vmatpush.bf16.msra.mxu0 %v4509
        %6175 = vmatpush.bf16.msra.mxu0 %v4501
        %6176 = vmatpush.bf16.msra.mxu0 %v4493
        %6177 = vmatpush.bf16.msra.mxu0 %v4485
        %6178 = vmatpush.bf16.msra.mxu0 %v4477
        %6179 = vmatmul.bf16.gmra.mxu0 %v2331
        %v6180 = vpop.f32.mrf.mxu0
        %v6181 = vadd.f32 %v6168, %v6180
        %v6182 = vpop.f32.mrf.mxu0
        %6183 = vdwg.mxu0
        %6184 = vmatpush.bf16.msra.mxu0 %v4597
        %6185 = vmatpush.bf16.msra.mxu0 %v4589
        %6186 = vmatpush.bf16.msra.mxu0 %v4581
        %6187 = vmatpush.bf16.msra.mxu0 %v4573
        %6188 = vmatpush.bf16.msra.mxu0 %v4565
        %6189 = vmatpush.bf16.msra.mxu0 %v4557
        %6190 = vmatpush.bf16.msra.mxu0 %v4549
        %6191 = vmatpush.bf16.msra.mxu0 %v4541
        %6192 = vmatmul.bf16.gmra.mxu0 %v2332
        %v6193 = vpop.f32.mrf.mxu0
        %v6194 = vadd.f32 %v6181, %v6193
        %v6195 = vpop.f32.mrf.mxu0
        %6196 = vdwg.mxu0
        %6197 = vmatpush.bf16.msra.mxu0 %v4661
        %6198 = vmatpush.bf16.msra.mxu0 %v4653
        %6199 = vmatpush.bf16.msra.mxu0 %v4645
        %6200 = vmatpush.bf16.msra.mxu0 %v4637
        %6201 = vmatpush.bf16.msra.mxu0 %v4629
        %6202 = vmatpush.bf16.msra.mxu0 %v4621
        %6203 = vmatpush.bf16.msra.mxu0 %v4613
        %6204 = vmatpush.bf16.msra.mxu0 %v4605
        %6205 = vmatmul.bf16.gmra.mxu0 %v2333
        %v6206 = vpop.f32.mrf.mxu0
        %v6207 = vadd.f32 %v6194, %v6206
        %v6208 = vpop.f32.mrf.mxu0
        %6209 = vdwg.mxu0
        %6210 = vmatpush.bf16.msra.mxu0 %v4725
        %6211 = vmatpush.bf16.msra.mxu0 %v4717
        %6212 = vmatpush.bf16.msra.mxu0 %v4709
        %6213 = vmatpush.bf16.msra.mxu0 %v4701
        %6214 = vmatpush.bf16.msra.mxu0 %v4693
        %6215 = vmatpush.bf16.msra.mxu0 %v4685
        %6216 = vmatpush.bf16.msra.mxu0 %v4677
        %6217 = vmatpush.bf16.msra.mxu0 %v4669
        %6218 = vmatmul.bf16.gmra.mxu0 %v2334
        %v6219 = vpop.f32.mrf.mxu0
        %v6220 = vadd.f32 %v6207, %v6219
        %v6221 = vpop.f32.mrf.mxu0
        %6222 = vdwg.mxu0
        %6223 = vmatpush.bf16.msra.mxu0 %v4789
        %6224 = vmatpush.bf16.msra.mxu0 %v4781
        %6225 = vmatpush.bf16.msra.mxu0 %v4773
        %6226 = vmatpush.bf16.msra.mxu0 %v4765
        %6227 = vmatpush.bf16.msra.mxu0 %v4757
        %6228 = vmatpush.bf16.msra.mxu0 %v4749
        %6229 = vmatpush.bf16.msra.mxu0 %v4741
        %6230 = vmatpush.bf16.msra.mxu0 %v4733
        %6231 = vmatmul.bf16.gmra.mxu0 %v2335
        %v6232 = vpop.f32.mrf.mxu0
        %v6233 = vadd.f32 %v6220, %v6232
        %v6234 = vpop.f32.mrf.mxu0
        %6235 = vdwg.mxu0
        %6236 = vmatpush.bf16.msra.mxu0 %v4853
        %6237 = vmatpush.bf16.msra.mxu0 %v4845
        %6238 = vmatpush.bf16.msra.mxu0 %v4837
        %6239 = vmatpush.bf16.msra.mxu0 %v4829
        %6240 = vmatpush.bf16.msra.mxu0 %v4821
        %6241 = vmatpush.bf16.msra.mxu0 %v4813
        %6242 = vmatpush.bf16.msra.mxu0 %v4805
        %6243 = vmatpush.bf16.msra.mxu0 %v4797
        %6244 = vmatmul.bf16.gmra.mxu0 %v2336
        %v6245 = vpop.f32.mrf.mxu0
        %v6246 = vadd.f32 %v6233, %v6245
        %v6247 = vpop.f32.mrf.mxu0
        %6248 = vdwg.mxu0
        %6249 = vmatpush.bf16.msra.mxu0 %v4917
        %6250 = vmatpush.bf16.msra.mxu0 %v4909
        %6251 = vmatpush.bf16.msra.mxu0 %v4901
        %6252 = vmatpush.bf16.msra.mxu0 %v4893
        %6253 = vmatpush.bf16.msra.mxu0 %v4885
        %6254 = vmatpush.bf16.msra.mxu0 %v4877
        %6255 = vmatpush.bf16.msra.mxu0 %v4869
        %6256 = vmatpush.bf16.msra.mxu0 %v4861
        %6257 = vmatmul.bf16.gmra.mxu0 %v2337
        %v6258 = vpop.f32.mrf.mxu0
        %v6259 = vadd.f32 %v6246, %v6258
        %v6260 = vpop.f32.mrf.mxu0
        %6261 = vdwg.mxu0
        %p6262 = scmp.ne.s32.totalorder %s23, 4
        // Predicated region
        $region61: #{_forward_impl.1} parent=39 // pred_check
          %p6263 = pneg %p6262
        $region62: #{_forward_impl.1} parent=39 // pred_check_branch
          %6265 = sbr.rel (%p6263) target = $region64
        $region63: #{_forward_impl.1} parent=39 // pred_region
          %6266 = vst [vmem:[#allocation2] sm:$0xff] %v5531
          %6267 = vst [vmem:[#allocation2 + $0x8] sm:$0xff] %v5635
          %6268 = vst [vmem:[#allocation2 + $0x10] sm:$0xff] %v5739
          %6269 = vst [vmem:[#allocation2 + $0x18] sm:$0xff] %v5843
          %6270 = vst [vmem:[#allocation2 + $0x20] sm:$0xff] %v5947
          %6271 = vst [vmem:[#allocation2 + $0x28] sm:$0xff] %v6051
          %6272 = vst [vmem:[#allocation2 + $0x30] sm:$0xff] %v6155
          %6273 = vst [vmem:[#allocation2 + $0x38] sm:$0xff] %v6259
        $region64: #{_forward_impl.1} parent=39 // pred_fallthru
          _
        %p6274 = scmp.eq.s32.totalorder %s23, 4
        // Predicated region
        $region65: #{_forward_impl.1} parent=39 // pred_check
          %p6275 = pneg %p6274
        $region66: #{_forward_impl.1} parent=39 // pred_check_branch
          %6277 = sbr.rel (%p6275) target = $region68
        $region67: #{_forward_impl.1} parent=39 // pred_region
          %6278 = vst [vmem:[%s323] sm:$0xff] %v5531
          %6279 = vst [vmem:[%s323 + $0x8] sm:$0xff] %v5635
          %6280 = vst [vmem:[%s323 + $0x10] sm:$0xff] %v5739
          %6281 = vst [vmem:[%s323 + $0x18] sm:$0xff] %v5843
          %6282 = vst [vmem:[%s323 + $0x20] sm:$0xff] %v5947
          %6283 = vst [vmem:[%s323 + $0x28] sm:$0xff] %v6051
          %6284 = vst [vmem:[%s323 + $0x30] sm:$0xff] %v6155
          %6285 = vst [vmem:[%s323 + $0x38] sm:$0xff] %v6259
        $region68: #{_forward_impl.1} parent=39 // pred_fallthru
          _
        %p6286 = scmp.lt.s32.totalorder %s22, 0
        %s6287 = scalar_select %p6286, %s22, 0
        %s6288 = smul.addr %s6287, 8
        %s6289 = smul.addr %s6288, 8
        %s6290 = scalar_lea.vmem %s5, %s6289
        // Predicated region
        $region69: #{_forward_impl.1} parent=39 // pred_check
          %p6291 = pneg %p163
        $region70: #{_forward_impl.1} parent=39 // pred_check_branch
          %6293 = sbr.rel (%p6291) target = $region72
        $region71: #{_forward_impl.1} parent=39 // pred_region
          _
        $region72: #{_forward_impl.1} parent=39 // pred_fallthru
          _
        // Predicated region
        $region73: #{_forward_impl.1} parent=39 // pred_check
          %p6294 = pneg %p163
        $region74: #{_forward_impl.1} parent=39 // pred_check_branch
          %6296 = sbr.rel (%p6294) target = $region76
        $region75: #{_forward_impl.1} parent=39 // pred_region
          %p6297 = scmp.lt.s32.totalorder %s22, 0
          %s6298 = scalar_select %p6297, %s22, 0
          %s6299 = smul.addr %s6298, 8
          %s6300 = smul.addr %s6299, 8
          %s6301 = scalar_lea.vmem %s5, %s6300
        $region76: #{_forward_impl.1} parent=39 // pred_fallthru
          _
      $region40: #{_forward_impl.1} parent=5 // pred_fallthru
        _
      %p6302 = scmp.le.s32.totalorder 2, %s13
      // Predicated region
      $region77: #{_forward_impl.1} parent=5 // pred_check
        %p6303 = pneg %p6302
      $region78: #{_forward_impl.1} parent=5 // pred_check_branch
        %6305 = sbr.rel (%p6303) target = $region80
      $region79: #{_forward_impl.1} parent=5 // pred_region
        %s6306 = ssub.s32 %s13, 2
      $region80: #{_forward_impl.1} parent=5 // pred_fallthru
        _
    $region6: #{_forward_impl.1} parent=1 // loop_footer
      %s17 = sadd.s32 1, %s13
    $region7: #{_forward_impl.1} parent=1 // loop_footer_branch
      %12 = sbr.rel target = $region3
    $region8: #{_forward_impl.1} parent=1 // loop_exit
      _
    %6307 = vsyncpa [#allocation4], 1
    %s6308 = scalar_lea.sflag [#allocation4], 1
    %6309 = vsyncpa %s6308, 1
    %6310 = vsyncpa [#allocation6], 1

</llo_original>
